<compile_context>
chip_gen: v5e
topology: v5e:2x2
jax: 0.10.0
libtpu: 0.0.40
codegen_flags: <defaults>
</compile_context>

<pallas_src>
import jax
import jax.numpy as jnp
from jax.experimental import pallas as pl
from jax.experimental.pallas import tpu as pltpu


# ----------------------------------------------------------------------------- kernels

def _conv_pool_kernel(p_ref, w_ref, b_ref, o_ref):
    """Fused conv-as-matmul + bias + ReLU + 2x2 max-pool.

    p_ref: (4, M, K)  im2col patches, pool-phase-major (phase = 2*dh + dw)
    w_ref: (K, C)     conv weight as a matmul matrix (rows ordered (kh, kw, ci))
    b_ref: (1, C)     conv bias
    o_ref: (M, C)     pooled activation; rows ordered (b, ph, pw), channels on lanes
    """
    m = jnp.dot(p_ref[0], w_ref[...], preferred_element_type=jnp.float32)
    for phase in range(1, 4):
        m = jnp.maximum(
            m, jnp.dot(p_ref[phase], w_ref[...], preferred_element_type=jnp.float32))
    # Bias is phase-invariant and ReLU is monotone, so bias + ReLU commute with the max:
    # max_p relu(conv_p + b) == relu(max_p(conv_p) + b).
    o_ref[...] = jnp.maximum(m + b_ref[...], 0.0).astype(o_ref.dtype)


def _conv2_fc_kernel(p_ref, w2_ref, b2_ref, wf1_ref, bf1_ref, wf2_ref, bf2_ref,
                     wf3_ref, bf3_ref, o_ref):
    """conv2 + bias + ReLU + 2x2 max-pool + fc1 + fc2 + fc3, fully fused in VMEM.

    p_ref : (4, B, 2400)  pool-phase-major patches, all 16 pooled positions concatenated
    w2_ref: (2400, 256)   block-diagonal conv2 weight -> emits NHWC-flattened features
    b2_ref: (1, 256)      conv2 bias tiled over the 16 pooled positions
    wf*_ref / bf*_ref     fc weights (already transposed / column-permuted)
    o_ref : (B, 10)       final logits
    """
    m = jnp.dot(p_ref[0], w2_ref[...], preferred_element_type=jnp.float32)
    for phase in range(1, 4):
        m = jnp.maximum(
            m, jnp.dot(p_ref[phase], w2_ref[...], preferred_element_type=jnp.float32))
    feat = jnp.maximum(m + b2_ref[...], 0.0)              # (B, 256) NHWC-flattened, f32
    # nn.Dropout: eval-mode identity (see TODO at top of file).
    h = jnp.dot(feat, wf1_ref[...], preferred_element_type=jnp.float32) + bf1_ref[...]
    h = jnp.dot(h, wf2_ref[...], preferred_element_type=jnp.float32) + bf2_ref[...]
    z = jnp.dot(h, wf3_ref[...], preferred_element_type=jnp.float32) + bf3_ref[...]
    o_ref[...] = z.astype(o_ref.dtype)


# ----------------------------------------------------------------------------- wrappers

def _full_spec(shape):
    """BlockSpec covering the whole array (single grid step)."""
    zeros = (0,) * len(shape)
    return pl.BlockSpec(tuple(shape), lambda i, _z=zeros: _z)


def conv1_pool(p, w, b):
    """p: (4, M, K) phase-major patches, w: (K, C), b: (1, C) -> (M, C) pooled+ReLU'd."""
    _, M, K = p.shape
    C = w.shape[1]
    return pl.pallas_call(
        _conv_pool_kernel,
        out_shape=jax.ShapeDtypeStruct((M, C), jnp.float32),
        grid=(1,),
        in_specs=[_full_spec((4, M, K)), _full_spec((K, C)), _full_spec((1, C))],
        out_specs=_full_spec((M, C)),
        compiler_params=pltpu.CompilerParams(dimension_semantics=("arbitrary",)),
    )(p, w, b)


def conv2_fc(p, prep):
    """p: (4, B, 2400) phase-major patches -> (B, 10) logits."""
    _, B, _ = p.shape
    N = prep["wf3"].shape[1]
    return pl.pallas_call(
        _conv2_fc_kernel,
        out_shape=jax.ShapeDtypeStruct((B, N), jnp.float32),
        grid=(1,),
        in_specs=[
            _full_spec(p.shape),
            _full_spec(prep["w2bd"].shape), _full_spec(prep["b2t"].shape),
            _full_spec(prep["wf1"].shape), _full_spec(prep["bf1"].shape),
            _full_spec(prep["wf2"].shape), _full_spec(prep["bf2"].shape),
            _full_spec(prep["wf3"].shape), _full_spec(prep["bf3"].shape),
        ],
        out_specs=_full_spec((B, N)),
        compiler_params=pltpu.CompilerParams(
            dimension_semantics=("arbitrary",),
            vmem_limit_bytes=64 << 20,
        ),
    )(p, prep["w2bd"], prep["b2t"], prep["wf1"], prep["bf1"],
      prep["wf2"], prep["bf2"], prep["wf3"], prep["bf3"])


# ----------------------------------------------------------------------------- glue

def im2col_nhwc(x, k):
    """Valid-conv patch extraction, channels-last.
    x: (B, H, W, C) -> (B, Ho, Wo, k*k*C), feature order (kh, kw, c)."""
    B, H, W, C = x.shape
    Ho, Wo = H - k + 1, W - k + 1
    rows = jnp.stack([x[:, i:i + Ho] for i in range(k)], axis=3)        # (B, Ho, W, k, C)
    cols = jnp.stack([rows[:, :, j:j + Wo] for j in range(k)], axis=4)  # (B, Ho, Wo, k, k, C)
    return cols.reshape(B, Ho, Wo, k * k * C)


def pool_phase_patches(x, k):
    """im2col + reorder pool-phase-major: (B, H, W, C) -> (4, B, Hp, Wp, k*k*C),
    where phase = 2*dh + dw indexes the 2x2 pooling window position."""
    B, H, W, C = x.shape
    Ho, Wo = H - k + 1, W - k + 1
    Hp, Wp = Ho // 2, Wo // 2
    K = k * k * C
    p = im2col_nhwc(x, k).reshape(B, Hp, 2, Wp, 2, K)
    p = p.transpose(2, 4, 0, 1, 3, 5)                      # (dh, dw, b, ph, pw, K)
    return p.reshape(4, B, Hp, Wp, K)


# ----------------------------------------------------------------------------- model

def init_params(key):
    """Deterministic PyTorch-style uniform(-1/sqrt(fan_in), 1/sqrt(fan_in)) init."""
    ks = jax.random.split(key, 10)

    def u(k, shape, fan_in):
        bound = 1.0 / float(fan_in) ** 0.5
        return jax.random.uniform(k, shape, jnp.float32, -bound, bound)

    return dict(
        conv1_w=u(ks[0], (6, 1, 5, 5), 25),   conv1_b=u(ks[1], (6,), 25),
        conv2_w=u(ks[2], (16, 6, 5, 5), 150), conv2_b=u(ks[3], (16,), 150),
        fc1_w=u(ks[4], (120, 256), 256),      fc1_b=u(ks[5], (120,), 256),
        fc2_w=u(ks[6], (84, 120), 120),       fc2_b=u(ks[7], (84,), 120),
        fc3_w=u(ks[8], (10, 84), 84),         fc3_b=u(ks[9], (10,), 84),
    )


def prepare_params(params):
    """One-time reshuffle of PyTorch-layout weights into matmul-ready TPU layouts."""
    # conv1: (6, 1, 5, 5) -> (25, 6); row order (kh, kw) matches im2col_nhwc with C=1.
    w1 = params["conv1_w"].reshape(6, 25).T
    b1 = params["conv1_b"].reshape(1, 6)

    # conv2: (16, 6, 5, 5) -> (kh, kw, ci, co) -> (150, 16), then block-diagonal over the
    # 16 pooled output positions so the conv2 matmul directly produces the NHWC-flattened
    # (B, 256) feature slab consumed by fc1 inside the same kernel.
    w2 = params["conv2_w"].transpose(2, 3, 1, 0).reshape(150, 16)
    w2bd = jnp.einsum("kc,st->sktc", w2, jnp.eye(16, dtype=w2.dtype))
    w2bd = w2bd.reshape(16 * 150, 16 * 16)                 # (2400, 256)
    b2t = jnp.tile(params["conv2_b"], 16).reshape(1, 256)

    # fc1 columns: torch flattens NCHW (c, h, w); our features are NHWC (h, w, c).
    wf1 = params["fc1_w"].reshape(120, 16, 4, 4).transpose(2, 3, 1, 0).reshape(256, 120)

    return dict(
        w1=w1, b1=b1, w2bd=w2bd, b2t=b2t,
        wf1=wf1, bf1=params["fc1_b"].reshape(1, 120),
        wf2=params["fc2_w"].T, bf2=params["fc2_b"].reshape(1, 84),
        wf3=params["fc3_w"].T, bf3=params["fc3_b"].reshape(1, 10),
    )


def cnn_gray_forward(x, prep):
    """x: (B, 1, 28, 28) float32 (NCHW, as in PyTorch) -> (B, 10)."""
    B = x.shape[0]
    x_nhwc = x.reshape(B, 28, 28, 1)       # NCHW with C==1 -> NHWC is a pure reshape

    # conv1 (1->6, k=5) + ReLU + 2x2 maxpool, fused in kernel A.
    p1 = pool_phase_patches(x_nhwc, 5).reshape(4, B * 144, 25)
    h1 = conv1_pool(p1, prep["w1"], prep["b1"])            # (B*144, 6), rows (b, ph, pw)
    h1 = h1.reshape(B, 12, 12, 6)

    # conv2 (6->16, k=5) + ReLU + 2x2 maxpool + fc1 + fc2 + fc3, fused in kernel B.
    p2 = pool_phase_patches(h1, 5).reshape(4, B, 16 * 150)
    return conv2_fc(p2, prep)                              # (B, 10)


# ----------------------------------------------------------------------------- reference

def reference_forward(x, params):
    """Pure-XLA reference with the original PyTorch semantics (eval-mode dropout)."""
    B = x.shape[0]
    y = x.reshape(B, 28, 28, 1)
    w1 = params["conv1_w"].transpose(2, 3, 1, 0)           # HWIO
    y = jax.lax.conv_general_dilated(y, w1, (1, 1), "VALID",
                                     dimension_numbers=("NHWC", "HWIO", "NHWC"))
    y = jax.nn.relu(y + params["conv1_b"])
    y = jax.lax.reduce_window(y, -jnp.inf, jax.lax.max, (1, 2, 2, 1), (1, 2, 2, 1), "VALID")
    w2 = params["conv2_w"].transpose(2, 3, 1, 0)
    y = jax.lax.conv_general_dilated(y, w2, (1, 1), "VALID",
                                     dimension_numbers=("NHWC", "HWIO", "NHWC"))
    y = jax.nn.relu(y + params["conv2_b"])
    y = jax.lax.reduce_window(y, -jnp.inf, jax.lax.max, (1, 2, 2, 1), (1, 2, 2, 1), "VALID")
    feat = y.transpose(0, 3, 1, 2).reshape(B, 256)         # torch NCHW flatten order
    h = feat @ params["fc1_w"].T + params["fc1_b"]
    h = h @ params["fc2_w"].T + params["fc2_b"]
    return h @ params["fc3_w"].T + params["fc3_b"]


# ----------------------------------------------------------------------------- main

if __name__ == "__main__":
    key = jax.random.PRNGKey(0)
    kx, kp = jax.random.split(key)
    x = jax.random.normal(kx, (2, 1, 28, 28), jnp.float32)   # input_dim=256 => 28x28 gray
    params = init_params(kp)
    prep = prepare_params(params)

    fwd = jax.jit(lambda xx: cnn_gray_forward(xx, prep))
    out = fwd(x)
    jax.block_until_ready(out)

    ref = jax.jit(lambda xx: reference_forward(xx, params))(x)
    jax.block_until_ready(ref)

    assert out.shape == (2, 10) and out.dtype == jnp.float32
    assert jnp.allclose(out, ref, rtol=5e-2, atol=5e-2), (out, ref)
    print("KERNEL_OK")
</pallas_src>

<mosaic_0001>
module attributes {stable_mosaic.version = 11 : i64} {
  func.func @_conv_pool_kernel(%arg0: i32, %arg1: memref<4x288x25xf32, #tpu.memory_space<vmem>>, %arg2: memref<25x6xf32, #tpu.memory_space<vmem>>, %arg3: memref<1x6xf32, #tpu.memory_space<vmem>>, %arg4: memref<288x6xf32, #tpu.memory_space<vmem>>) attributes {dimension_semantics = [#tpu.dimension_semantics<arbitrary>], iteration_bounds = array<i64: 1>, scalar_prefetch = 0 : i64, scratch_operands = 0 : i64, tpu.core_type = #tpu.core_type<tc>, window_params = [{pipeline_mode = #tpu.pipeline_mode<synchronous>, transform_indices = @transform_0, window_bounds = array<i64: 4, 288, 25>}, {pipeline_mode = #tpu.pipeline_mode<synchronous>, transform_indices = @transform_1, window_bounds = array<i64: 25, 6>}, {pipeline_mode = #tpu.pipeline_mode<synchronous>, transform_indices = @transform_2, window_bounds = array<i64: 1, 6>}, {pipeline_mode = #tpu.pipeline_mode<synchronous>, transform_indices = @transform_3, window_bounds = array<i64: 288, 6>}]} {
    %c0 = arith.constant 0 : index
    %c0_0 = arith.constant 0 : index
    %c0_1 = arith.constant 0 : index
    %0 = vector.load %arg1[%c0, %c0_0, %c0_1] : memref<4x288x25xf32, #tpu.memory_space<vmem>>, vector<1x288x25xf32>
    %1 = vector.shape_cast %0 : vector<1x288x25xf32> to vector<288x25xf32>
    %c0_2 = arith.constant 0 : index
    %c0_3 = arith.constant 0 : index
    %2 = vector.load %arg2[%c0_2, %c0_3] : memref<25x6xf32, #tpu.memory_space<vmem>>, vector<25x6xf32>
    %cst = arith.constant dense<0.000000e+00> : vector<288x6xf32>
    %3 = tpu.matmul %1, %2, %cst {dimension_numbers = #tpu.dot_dimension_numbers<[1], [0], [0], [1], [0, 0, 1, 1], [], []>} : vector<288x25xf32>, vector<25x6xf32>, vector<288x6xf32> -> vector<288x6xf32>
    %c1 = arith.constant 1 : index
    %c0_4 = arith.constant 0 : index
    %c0_5 = arith.constant 0 : index
    %4 = vector.load %arg1[%c1, %c0_4, %c0_5] : memref<4x288x25xf32, #tpu.memory_space<vmem>>, vector<1x288x25xf32>
    %5 = vector.shape_cast %4 : vector<1x288x25xf32> to vector<288x25xf32>
    %c0_6 = arith.constant 0 : index
    %c0_7 = arith.constant 0 : index
    %6 = vector.load %arg2[%c0_6, %c0_7] : memref<25x6xf32, #tpu.memory_space<vmem>>, vector<25x6xf32>
    %cst_8 = arith.constant dense<0.000000e+00> : vector<288x6xf32>
    %7 = tpu.matmul %5, %6, %cst_8 {dimension_numbers = #tpu.dot_dimension_numbers<[1], [0], [0], [1], [0, 0, 1, 1], [], []>} : vector<288x25xf32>, vector<25x6xf32>, vector<288x6xf32> -> vector<288x6xf32>
    %8 = arith.maximumf %3, %7 : vector<288x6xf32>
    %c2 = arith.constant 2 : index
    %c0_9 = arith.constant 0 : index
    %c0_10 = arith.constant 0 : index
    %9 = vector.load %arg1[%c2, %c0_9, %c0_10] : memref<4x288x25xf32, #tpu.memory_space<vmem>>, vector<1x288x25xf32>
    %10 = vector.shape_cast %9 : vector<1x288x25xf32> to vector<288x25xf32>
    %c0_11 = arith.constant 0 : index
    %c0_12 = arith.constant 0 : index
    %11 = vector.load %arg2[%c0_11, %c0_12] : memref<25x6xf32, #tpu.memory_space<vmem>>, vector<25x6xf32>
    %cst_13 = arith.constant dense<0.000000e+00> : vector<288x6xf32>
    %12 = tpu.matmul %10, %11, %cst_13 {dimension_numbers = #tpu.dot_dimension_numbers<[1], [0], [0], [1], [0, 0, 1, 1], [], []>} : vector<288x25xf32>, vector<25x6xf32>, vector<288x6xf32> -> vector<288x6xf32>
    %13 = arith.maximumf %8, %12 : vector<288x6xf32>
    %c3 = arith.constant 3 : index
    %c0_14 = arith.constant 0 : index
    %c0_15 = arith.constant 0 : index
    %14 = vector.load %arg1[%c3, %c0_14, %c0_15] : memref<4x288x25xf32, #tpu.memory_space<vmem>>, vector<1x288x25xf32>
    %15 = vector.shape_cast %14 : vector<1x288x25xf32> to vector<288x25xf32>
    %c0_16 = arith.constant 0 : index
    %c0_17 = arith.constant 0 : index
    %16 = vector.load %arg2[%c0_16, %c0_17] : memref<25x6xf32, #tpu.memory_space<vmem>>, vector<25x6xf32>
    %cst_18 = arith.constant dense<0.000000e+00> : vector<288x6xf32>
    %17 = tpu.matmul %15, %16, %cst_18 {dimension_numbers = #tpu.dot_dimension_numbers<[1], [0], [0], [1], [0, 0, 1, 1], [], []>} : vector<288x25xf32>, vector<25x6xf32>, vector<288x6xf32> -> vector<288x6xf32>
    %18 = arith.maximumf %13, %17 : vector<288x6xf32>
    %c0_19 = arith.constant 0 : index
    %c0_20 = arith.constant 0 : index
    %19 = vector.load %arg3[%c0_19, %c0_20] : memref<1x6xf32, #tpu.memory_space<vmem>>, vector<1x6xf32>
    %20 = vector.broadcast %19 : vector<1x6xf32> to vector<288x6xf32>
    %21 = arith.addf %18, %20 : vector<288x6xf32>
    %cst_21 = arith.constant 0.000000e+00 : f32
    %22 = vector.broadcast %cst_21 : f32 to vector<288x6xf32>
    %23 = arith.maximumf %21, %22 : vector<288x6xf32>
    %c0_22 = arith.constant 0 : index
    %c0_23 = arith.constant 0 : index
    %24 = vector.load %arg4[%c0_22, %c0_23] : memref<288x6xf32, #tpu.memory_space<vmem>>, vector<288x6xf32>
    tpu.vector_store %arg4[%c0_22, %c0_23], %23 {strides = array<i32>} : memref<288x6xf32, #tpu.memory_space<vmem>>, vector<288x6xf32>,
    return
  }
  func.func @transform_0(%arg0: i32) -> (i32, i32, i32) {
    %c0_i32 = arith.constant 0 : i32
    %c0_i32_0 = arith.constant 0 : i32
    %c0_i32_1 = arith.constant 0 : i32
    %c0_i32_2 = arith.constant 0 : i32
    return %c0_i32, %c0_i32_0, %c0_i32_1 : i32, i32, i32
  }
  func.func @transform_1(%arg0: i32) -> (i32, i32) {
    %c0_i32 = arith.constant 0 : i32
    %c0_i32_0 = arith.constant 0 : i32
    %c0_i32_1 = arith.constant 0 : i32
    return %c0_i32, %c0_i32_0 : i32, i32
  }
  func.func @transform_2(%arg0: i32) -> (i32, i32) {
    %c0_i32 = arith.constant 0 : i32
    %c0_i32_0 = arith.constant 0 : i32
    %c0_i32_1 = arith.constant 0 : i32
    return %c0_i32, %c0_i32_0 : i32, i32
  }
  func.func @transform_3(%arg0: i32) -> (i32, i32) {
    %c0_i32 = arith.constant 0 : i32
    %c0_i32_0 = arith.constant 0 : i32
    %c0_i32_1 = arith.constant 0 : i32
    return %c0_i32, %c0_i32_0 : i32, i32
  }
}

module attributes {stable_mosaic.version = 11 : i64} {
  func.func @_conv2_fc_kernel(%arg0: i32, %arg1: memref<4x2x2400xf32, #tpu.memory_space<vmem>>, %arg2: memref<2400x256xf32, #tpu.memory_space<vmem>>, %arg3: memref<1x256xf32, #tpu.memory_space<vmem>>, %arg4: memref<256x120xf32, #tpu.memory_space<vmem>>, %arg5: memref<1x120xf32, #tpu.memory_space<vmem>>, %arg6: memref<120x84xf32, #tpu.memory_space<vmem>>, %arg7: memref<1x84xf32, #tpu.memory_space<vmem>>, %arg8: memref<84x10xf32, #tpu.memory_space<vmem>>, %arg9: memref<1x10xf32, #tpu.memory_space<vmem>>, %arg10: memref<2x10xf32, #tpu.memory_space<vmem>>) attributes {dimension_semantics = [#tpu.dimension_semantics<arbitrary>], iteration_bounds = array<i64: 1>, scalar_prefetch = 0 : i64, scratch_operands = 0 : i64, tpu.core_type = #tpu.core_type<tc>, window_params = [{pipeline_mode = #tpu.pipeline_mode<synchronous>, transform_indices = @transform_0, window_bounds = array<i64: 4, 2, 2400>}, {pipeline_mode = #tpu.pipeline_mode<synchronous>, transform_indices = @transform_1, window_bounds = array<i64: 2400, 256>}, {pipeline_mode = #tpu.pipeline_mode<synchronous>, transform_indices = @transform_2, window_bounds = array<i64: 1, 256>}, {pipeline_mode = #tpu.pipeline_mode<synchronous>, transform_indices = @transform_3, window_bounds = array<i64: 256, 120>}, {pipeline_mode = #tpu.pipeline_mode<synchronous>, transform_indices = @transform_4, window_bounds = array<i64: 1, 120>}, {pipeline_mode = #tpu.pipeline_mode<synchronous>, transform_indices = @transform_5, window_bounds = array<i64: 120, 84>}, {pipeline_mode = #tpu.pipeline_mode<synchronous>, transform_indices = @transform_6, window_bounds = array<i64: 1, 84>}, {pipeline_mode = #tpu.pipeline_mode<synchronous>, transform_indices = @transform_7, window_bounds = array<i64: 84, 10>}, {pipeline_mode = #tpu.pipeline_mode<synchronous>, transform_indices = @transform_8, window_bounds = array<i64: 1, 10>}, {pipeline_mode = #tpu.pipeline_mode<synchronous>, transform_indices = @transform_9, window_bounds = array<i64: 2, 10>}]} {
    %c0 = arith.constant 0 : index
    %c0_0 = arith.constant 0 : index
    %c0_1 = arith.constant 0 : index
    %0 = vector.load %arg1[%c0, %c0_0, %c0_1] : memref<4x2x2400xf32, #tpu.memory_space<vmem>>, vector<1x2x2400xf32>
    %1 = vector.shape_cast %0 : vector<1x2x2400xf32> to vector<2x2400xf32>
    %c0_2 = arith.constant 0 : index
    %c0_3 = arith.constant 0 : index
    %2 = vector.load %arg2[%c0_2, %c0_3] : memref<2400x256xf32, #tpu.memory_space<vmem>>, vector<2400x256xf32>
    %cst = arith.constant dense<0.000000e+00> : vector<2x256xf32>
    %3 = tpu.matmul %1, %2, %cst {dimension_numbers = #tpu.dot_dimension_numbers<[1], [0], [0], [1], [0, 0, 1, 1], [], []>} : vector<2x2400xf32>, vector<2400x256xf32>, vector<2x256xf32> -> vector<2x256xf32>
    %c1 = arith.constant 1 : index
    %c0_4 = arith.constant 0 : index
    %c0_5 = arith.constant 0 : index
    %4 = vector.load %arg1[%c1, %c0_4, %c0_5] : memref<4x2x2400xf32, #tpu.memory_space<vmem>>, vector<1x2x2400xf32>
    %5 = vector.shape_cast %4 : vector<1x2x2400xf32> to vector<2x2400xf32>
    %c0_6 = arith.constant 0 : index
    %c0_7 = arith.constant 0 : index
    %6 = vector.load %arg2[%c0_6, %c0_7] : memref<2400x256xf32, #tpu.memory_space<vmem>>, vector<2400x256xf32>
    %cst_8 = arith.constant dense<0.000000e+00> : vector<2x256xf32>
    %7 = tpu.matmul %5, %6, %cst_8 {dimension_numbers = #tpu.dot_dimension_numbers<[1], [0], [0], [1], [0, 0, 1, 1], [], []>} : vector<2x2400xf32>, vector<2400x256xf32>, vector<2x256xf32> -> vector<2x256xf32>
    %8 = arith.maximumf %3, %7 : vector<2x256xf32>
    %c2 = arith.constant 2 : index
    %c0_9 = arith.constant 0 : index
    %c0_10 = arith.constant 0 : index
    %9 = vector.load %arg1[%c2, %c0_9, %c0_10] : memref<4x2x2400xf32, #tpu.memory_space<vmem>>, vector<1x2x2400xf32>
    %10 = vector.shape_cast %9 : vector<1x2x2400xf32> to vector<2x2400xf32>
    %c0_11 = arith.constant 0 : index
    %c0_12 = arith.constant 0 : index
    %11 = vector.load %arg2[%c0_11, %c0_12] : memref<2400x256xf32, #tpu.memory_space<vmem>>, vector<2400x256xf32>
    %cst_13 = arith.constant dense<0.000000e+00> : vector<2x256xf32>
    %12 = tpu.matmul %10, %11, %cst_13 {dimension_numbers = #tpu.dot_dimension_numbers<[1], [0], [0], [1], [0, 0, 1, 1], [], []>} : vector<2x2400xf32>, vector<2400x256xf32>, vector<2x256xf32> -> vector<2x256xf32>
    %13 = arith.maximumf %8, %12 : vector<2x256xf32>
    %c3 = arith.constant 3 : index
    %c0_14 = arith.constant 0 : index
    %c0_15 = arith.constant 0 : index
    %14 = vector.load %arg1[%c3, %c0_14, %c0_15] : memref<4x2x2400xf32, #tpu.memory_space<vmem>>, vector<1x2x2400xf32>
    %15 = vector.shape_cast %14 : vector<1x2x2400xf32> to vector<2x2400xf32>
    %c0_16 = arith.constant 0 : index
    %c0_17 = arith.constant 0 : index
    %16 = vector.load %arg2[%c0_16, %c0_17] : memref<2400x256xf32, #tpu.memory_space<vmem>>, vector<2400x256xf32>
    %cst_18 = arith.constant dense<0.000000e+00> : vector<2x256xf32>
    %17 = tpu.matmul %15, %16, %cst_18 {dimension_numbers = #tpu.dot_dimension_numbers<[1], [0], [0], [1], [0, 0, 1, 1], [], []>} : vector<2x2400xf32>, vector<2400x256xf32>, vector<2x256xf32> -> vector<2x256xf32>
    %18 = arith.maximumf %13, %17 : vector<2x256xf32>
    %c0_19 = arith.constant 0 : index
    %c0_20 = arith.constant 0 : index
    %19 = vector.load %arg3[%c0_19, %c0_20] : memref<1x256xf32, #tpu.memory_space<vmem>>, vector<1x256xf32>
    %20 = vector.broadcast %19 : vector<1x256xf32> to vector<2x256xf32>
    %21 = arith.addf %18, %20 : vector<2x256xf32>
    %cst_21 = arith.constant 0.000000e+00 : f32
    %22 = vector.broadcast %cst_21 : f32 to vector<2x256xf32>
    %23 = arith.maximumf %21, %22 : vector<2x256xf32>
    %c0_22 = arith.constant 0 : index
    %c0_23 = arith.constant 0 : index
    %24 = vector.load %arg4[%c0_22, %c0_23] : memref<256x120xf32, #tpu.memory_space<vmem>>, vector<256x120xf32>
    %cst_24 = arith.constant dense<0.000000e+00> : vector<2x120xf32>
    %25 = tpu.matmul %23, %24, %cst_24 {dimension_numbers = #tpu.dot_dimension_numbers<[1], [0], [0], [1], [0, 0, 1, 1], [], []>} : vector<2x256xf32>, vector<256x120xf32>, vector<2x120xf32> -> vector<2x120xf32>
    %c0_25 = arith.constant 0 : index
    %c0_26 = arith.constant 0 : index
    %26 = vector.load %arg5[%c0_25, %c0_26] : memref<1x120xf32, #tpu.memory_space<vmem>>, vector<1x120xf32>
    %27 = vector.broadcast %26 : vector<1x120xf32> to vector<2x120xf32>
    %28 = arith.addf %25, %27 : vector<2x120xf32>
    %c0_27 = arith.constant 0 : index
    %c0_28 = arith.constant 0 : index
    %29 = vector.load %arg6[%c0_27, %c0_28] : memref<120x84xf32, #tpu.memory_space<vmem>>, vector<120x84xf32>
    %cst_29 = arith.constant dense<0.000000e+00> : vector<2x84xf32>
    %30 = tpu.matmul %28, %29, %cst_29 {dimension_numbers = #tpu.dot_dimension_numbers<[1], [0], [0], [1], [0, 0, 1, 1], [], []>} : vector<2x120xf32>, vector<120x84xf32>, vector<2x84xf32> -> vector<2x84xf32>
    %c0_30 = arith.constant 0 : index
    %c0_31 = arith.constant 0 : index
    %31 = vector.load %arg7[%c0_30, %c0_31] : memref<1x84xf32, #tpu.memory_space<vmem>>, vector<1x84xf32>
    %32 = vector.broadcast %31 : vector<1x84xf32> to vector<2x84xf32>
    %33 = arith.addf %30, %32 : vector<2x84xf32>
    %c0_32 = arith.constant 0 : index
    %c0_33 = arith.constant 0 : index
    %34 = vector.load %arg8[%c0_32, %c0_33] : memref<84x10xf32, #tpu.memory_space<vmem>>, vector<84x10xf32>
    %cst_34 = arith.constant dense<0.000000e+00> : vector<2x10xf32>
    %35 = tpu.matmul %33, %34, %cst_34 {dimension_numbers = #tpu.dot_dimension_numbers<[1], [0], [0], [1], [0, 0, 1, 1], [], []>} : vector<2x84xf32>, vector<84x10xf32>, vector<2x10xf32> -> vector<2x10xf32>
    %c0_35 = arith.constant 0 : index
    %c0_36 = arith.constant 0 : index
    %36 = vector.load %arg9[%c0_35, %c0_36] : memref<1x10xf32, #tpu.memory_space<vmem>>, vector<1x10xf32>
    %37 = vector.broadcast %36 : vector<1x10xf32> to vector<2x10xf32>
    %38 = arith.addf %35, %37 : vector<2x10xf32>
    %c0_37 = arith.constant 0 : index
    %c0_38 = arith.constant 0 : index
    %39 = vector.load %arg10[%c0_37, %c0_38] : memref<2x10xf32, #tpu.memory_space<vmem>>, vector<2x10xf32>
    tpu.vector_store %arg10[%c0_37, %c0_38], %38 {strides = array<i32>} : memref<2x10xf32, #tpu.memory_space<vmem>>, vector<2x10xf32>,
    return
  }
  func.func @transform_0(%arg0: i32) -> (i32, i32, i32) {
    %c0_i32 = arith.constant 0 : i32
    %c0_i32_0 = arith.constant 0 : i32
    %c0_i32_1 = arith.constant 0 : i32
    %c0_i32_2 = arith.constant 0 : i32
    return %c0_i32, %c0_i32_0, %c0_i32_1 : i32, i32, i32
  }
  func.func @transform_1(%arg0: i32) -> (i32, i32) {
    %c0_i32 = arith.constant 0 : i32
    %c0_i32_0 = arith.constant 0 : i32
    %c0_i32_1 = arith.constant 0 : i32
    return %c0_i32, %c0_i32_0 : i32, i32
  }
  func.func @transform_2(%arg0: i32) -> (i32, i32) {
    %c0_i32 = arith.constant 0 : i32
    %c0_i32_0 = arith.constant 0 : i32
    %c0_i32_1 = arith.constant 0 : i32
    return %c0_i32, %c0_i32_0 : i32, i32
  }
  func.func @transform_3(%arg0: i32) -> (i32, i32) {
    %c0_i32 = arith.constant 0 : i32
    %c0_i32_0 = arith.constant 0 : i32
    %c0_i32_1 = arith.constant 0 : i32
    return %c0_i32, %c0_i32_0 : i32, i32
  }
  func.func @transform_4(%arg0: i32) -> (i32, i32) {
    %c0_i32 = arith.constant 0 : i32
    %c0_i32_0 = arith.constant 0 : i32
    %c0_i32_1 = arith.constant 0 : i32
    return %c0_i32, %c0_i32_0 : i32, i32
  }
  func.func @transform_5(%arg0: i32) -> (i32, i32) {
    %c0_i32 = arith.constant 0 : i32
    %c0_i32_0 = arith.constant 0 : i32
    %c0_i32_1 = arith.constant 0 : i32
    return %c0_i32, %c0_i32_0 : i32, i32
  }
  func.func @transform_6(%arg0: i32) -> (i32, i32) {
    %c0_i32 = arith.constant 0 : i32
    %c0_i32_0 = arith.constant 0 : i32
    %c0_i32_1 = arith.constant 0 : i32
    return %c0_i32, %c0_i32_0 : i32, i32
  }
  func.func @transform_7(%arg0: i32) -> (i32, i32) {
    %c0_i32 = arith.constant 0 : i32
    %c0_i32_0 = arith.constant 0 : i32
    %c0_i32_1 = arith.constant 0 : i32
    return %c0_i32, %c0_i32_0 : i32, i32
  }
  func.func @transform_8(%arg0: i32) -> (i32, i32) {
    %c0_i32 = arith.constant 0 : i32
    %c0_i32_0 = arith.constant 0 : i32
    %c0_i32_1 = arith.constant 0 : i32
    return %c0_i32, %c0_i32_0 : i32, i32
  }
  func.func @transform_9(%arg0: i32) -> (i32, i32) {
    %c0_i32 = arith.constant 0 : i32
    %c0_i32_0 = arith.constant 0 : i32
    %c0_i32_1 = arith.constant 0 : i32
    return %c0_i32, %c0_i32_0 : i32, i32
  }
}

</mosaic_0001>

<llo_original>
// kernel: _lambda_.2
$region0: #{_lambda_.2}
  #allocation0 [shape = 'u32[]', space=smem, size = 0x4, offset = 0x4, fixed_abs, tag = 'smem constant byte address 0x4 - core index']
  #allocation1 [shape = 'u32[72,128]{1,0:T(1,128)}', space=vmem, size = 0x9000, scoped, tag = 'internal scratch']
  %s0 = inlined_call_operand.vmem [shape: f32[4,288,25], index: 0, kind: input, shape index: {}]
  %s1 = inlined_call_operand.vmem [shape: f32[25,6], index: 1, kind: input, shape index: {}]
  %s2 = inlined_call_operand.vmem [shape: f32[1,6], index: 2, kind: input, shape index: {}]
  %s3 = inlined_call_operand.vmem [shape: f32[288,6], index: 3, kind: output, shape index: {}]
  %s4 = sld [smem:[#allocation0]]
  $region22: #{_lambda_.2} parent=0
    _
  %s6 = ssub.s32 1, %s4
  %s7 = scalar_select 0, %s6, %s4
  // Predicated region
  $region2: #{_lambda_.2} parent=0 // pred_check
    _
  $region3: #{_lambda_.2} parent=0 // pred_check_branch
    %9 = sbr.rel (0) target = $region5
  $region4: #{_lambda_.2} parent=0 // pred_region
    _
  $region5: #{_lambda_.2} parent=0 // pred_fallthru
    _
  // Predicated region
  $region6: #{_lambda_.2} parent=0 // pred_check
    _
  $region7: #{_lambda_.2} parent=0 // pred_check_branch
    %11 = sbr.rel (0) target = $region9
  $region8: #{_lambda_.2} parent=0 // pred_region
    _
  $region9: #{_lambda_.2} parent=0 // pred_fallthru
    _
  // Predicated region
  $region10: #{_lambda_.2} parent=0 // pred_check
    _
  $region11: #{_lambda_.2} parent=0 // pred_check_branch
    %13 = sbr.rel (0) target = $region13
  $region12: #{_lambda_.2} parent=0 // pred_region
    _
  $region13: #{_lambda_.2} parent=0 // pred_fallthru
    _
  %v14 = vld [vmem:[%s0] sm:$0xff]
  %v15 = vld [vmem:[%s0 + $0x8] sm:$0xff]
  %v16 = vld [vmem:[%s0 + $0x10] sm:$0xff]
  %v17 = vld [vmem:[%s0 + $0x18] sm:$0xff]
  %v18 = vld [vmem:[%s0 + $0x20] sm:$0xff]
  %v19 = vld [vmem:[%s0 + $0x28] sm:$0xff]
  %v20 = vld [vmem:[%s0 + $0x30] sm:$0xff]
  %v21 = vld [vmem:[%s0 + $0x38] sm:$0xff]
  %v22 = vld [vmem:[%s0 + $0x40] sm:$0xff]
  %v23 = vld [vmem:[%s0 + $0x48] sm:$0xff]
  %v24 = vld [vmem:[%s0 + $0x50] sm:$0xff]
  %v25 = vld [vmem:[%s0 + $0x58] sm:$0xff]
  %v26 = vld [vmem:[%s0 + $0x60] sm:$0xff]
  %v27 = vld [vmem:[%s0 + $0x68] sm:$0xff]
  %v28 = vld [vmem:[%s0 + $0x70] sm:$0xff]
  %v29 = vld [vmem:[%s0 + $0x78] sm:$0xff]
  %v30 = vld [vmem:[%s0 + $0x80] sm:$0xff]
  %v31 = vld [vmem:[%s0 + $0x88] sm:$0xff]
  %v32 = vld [vmem:[%s0 + $0x90] sm:$0xff]
  %v33 = vld [vmem:[%s0 + $0x98] sm:$0xff]
  %v34 = vld [vmem:[%s0 + $0xa0] sm:$0xff]
  %v35 = vld [vmem:[%s0 + $0xa8] sm:$0xff]
  %v36 = vld [vmem:[%s0 + $0xb0] sm:$0xff]
  %v37 = vld [vmem:[%s0 + $0xb8] sm:$0xff]
  %v38 = vld [vmem:[%s0 + $0xc0] sm:$0xff]
  %v39 = vld [vmem:[%s0 + $0xc8] sm:$0xff]
  %v40 = vld [vmem:[%s0 + $0xd0] sm:$0xff]
  %v41 = vld [vmem:[%s0 + $0xd8] sm:$0xff]
  %v42 = vld [vmem:[%s0 + $0xe0] sm:$0xff]
  %v43 = vld [vmem:[%s0 + $0xe8] sm:$0xff]
  %v44 = vld [vmem:[%s0 + $0xf0] sm:$0xff]
  %v45 = vld [vmem:[%s0 + $0xf8] sm:$0xff]
  %v46 = vld [vmem:[%s0 + $0x100] sm:$0xff]
  %v47 = vld [vmem:[%s0 + $0x108] sm:$0xff]
  %v48 = vld [vmem:[%s0 + $0x110] sm:$0xff]
  %v49 = vld [vmem:[%s0 + $0x118] sm:$0xff]
  %v50 = vld [vmem:[%s1] sm:$0xff]
  %v51 = vld [vmem:[%s1 + $0x8] sm:$0xff]
  %v52 = vld [vmem:[%s1 + $0x10] sm:$0xff]
  %v53 = vld [vmem:[%s1 + $0x18] sm:$0x1]
  %vm54 = vcmask 203776
  %v56 = vsel %vm54, %v14, 0
  %v59 = vsel %vm54, %v15, 0
  %v62 = vsel %vm54, %v16, 0
  %v65 = vsel %vm54, %v17, 0
  %v68 = vsel %vm54, %v18, 0
  %v71 = vsel %vm54, %v19, 0
  %v74 = vsel %vm54, %v20, 0
  %v77 = vsel %vm54, %v21, 0
  %v80 = vsel %vm54, %v22, 0
  %v83 = vsel %vm54, %v23, 0
  %v86 = vsel %vm54, %v24, 0
  %v89 = vsel %vm54, %v25, 0
  %v92 = vsel %vm54, %v26, 0
  %v95 = vsel %vm54, %v27, 0
  %v98 = vsel %vm54, %v28, 0
  %v101 = vsel %vm54, %v29, 0
  %v104 = vsel %vm54, %v30, 0
  %v107 = vsel %vm54, %v31, 0
  %v110 = vsel %vm54, %v32, 0
  %v113 = vsel %vm54, %v33, 0
  %v116 = vsel %vm54, %v34, 0
  %v119 = vsel %vm54, %v35, 0
  %v122 = vsel %vm54, %v36, 0
  %v125 = vsel %vm54, %v37, 0
  %v128 = vsel %vm54, %v38, 0
  %v131 = vsel %vm54, %v39, 0
  %v134 = vsel %vm54, %v40, 0
  %v137 = vsel %vm54, %v41, 0
  %v140 = vsel %vm54, %v42, 0
  %v143 = vsel %vm54, %v43, 0
  %v146 = vsel %vm54, %v44, 0
  %v149 = vsel %vm54, %v45, 0
  %v152 = vsel %vm54, %v46, 0
  %v155 = vsel %vm54, %v47, 0
  %v158 = vsel %vm54, %v48, 0
  %v161 = vsel %vm54, %v49, 0
  %vm163 = vcmask 1040384
  %v165 = vsel %vm163, %v53, 0
  %167 = vmatpush.msra.mxu0 0.0
  %168 = vmatpush.msra.mxu0 0.0
  %169 = vmatpush.msra.mxu0 0.0
  %170 = vmatpush.msra.mxu0 0.0
  %171 = vmatpush.msra.mxu0 0.0
  %172 = vmatpush.msra.mxu0 0.0
  %173 = vmatpush.msra.mxu0 0.0
  %174 = vmatpush.msra.mxu0 0.0
  %175 = vmatpush.msra.mxu0 0.0
  %176 = vmatpush.msra.mxu0 0.0
  %177 = vmatpush.msra.mxu0 0.0
  %178 = vmatpush.msra.mxu0 0.0
  %179 = vmatpush.msra.mxu0 %v165
  %180 = vmatpush.msra.mxu0 %v52
  %181 = vmatpush.msra.mxu0 %v51
  %182 = vmatpush.msra.mxu0 %v50
  %183 = vmatmul.f32.gmra.mxu0 %v56
  %v184 = vpop.f32.mrf.mxu0
  %v185 = vadd.f32 0.0, %v184
  %186 = vmatmul.f32.gmra.mxu0 %v59
  %v187 = vpop.f32.mrf.mxu0
  %v188 = vadd.f32 0.0, %v187
  %189 = vmatmul.f32.gmra.mxu0 %v62
  %v190 = vpop.f32.mrf.mxu0
  %v191 = vadd.f32 0.0, %v190
  %192 = vmatmul.f32.gmra.mxu0 %v65
  %v193 = vpop.f32.mrf.mxu0
  %v194 = vadd.f32 0.0, %v193
  %195 = vmatmul.f32.gmra.mxu0 %v68
  %v196 = vpop.f32.mrf.mxu0
  %v197 = vadd.f32 0.0, %v196
  %198 = vmatmul.f32.gmra.mxu0 %v71
  %v199 = vpop.f32.mrf.mxu0
  %v200 = vadd.f32 0.0, %v199
  %201 = vmatmul.f32.gmra.mxu0 %v74
  %v202 = vpop.f32.mrf.mxu0
  %v203 = vadd.f32 0.0, %v202
  %204 = vmatmul.f32.gmra.mxu0 %v77
  %v205 = vpop.f32.mrf.mxu0
  %v206 = vadd.f32 0.0, %v205
  %207 = vmatmul.f32.gmra.mxu0 %v80
  %v208 = vpop.f32.mrf.mxu0
  %v209 = vadd.f32 0.0, %v208
  %210 = vmatmul.f32.gmra.mxu0 %v83
  %v211 = vpop.f32.mrf.mxu0
  %v212 = vadd.f32 0.0, %v211
  %213 = vmatmul.f32.gmra.mxu0 %v86
  %v214 = vpop.f32.mrf.mxu0
  %v215 = vadd.f32 0.0, %v214
  %216 = vmatmul.f32.gmra.mxu0 %v89
  %v217 = vpop.f32.mrf.mxu0
  %v218 = vadd.f32 0.0, %v217
  %219 = vmatmul.f32.gmra.mxu0 %v92
  %v220 = vpop.f32.mrf.mxu0
  %v221 = vadd.f32 0.0, %v220
  %222 = vmatmul.f32.gmra.mxu0 %v95
  %v223 = vpop.f32.mrf.mxu0
  %v224 = vadd.f32 0.0, %v223
  %225 = vmatmul.f32.gmra.mxu0 %v98
  %v226 = vpop.f32.mrf.mxu0
  %v227 = vadd.f32 0.0, %v226
  %228 = vmatmul.f32.gmra.mxu0 %v101
  %v229 = vpop.f32.mrf.mxu0
  %v230 = vadd.f32 0.0, %v229
  %231 = vmatmul.f32.gmra.mxu0 %v104
  %v232 = vpop.f32.mrf.mxu0
  %v233 = vadd.f32 0.0, %v232
  %234 = vmatmul.f32.gmra.mxu0 %v107
  %v235 = vpop.f32.mrf.mxu0
  %v236 = vadd.f32 0.0, %v235
  %237 = vmatmul.f32.gmra.mxu0 %v110
  %v238 = vpop.f32.mrf.mxu0
  %v239 = vadd.f32 0.0, %v238
  %240 = vmatmul.f32.gmra.mxu0 %v113
  %v241 = vpop.f32.mrf.mxu0
  %v242 = vadd.f32 0.0, %v241
  %243 = vmatmul.f32.gmra.mxu0 %v116
  %v244 = vpop.f32.mrf.mxu0
  %v245 = vadd.f32 0.0, %v244
  %246 = vmatmul.f32.gmra.mxu0 %v119
  %v247 = vpop.f32.mrf.mxu0
  %v248 = vadd.f32 0.0, %v247
  %249 = vmatmul.f32.gmra.mxu0 %v122
  %v250 = vpop.f32.mrf.mxu0
  %v251 = vadd.f32 0.0, %v250
  %252 = vmatmul.f32.gmra.mxu0 %v125
  %v253 = vpop.f32.mrf.mxu0
  %v254 = vadd.f32 0.0, %v253
  %255 = vmatmul.f32.gmra.mxu0 %v128
  %v256 = vpop.f32.mrf.mxu0
  %v257 = vadd.f32 0.0, %v256
  %258 = vmatmul.f32.gmra.mxu0 %v131
  %v259 = vpop.f32.mrf.mxu0
  %v260 = vadd.f32 0.0, %v259
  %261 = vmatmul.f32.gmra.mxu0 %v134
  %v262 = vpop.f32.mrf.mxu0
  %v263 = vadd.f32 0.0, %v262
  %264 = vmatmul.f32.gmra.mxu0 %v137
  %v265 = vpop.f32.mrf.mxu0
  %v266 = vadd.f32 0.0, %v265
  %267 = vmatmul.f32.gmra.mxu0 %v140
  %v268 = vpop.f32.mrf.mxu0
  %v269 = vadd.f32 0.0, %v268
  %270 = vmatmul.f32.gmra.mxu0 %v143
  %v271 = vpop.f32.mrf.mxu0
  %v272 = vadd.f32 0.0, %v271
  %273 = vmatmul.f32.gmra.mxu0 %v146
  %v274 = vpop.f32.mrf.mxu0
  %v275 = vadd.f32 0.0, %v274
  %276 = vmatmul.f32.gmra.mxu0 %v149
  %v277 = vpop.f32.mrf.mxu0
  %v278 = vadd.f32 0.0, %v277
  %279 = vmatmul.f32.gmra.mxu0 %v152
  %v280 = vpop.f32.mrf.mxu0
  %v281 = vadd.f32 0.0, %v280
  %282 = vmatmul.f32.gmra.mxu0 %v155
  %v283 = vpop.f32.mrf.mxu0
  %v284 = vadd.f32 0.0, %v283
  %285 = vmatmul.f32.gmra.mxu0 %v158
  %v286 = vpop.f32.mrf.mxu0
  %v287 = vadd.f32 0.0, %v286
  %288 = vmatmul.f32.gmra.mxu0 %v161
  %v289 = vpop.f32.mrf.mxu0
  %v290 = vadd.f32 0.0, %v289
  %291 = vdwg.mxu0
  %s292 = scalar_lea.vmem %s0, 288
  %v293 = vld [vmem:[%s292] sm:$0xff]
  %v294 = vld [vmem:[%s292 + $0x8] sm:$0xff]
  %v295 = vld [vmem:[%s292 + $0x10] sm:$0xff]
  %v296 = vld [vmem:[%s292 + $0x18] sm:$0xff]
  %v297 = vld [vmem:[%s292 + $0x20] sm:$0xff]
  %v298 = vld [vmem:[%s292 + $0x28] sm:$0xff]
  %v299 = vld [vmem:[%s292 + $0x30] sm:$0xff]
  %v300 = vld [vmem:[%s292 + $0x38] sm:$0xff]
  %v301 = vld [vmem:[%s292 + $0x40] sm:$0xff]
  %v302 = vld [vmem:[%s292 + $0x48] sm:$0xff]
  %v303 = vld [vmem:[%s292 + $0x50] sm:$0xff]
  %v304 = vld [vmem:[%s292 + $0x58] sm:$0xff]
  %v305 = vld [vmem:[%s292 + $0x60] sm:$0xff]
  %v306 = vld [vmem:[%s292 + $0x68] sm:$0xff]
  %v307 = vld [vmem:[%s292 + $0x70] sm:$0xff]
  %v308 = vld [vmem:[%s292 + $0x78] sm:$0xff]
  %v309 = vld [vmem:[%s292 + $0x80] sm:$0xff]
  %v310 = vld [vmem:[%s292 + $0x88] sm:$0xff]
  %v311 = vld [vmem:[%s292 + $0x90] sm:$0xff]
  %v312 = vld [vmem:[%s292 + $0x98] sm:$0xff]
  %v313 = vld [vmem:[%s292 + $0xa0] sm:$0xff]
  %v314 = vld [vmem:[%s292 + $0xa8] sm:$0xff]
  %v315 = vld [vmem:[%s292 + $0xb0] sm:$0xff]
  %v316 = vld [vmem:[%s292 + $0xb8] sm:$0xff]
  %v317 = vld [vmem:[%s292 + $0xc0] sm:$0xff]
  %v318 = vld [vmem:[%s292 + $0xc8] sm:$0xff]
  %v319 = vld [vmem:[%s292 + $0xd0] sm:$0xff]
  %v320 = vld [vmem:[%s292 + $0xd8] sm:$0xff]
  %v321 = vld [vmem:[%s292 + $0xe0] sm:$0xff]
  %v322 = vld [vmem:[%s292 + $0xe8] sm:$0xff]
  %v323 = vld [vmem:[%s292 + $0xf0] sm:$0xff]
  %v324 = vld [vmem:[%s292 + $0xf8] sm:$0xff]
  %v325 = vld [vmem:[%s292 + $0x100] sm:$0xff]
  %v326 = vld [vmem:[%s292 + $0x108] sm:$0xff]
  %v327 = vld [vmem:[%s292 + $0x110] sm:$0xff]
  %v328 = vld [vmem:[%s292 + $0x118] sm:$0xff]
  %v330 = vsel %vm54, %v293, 0
  %v333 = vsel %vm54, %v294, 0
  %v336 = vsel %vm54, %v295, 0
  %v339 = vsel %vm54, %v296, 0
  %v342 = vsel %vm54, %v297, 0
  %v345 = vsel %vm54, %v298, 0
  %v348 = vsel %vm54, %v299, 0
  %v351 = vsel %vm54, %v300, 0
  %v354 = vsel %vm54, %v301, 0
  %v357 = vsel %vm54, %v302, 0
  %v360 = vsel %vm54, %v303, 0
  %v363 = vsel %vm54, %v304, 0
  %v366 = vsel %vm54, %v305, 0
  %v369 = vsel %vm54, %v306, 0
  %v372 = vsel %vm54, %v307, 0
  %v375 = vsel %vm54, %v308, 0
  %v378 = vsel %vm54, %v309, 0
  %v381 = vsel %vm54, %v310, 0
  %v384 = vsel %vm54, %v311, 0
  %v387 = vsel %vm54, %v312, 0
  %v390 = vsel %vm54, %v313, 0
  %v393 = vsel %vm54, %v314, 0
  %v396 = vsel %vm54, %v315, 0
  %v399 = vsel %vm54, %v316, 0
  %v402 = vsel %vm54, %v317, 0
  %v405 = vsel %vm54, %v318, 0
  %v408 = vsel %vm54, %v319, 0
  %v411 = vsel %vm54, %v320, 0
  %v414 = vsel %vm54, %v321, 0
  %v417 = vsel %vm54, %v322, 0
  %v420 = vsel %vm54, %v323, 0
  %v423 = vsel %vm54, %v324, 0
  %v426 = vsel %vm54, %v325, 0
  %v429 = vsel %vm54, %v326, 0
  %v432 = vsel %vm54, %v327, 0
  %v435 = vsel %vm54, %v328, 0
  %437 = vmatpush.msra.mxu0 0.0
  %438 = vmatpush.msra.mxu0 0.0
  %439 = vmatpush.msra.mxu0 0.0
  %440 = vmatpush.msra.mxu0 0.0
  %441 = vmatpush.msra.mxu0 0.0
  %442 = vmatpush.msra.mxu0 0.0
  %443 = vmatpush.msra.mxu0 0.0
  %444 = vmatpush.msra.mxu0 0.0
  %445 = vmatpush.msra.mxu0 0.0
  %446 = vmatpush.msra.mxu0 0.0
  %447 = vmatpush.msra.mxu0 0.0
  %448 = vmatpush.msra.mxu0 0.0
  %449 = vmatpush.msra.mxu0 %v165
  %450 = vmatpush.msra.mxu0 %v52
  %451 = vmatpush.msra.mxu0 %v51
  %452 = vmatpush.msra.mxu0 %v50
  %453 = vmatmul.f32.gmra.mxu0 %v330
  %v454 = vpop.f32.mrf.mxu0
  %v455 = vadd.f32 0.0, %v454
  %456 = vmatmul.f32.gmra.mxu0 %v333
  %v457 = vpop.f32.mrf.mxu0
  %v458 = vadd.f32 0.0, %v457
  %459 = vmatmul.f32.gmra.mxu0 %v336
  %v460 = vpop.f32.mrf.mxu0
  %v461 = vadd.f32 0.0, %v460
  %462 = vmatmul.f32.gmra.mxu0 %v339
  %v463 = vpop.f32.mrf.mxu0
  %v464 = vadd.f32 0.0, %v463
  %465 = vmatmul.f32.gmra.mxu0 %v342
  %v466 = vpop.f32.mrf.mxu0
  %v467 = vadd.f32 0.0, %v466
  %468 = vmatmul.f32.gmra.mxu0 %v345
  %v469 = vpop.f32.mrf.mxu0
  %v470 = vadd.f32 0.0, %v469
  %471 = vmatmul.f32.gmra.mxu0 %v348
  %v472 = vpop.f32.mrf.mxu0
  %v473 = vadd.f32 0.0, %v472
  %474 = vmatmul.f32.gmra.mxu0 %v351
  %v475 = vpop.f32.mrf.mxu0
  %v476 = vadd.f32 0.0, %v475
  %477 = vmatmul.f32.gmra.mxu0 %v354
  %v478 = vpop.f32.mrf.mxu0
  %v479 = vadd.f32 0.0, %v478
  %480 = vmatmul.f32.gmra.mxu0 %v357
  %v481 = vpop.f32.mrf.mxu0
  %v482 = vadd.f32 0.0, %v481
  %483 = vmatmul.f32.gmra.mxu0 %v360
  %v484 = vpop.f32.mrf.mxu0
  %v485 = vadd.f32 0.0, %v484
  %486 = vmatmul.f32.gmra.mxu0 %v363
  %v487 = vpop.f32.mrf.mxu0
  %v488 = vadd.f32 0.0, %v487
  %489 = vmatmul.f32.gmra.mxu0 %v366
  %v490 = vpop.f32.mrf.mxu0
  %v491 = vadd.f32 0.0, %v490
  %492 = vmatmul.f32.gmra.mxu0 %v369
  %v493 = vpop.f32.mrf.mxu0
  %v494 = vadd.f32 0.0, %v493
  %495 = vmatmul.f32.gmra.mxu0 %v372
  %v496 = vpop.f32.mrf.mxu0
  %v497 = vadd.f32 0.0, %v496
  %498 = vmatmul.f32.gmra.mxu0 %v375
  %v499 = vpop.f32.mrf.mxu0
  %v500 = vadd.f32 0.0, %v499
  %501 = vmatmul.f32.gmra.mxu0 %v378
  %v502 = vpop.f32.mrf.mxu0
  %v503 = vadd.f32 0.0, %v502
  %504 = vmatmul.f32.gmra.mxu0 %v381
  %v505 = vpop.f32.mrf.mxu0
  %v506 = vadd.f32 0.0, %v505
  %507 = vmatmul.f32.gmra.mxu0 %v384
  %v508 = vpop.f32.mrf.mxu0
  %v509 = vadd.f32 0.0, %v508
  %510 = vmatmul.f32.gmra.mxu0 %v387
  %v511 = vpop.f32.mrf.mxu0
  %v512 = vadd.f32 0.0, %v511
  %513 = vmatmul.f32.gmra.mxu0 %v390
  %v514 = vpop.f32.mrf.mxu0
  %v515 = vadd.f32 0.0, %v514
  %516 = vmatmul.f32.gmra.mxu0 %v393
  %v517 = vpop.f32.mrf.mxu0
  %v518 = vadd.f32 0.0, %v517
  %519 = vmatmul.f32.gmra.mxu0 %v396
  %v520 = vpop.f32.mrf.mxu0
  %v521 = vadd.f32 0.0, %v520
  %522 = vmatmul.f32.gmra.mxu0 %v399
  %v523 = vpop.f32.mrf.mxu0
  %v524 = vadd.f32 0.0, %v523
  %525 = vmatmul.f32.gmra.mxu0 %v402
  %v526 = vpop.f32.mrf.mxu0
  %v527 = vadd.f32 0.0, %v526
  %528 = vmatmul.f32.gmra.mxu0 %v405
  %v529 = vpop.f32.mrf.mxu0
  %v530 = vadd.f32 0.0, %v529
  %531 = vmatmul.f32.gmra.mxu0 %v408
  %v532 = vpop.f32.mrf.mxu0
  %v533 = vadd.f32 0.0, %v532
  %534 = vmatmul.f32.gmra.mxu0 %v411
  %v535 = vpop.f32.mrf.mxu0
  %v536 = vadd.f32 0.0, %v535
  %537 = vmatmul.f32.gmra.mxu0 %v414
  %v538 = vpop.f32.mrf.mxu0
  %v539 = vadd.f32 0.0, %v538
  %540 = vmatmul.f32.gmra.mxu0 %v417
  %v541 = vpop.f32.mrf.mxu0
  %v542 = vadd.f32 0.0, %v541
  %543 = vmatmul.f32.gmra.mxu0 %v420
  %v544 = vpop.f32.mrf.mxu0
  %v545 = vadd.f32 0.0, %v544
  %546 = vmatmul.f32.gmra.mxu0 %v423
  %v547 = vpop.f32.mrf.mxu0
  %v548 = vadd.f32 0.0, %v547
  %549 = vmatmul.f32.gmra.mxu0 %v426
  %v550 = vpop.f32.mrf.mxu0
  %v551 = vadd.f32 0.0, %v550
  %552 = vmatmul.f32.gmra.mxu0 %v429
  %v553 = vpop.f32.mrf.mxu0
  %v554 = vadd.f32 0.0, %v553
  %555 = vmatmul.f32.gmra.mxu0 %v432
  %v556 = vpop.f32.mrf.mxu0
  %v557 = vadd.f32 0.0, %v556
  %558 = vmatmul.f32.gmra.mxu0 %v435
  %v559 = vpop.f32.mrf.mxu0
  %v560 = vadd.f32 0.0, %v559
  %561 = vdwg.mxu0
  %v562 = vmax.f32 %v185, %v455
  %v563 = vmax.f32 %v188, %v458
  %v564 = vmax.f32 %v191, %v461
  %v565 = vmax.f32 %v194, %v464
  %v566 = vmax.f32 %v197, %v467
  %v567 = vmax.f32 %v200, %v470
  %v568 = vmax.f32 %v203, %v473
  %v569 = vmax.f32 %v206, %v476
  %v570 = vmax.f32 %v209, %v479
  %v571 = vmax.f32 %v212, %v482
  %v572 = vmax.f32 %v215, %v485
  %v573 = vmax.f32 %v218, %v488
  %v574 = vmax.f32 %v221, %v491
  %v575 = vmax.f32 %v224, %v494
  %v576 = vmax.f32 %v227, %v497
  %v577 = vmax.f32 %v230, %v500
  %v578 = vmax.f32 %v233, %v503
  %v579 = vmax.f32 %v236, %v506
  %v580 = vmax.f32 %v239, %v509
  %v581 = vmax.f32 %v242, %v512
  %v582 = vmax.f32 %v245, %v515
  %v583 = vmax.f32 %v248, %v518
  %v584 = vmax.f32 %v251, %v521
  %v585 = vmax.f32 %v254, %v524
  %v586 = vmax.f32 %v257, %v527
  %v587 = vmax.f32 %v260, %v530
  %v588 = vmax.f32 %v263, %v533
  %v589 = vmax.f32 %v266, %v536
  %v590 = vmax.f32 %v269, %v539
  %v591 = vmax.f32 %v272, %v542
  %v592 = vmax.f32 %v275, %v545
  %v593 = vmax.f32 %v278, %v548
  %v594 = vmax.f32 %v281, %v551
  %v595 = vmax.f32 %v284, %v554
  %v596 = vmax.f32 %v287, %v557
  %v597 = vmax.f32 %v290, %v560
  %s598 = scalar_lea.vmem %s0, 576
  %v599 = vld [vmem:[%s598] sm:$0xff]
  %v600 = vld [vmem:[%s598 + $0x8] sm:$0xff]
  %v601 = vld [vmem:[%s598 + $0x10] sm:$0xff]
  %v602 = vld [vmem:[%s598 + $0x18] sm:$0xff]
  %v603 = vld [vmem:[%s598 + $0x20] sm:$0xff]
  %v604 = vld [vmem:[%s598 + $0x28] sm:$0xff]
  %v605 = vld [vmem:[%s598 + $0x30] sm:$0xff]
  %v606 = vld [vmem:[%s598 + $0x38] sm:$0xff]
  %v607 = vld [vmem:[%s598 + $0x40] sm:$0xff]
  %v608 = vld [vmem:[%s598 + $0x48] sm:$0xff]
  %v609 = vld [vmem:[%s598 + $0x50] sm:$0xff]
  %v610 = vld [vmem:[%s598 + $0x58] sm:$0xff]
  %v611 = vld [vmem:[%s598 + $0x60] sm:$0xff]
  %v612 = vld [vmem:[%s598 + $0x68] sm:$0xff]
  %v613 = vld [vmem:[%s598 + $0x70] sm:$0xff]
  %v614 = vld [vmem:[%s598 + $0x78] sm:$0xff]
  %v615 = vld [vmem:[%s598 + $0x80] sm:$0xff]
  %v616 = vld [vmem:[%s598 + $0x88] sm:$0xff]
  %v617 = vld [vmem:[%s598 + $0x90] sm:$0xff]
  %v618 = vld [vmem:[%s598 + $0x98] sm:$0xff]
  %v619 = vld [vmem:[%s598 + $0xa0] sm:$0xff]
  %v620 = vld [vmem:[%s598 + $0xa8] sm:$0xff]
  %v621 = vld [vmem:[%s598 + $0xb0] sm:$0xff]
  %v622 = vld [vmem:[%s598 + $0xb8] sm:$0xff]
  %v623 = vld [vmem:[%s598 + $0xc0] sm:$0xff]
  %v624 = vld [vmem:[%s598 + $0xc8] sm:$0xff]
  %v625 = vld [vmem:[%s598 + $0xd0] sm:$0xff]
  %v626 = vld [vmem:[%s598 + $0xd8] sm:$0xff]
  %v627 = vld [vmem:[%s598 + $0xe0] sm:$0xff]
  %v628 = vld [vmem:[%s598 + $0xe8] sm:$0xff]
  %v629 = vld [vmem:[%s598 + $0xf0] sm:$0xff]
  %v630 = vld [vmem:[%s598 + $0xf8] sm:$0xff]
  %v631 = vld [vmem:[%s598 + $0x100] sm:$0xff]
  %v632 = vld [vmem:[%s598 + $0x108] sm:$0xff]
  %v633 = vld [vmem:[%s598 + $0x110] sm:$0xff]
  %v634 = vld [vmem:[%s598 + $0x118] sm:$0xff]
  %v636 = vsel %vm54, %v599, 0
  %v639 = vsel %vm54, %v600, 0
  %v642 = vsel %vm54, %v601, 0
  %v645 = vsel %vm54, %v602, 0
  %v648 = vsel %vm54, %v603, 0
  %v651 = vsel %vm54, %v604, 0
  %v654 = vsel %vm54, %v605, 0
  %v657 = vsel %vm54, %v606, 0
  %v660 = vsel %vm54, %v607, 0
  %v663 = vsel %vm54, %v608, 0
  %v666 = vsel %vm54, %v609, 0
  %v669 = vsel %vm54, %v610, 0
  %v672 = vsel %vm54, %v611, 0
  %v675 = vsel %vm54, %v612, 0
  %v678 = vsel %vm54, %v613, 0
  %v681 = vsel %vm54, %v614, 0
  %v684 = vsel %vm54, %v615, 0
  %v687 = vsel %vm54, %v616, 0
  %v690 = vsel %vm54, %v617, 0
  %v693 = vsel %vm54, %v618, 0
  %v696 = vsel %vm54, %v619, 0
  %v699 = vsel %vm54, %v620, 0
  %v702 = vsel %vm54, %v621, 0
  %v705 = vsel %vm54, %v622, 0
  %v708 = vsel %vm54, %v623, 0
  %v711 = vsel %vm54, %v624, 0
  %v714 = vsel %vm54, %v625, 0
  %v717 = vsel %vm54, %v626, 0
  %v720 = vsel %vm54, %v627, 0
  %v723 = vsel %vm54, %v628, 0
  %v726 = vsel %vm54, %v629, 0
  %v729 = vsel %vm54, %v630, 0
  %v732 = vsel %vm54, %v631, 0
  %v735 = vsel %vm54, %v632, 0
  %v738 = vsel %vm54, %v633, 0
  %v741 = vsel %vm54, %v634, 0
  %743 = vmatpush.msra.mxu0 0.0
  %744 = vmatpush.msra.mxu0 0.0
  %745 = vmatpush.msra.mxu0 0.0
  %746 = vmatpush.msra.mxu0 0.0
  %747 = vmatpush.msra.mxu0 0.0
  %748 = vmatpush.msra.mxu0 0.0
  %749 = vmatpush.msra.mxu0 0.0
  %750 = vmatpush.msra.mxu0 0.0
  %751 = vmatpush.msra.mxu0 0.0
  %752 = vmatpush.msra.mxu0 0.0
  %753 = vmatpush.msra.mxu0 0.0
  %754 = vmatpush.msra.mxu0 0.0
  %755 = vmatpush.msra.mxu0 %v165
  %756 = vmatpush.msra.mxu0 %v52
  %757 = vmatpush.msra.mxu0 %v51
  %758 = vmatpush.msra.mxu0 %v50
  %759 = vmatmul.f32.gmra.mxu0 %v636
  %v760 = vpop.f32.mrf.mxu0
  %v761 = vadd.f32 0.0, %v760
  %762 = vmatmul.f32.gmra.mxu0 %v639
  %v763 = vpop.f32.mrf.mxu0
  %v764 = vadd.f32 0.0, %v763
  %765 = vmatmul.f32.gmra.mxu0 %v642
  %v766 = vpop.f32.mrf.mxu0
  %v767 = vadd.f32 0.0, %v766
  %768 = vmatmul.f32.gmra.mxu0 %v645
  %v769 = vpop.f32.mrf.mxu0
  %v770 = vadd.f32 0.0, %v769
  %771 = vmatmul.f32.gmra.mxu0 %v648
  %v772 = vpop.f32.mrf.mxu0
  %v773 = vadd.f32 0.0, %v772
  %774 = vmatmul.f32.gmra.mxu0 %v651
  %v775 = vpop.f32.mrf.mxu0
  %v776 = vadd.f32 0.0, %v775
  %777 = vmatmul.f32.gmra.mxu0 %v654
  %v778 = vpop.f32.mrf.mxu0
  %v779 = vadd.f32 0.0, %v778
  %780 = vmatmul.f32.gmra.mxu0 %v657
  %v781 = vpop.f32.mrf.mxu0
  %v782 = vadd.f32 0.0, %v781
  %783 = vmatmul.f32.gmra.mxu0 %v660
  %v784 = vpop.f32.mrf.mxu0
  %v785 = vadd.f32 0.0, %v784
  %786 = vmatmul.f32.gmra.mxu0 %v663
  %v787 = vpop.f32.mrf.mxu0
  %v788 = vadd.f32 0.0, %v787
  %789 = vmatmul.f32.gmra.mxu0 %v666
  %v790 = vpop.f32.mrf.mxu0
  %v791 = vadd.f32 0.0, %v790
  %792 = vmatmul.f32.gmra.mxu0 %v669
  %v793 = vpop.f32.mrf.mxu0
  %v794 = vadd.f32 0.0, %v793
  %795 = vmatmul.f32.gmra.mxu0 %v672
  %v796 = vpop.f32.mrf.mxu0
  %v797 = vadd.f32 0.0, %v796
  %798 = vmatmul.f32.gmra.mxu0 %v675
  %v799 = vpop.f32.mrf.mxu0
  %v800 = vadd.f32 0.0, %v799
  %801 = vmatmul.f32.gmra.mxu0 %v678
  %v802 = vpop.f32.mrf.mxu0
  %v803 = vadd.f32 0.0, %v802
  %804 = vmatmul.f32.gmra.mxu0 %v681
  %v805 = vpop.f32.mrf.mxu0
  %v806 = vadd.f32 0.0, %v805
  %807 = vmatmul.f32.gmra.mxu0 %v684
  %v808 = vpop.f32.mrf.mxu0
  %v809 = vadd.f32 0.0, %v808
  %810 = vmatmul.f32.gmra.mxu0 %v687
  %v811 = vpop.f32.mrf.mxu0
  %v812 = vadd.f32 0.0, %v811
  %813 = vmatmul.f32.gmra.mxu0 %v690
  %v814 = vpop.f32.mrf.mxu0
  %v815 = vadd.f32 0.0, %v814
  %816 = vmatmul.f32.gmra.mxu0 %v693
  %v817 = vpop.f32.mrf.mxu0
  %v818 = vadd.f32 0.0, %v817
  %819 = vmatmul.f32.gmra.mxu0 %v696
  %v820 = vpop.f32.mrf.mxu0
  %v821 = vadd.f32 0.0, %v820
  %822 = vmatmul.f32.gmra.mxu0 %v699
  %v823 = vpop.f32.mrf.mxu0
  %v824 = vadd.f32 0.0, %v823
  %825 = vmatmul.f32.gmra.mxu0 %v702
  %v826 = vpop.f32.mrf.mxu0
  %v827 = vadd.f32 0.0, %v826
  %828 = vmatmul.f32.gmra.mxu0 %v705
  %v829 = vpop.f32.mrf.mxu0
  %v830 = vadd.f32 0.0, %v829
  %831 = vmatmul.f32.gmra.mxu0 %v708
  %v832 = vpop.f32.mrf.mxu0
  %v833 = vadd.f32 0.0, %v832
  %834 = vmatmul.f32.gmra.mxu0 %v711
  %v835 = vpop.f32.mrf.mxu0
  %v836 = vadd.f32 0.0, %v835
  %837 = vmatmul.f32.gmra.mxu0 %v714
  %v838 = vpop.f32.mrf.mxu0
  %v839 = vadd.f32 0.0, %v838
  %840 = vmatmul.f32.gmra.mxu0 %v717
  %v841 = vpop.f32.mrf.mxu0
  %v842 = vadd.f32 0.0, %v841
  %843 = vmatmul.f32.gmra.mxu0 %v720
  %v844 = vpop.f32.mrf.mxu0
  %v845 = vadd.f32 0.0, %v844
  %846 = vmatmul.f32.gmra.mxu0 %v723
  %v847 = vpop.f32.mrf.mxu0
  %v848 = vadd.f32 0.0, %v847
  %849 = vmatmul.f32.gmra.mxu0 %v726
  %v850 = vpop.f32.mrf.mxu0
  %v851 = vadd.f32 0.0, %v850
  %852 = vmatmul.f32.gmra.mxu0 %v729
  %v853 = vpop.f32.mrf.mxu0
  %v854 = vadd.f32 0.0, %v853
  %855 = vmatmul.f32.gmra.mxu0 %v732
  %v856 = vpop.f32.mrf.mxu0
  %v857 = vadd.f32 0.0, %v856
  %858 = vmatmul.f32.gmra.mxu0 %v735
  %v859 = vpop.f32.mrf.mxu0
  %v860 = vadd.f32 0.0, %v859
  %861 = vmatmul.f32.gmra.mxu0 %v738
  %v862 = vpop.f32.mrf.mxu0
  %v863 = vadd.f32 0.0, %v862
  %864 = vmatmul.f32.gmra.mxu0 %v741
  %v865 = vpop.f32.mrf.mxu0
  %v866 = vadd.f32 0.0, %v865
  %867 = vdwg.mxu0
  %v868 = vmax.f32 %v562, %v761
  %v869 = vmax.f32 %v563, %v764
  %v870 = vmax.f32 %v564, %v767
  %v871 = vmax.f32 %v565, %v770
  %v872 = vmax.f32 %v566, %v773
  %v873 = vmax.f32 %v567, %v776
  %v874 = vmax.f32 %v568, %v779
  %v875 = vmax.f32 %v569, %v782
  %v876 = vmax.f32 %v570, %v785
  %v877 = vmax.f32 %v571, %v788
  %v878 = vmax.f32 %v572, %v791
  %v879 = vmax.f32 %v573, %v794
  %v880 = vmax.f32 %v574, %v797
  %v881 = vmax.f32 %v575, %v800
  %v882 = vmax.f32 %v576, %v803
  %v883 = vmax.f32 %v577, %v806
  %v884 = vmax.f32 %v578, %v809
  %v885 = vmax.f32 %v579, %v812
  %v886 = vmax.f32 %v580, %v815
  %v887 = vmax.f32 %v581, %v818
  %v888 = vmax.f32 %v582, %v821
  %v889 = vmax.f32 %v583, %v824
  %v890 = vmax.f32 %v584, %v827
  %v891 = vmax.f32 %v585, %v830
  %v892 = vmax.f32 %v586, %v833
  %v893 = vmax.f32 %v587, %v836
  %v894 = vmax.f32 %v588, %v839
  %v895 = vmax.f32 %v589, %v842
  %v896 = vmax.f32 %v590, %v845
  %v897 = vmax.f32 %v591, %v848
  %v898 = vmax.f32 %v592, %v851
  %v899 = vmax.f32 %v593, %v854
  %v900 = vmax.f32 %v594, %v857
  %v901 = vmax.f32 %v595, %v860
  %v902 = vmax.f32 %v596, %v863
  %v903 = vmax.f32 %v597, %v866
  %s904 = scalar_lea.vmem %s0, 864
  %v905 = vld [vmem:[%s904] sm:$0xff]
  %v906 = vld [vmem:[%s904 + $0x8] sm:$0xff]
  %v907 = vld [vmem:[%s904 + $0x10] sm:$0xff]
  %v908 = vld [vmem:[%s904 + $0x18] sm:$0xff]
  %v909 = vld [vmem:[%s904 + $0x20] sm:$0xff]
  %v910 = vld [vmem:[%s904 + $0x28] sm:$0xff]
  %v911 = vld [vmem:[%s904 + $0x30] sm:$0xff]
  %v912 = vld [vmem:[%s904 + $0x38] sm:$0xff]
  %v913 = vld [vmem:[%s904 + $0x40] sm:$0xff]
  %v914 = vld [vmem:[%s904 + $0x48] sm:$0xff]
  %v915 = vld [vmem:[%s904 + $0x50] sm:$0xff]
  %v916 = vld [vmem:[%s904 + $0x58] sm:$0xff]
  %v917 = vld [vmem:[%s904 + $0x60] sm:$0xff]
  %v918 = vld [vmem:[%s904 + $0x68] sm:$0xff]
  %v919 = vld [vmem:[%s904 + $0x70] sm:$0xff]
  %v920 = vld [vmem:[%s904 + $0x78] sm:$0xff]
  %v921 = vld [vmem:[%s904 + $0x80] sm:$0xff]
  %v922 = vld [vmem:[%s904 + $0x88] sm:$0xff]
  %v923 = vld [vmem:[%s904 + $0x90] sm:$0xff]
  %v924 = vld [vmem:[%s904 + $0x98] sm:$0xff]
  %v925 = vld [vmem:[%s904 + $0xa0] sm:$0xff]
  %v926 = vld [vmem:[%s904 + $0xa8] sm:$0xff]
  %v927 = vld [vmem:[%s904 + $0xb0] sm:$0xff]
  %v928 = vld [vmem:[%s904 + $0xb8] sm:$0xff]
  %v929 = vld [vmem:[%s904 + $0xc0] sm:$0xff]
  %v930 = vld [vmem:[%s904 + $0xc8] sm:$0xff]
  %v931 = vld [vmem:[%s904 + $0xd0] sm:$0xff]
  %v932 = vld [vmem:[%s904 + $0xd8] sm:$0xff]
  %v933 = vld [vmem:[%s904 + $0xe0] sm:$0xff]
  %v934 = vld [vmem:[%s904 + $0xe8] sm:$0xff]
  %v935 = vld [vmem:[%s904 + $0xf0] sm:$0xff]
  %v936 = vld [vmem:[%s904 + $0xf8] sm:$0xff]
  %v937 = vld [vmem:[%s904 + $0x100] sm:$0xff]
  %v938 = vld [vmem:[%s904 + $0x108] sm:$0xff]
  %v939 = vld [vmem:[%s904 + $0x110] sm:$0xff]
  %v940 = vld [vmem:[%s904 + $0x118] sm:$0xff]
  %v942 = vsel %vm54, %v905, 0
  %v945 = vsel %vm54, %v906, 0
  %v948 = vsel %vm54, %v907, 0
  %v951 = vsel %vm54, %v908, 0
  %v954 = vsel %vm54, %v909, 0
  %v957 = vsel %vm54, %v910, 0
  %v960 = vsel %vm54, %v911, 0
  %v963 = vsel %vm54, %v912, 0
  %v966 = vsel %vm54, %v913, 0
  %v969 = vsel %vm54, %v914, 0
  %v972 = vsel %vm54, %v915, 0
  %v975 = vsel %vm54, %v916, 0
  %v978 = vsel %vm54, %v917, 0
  %v981 = vsel %vm54, %v918, 0
  %v984 = vsel %vm54, %v919, 0
  %v987 = vsel %vm54, %v920, 0
  %v990 = vsel %vm54, %v921, 0
  %v993 = vsel %vm54, %v922, 0
  %v996 = vsel %vm54, %v923, 0
  %v999 = vsel %vm54, %v924, 0
  %v1002 = vsel %vm54, %v925, 0
  %v1005 = vsel %vm54, %v926, 0
  %v1008 = vsel %vm54, %v927, 0
  %v1011 = vsel %vm54, %v928, 0
  %v1014 = vsel %vm54, %v929, 0
  %v1017 = vsel %vm54, %v930, 0
  %v1020 = vsel %vm54, %v931, 0
  %v1023 = vsel %vm54, %v932, 0
  %v1026 = vsel %vm54, %v933, 0
  %v1029 = vsel %vm54, %v934, 0
  %v1032 = vsel %vm54, %v935, 0
  %v1035 = vsel %vm54, %v936, 0
  %v1038 = vsel %vm54, %v937, 0
  %v1041 = vsel %vm54, %v938, 0
  %v1044 = vsel %vm54, %v939, 0
  %v1047 = vsel %vm54, %v940, 0
  %1049 = vmatpush.msra.mxu0 0.0
  %1050 = vmatpush.msra.mxu0 0.0
  %1051 = vmatpush.msra.mxu0 0.0
  %1052 = vmatpush.msra.mxu0 0.0
  %1053 = vmatpush.msra.mxu0 0.0
  %1054 = vmatpush.msra.mxu0 0.0
  %1055 = vmatpush.msra.mxu0 0.0
  %1056 = vmatpush.msra.mxu0 0.0
  %1057 = vmatpush.msra.mxu0 0.0
  %1058 = vmatpush.msra.mxu0 0.0
  %1059 = vmatpush.msra.mxu0 0.0
  %1060 = vmatpush.msra.mxu0 0.0
  %1061 = vmatpush.msra.mxu0 %v165
  %1062 = vmatpush.msra.mxu0 %v52
  %1063 = vmatpush.msra.mxu0 %v51
  %1064 = vmatpush.msra.mxu0 %v50
  %1065 = vmatmul.f32.gmra.mxu0 %v942
  %v1066 = vpop.f32.mrf.mxu0
  %v1067 = vadd.f32 0.0, %v1066
  %1068 = vmatmul.f32.gmra.mxu0 %v945
  %v1069 = vpop.f32.mrf.mxu0
  %v1070 = vadd.f32 0.0, %v1069
  %1071 = vmatmul.f32.gmra.mxu0 %v948
  %v1072 = vpop.f32.mrf.mxu0
  %v1073 = vadd.f32 0.0, %v1072
  %1074 = vmatmul.f32.gmra.mxu0 %v951
  %v1075 = vpop.f32.mrf.mxu0
  %v1076 = vadd.f32 0.0, %v1075
  %1077 = vmatmul.f32.gmra.mxu0 %v954
  %v1078 = vpop.f32.mrf.mxu0
  %v1079 = vadd.f32 0.0, %v1078
  %1080 = vmatmul.f32.gmra.mxu0 %v957
  %v1081 = vpop.f32.mrf.mxu0
  %v1082 = vadd.f32 0.0, %v1081
  %1083 = vmatmul.f32.gmra.mxu0 %v960
  %v1084 = vpop.f32.mrf.mxu0
  %v1085 = vadd.f32 0.0, %v1084
  %1086 = vmatmul.f32.gmra.mxu0 %v963
  %v1087 = vpop.f32.mrf.mxu0
  %v1088 = vadd.f32 0.0, %v1087
  %1089 = vmatmul.f32.gmra.mxu0 %v966
  %v1090 = vpop.f32.mrf.mxu0
  %v1091 = vadd.f32 0.0, %v1090
  %1092 = vmatmul.f32.gmra.mxu0 %v969
  %v1093 = vpop.f32.mrf.mxu0
  %v1094 = vadd.f32 0.0, %v1093
  %1095 = vmatmul.f32.gmra.mxu0 %v972
  %v1096 = vpop.f32.mrf.mxu0
  %v1097 = vadd.f32 0.0, %v1096
  %1098 = vmatmul.f32.gmra.mxu0 %v975
  %v1099 = vpop.f32.mrf.mxu0
  %v1100 = vadd.f32 0.0, %v1099
  %1101 = vmatmul.f32.gmra.mxu0 %v978
  %v1102 = vpop.f32.mrf.mxu0
  %v1103 = vadd.f32 0.0, %v1102
  %1104 = vmatmul.f32.gmra.mxu0 %v981
  %v1105 = vpop.f32.mrf.mxu0
  %v1106 = vadd.f32 0.0, %v1105
  %1107 = vmatmul.f32.gmra.mxu0 %v984
  %v1108 = vpop.f32.mrf.mxu0
  %v1109 = vadd.f32 0.0, %v1108
  %1110 = vmatmul.f32.gmra.mxu0 %v987
  %v1111 = vpop.f32.mrf.mxu0
  %v1112 = vadd.f32 0.0, %v1111
  %1113 = vmatmul.f32.gmra.mxu0 %v990
  %v1114 = vpop.f32.mrf.mxu0
  %v1115 = vadd.f32 0.0, %v1114
  %1116 = vmatmul.f32.gmra.mxu0 %v993
  %v1117 = vpop.f32.mrf.mxu0
  %v1118 = vadd.f32 0.0, %v1117
  %1119 = vmatmul.f32.gmra.mxu0 %v996
  %v1120 = vpop.f32.mrf.mxu0
  %v1121 = vadd.f32 0.0, %v1120
  %1122 = vmatmul.f32.gmra.mxu0 %v999
  %v1123 = vpop.f32.mrf.mxu0
  %v1124 = vadd.f32 0.0, %v1123
  %1125 = vmatmul.f32.gmra.mxu0 %v1002
  %v1126 = vpop.f32.mrf.mxu0
  %v1127 = vadd.f32 0.0, %v1126
  %1128 = vmatmul.f32.gmra.mxu0 %v1005
  %v1129 = vpop.f32.mrf.mxu0
  %v1130 = vadd.f32 0.0, %v1129
  %1131 = vmatmul.f32.gmra.mxu0 %v1008
  %v1132 = vpop.f32.mrf.mxu0
  %v1133 = vadd.f32 0.0, %v1132
  %1134 = vmatmul.f32.gmra.mxu0 %v1011
  %v1135 = vpop.f32.mrf.mxu0
  %v1136 = vadd.f32 0.0, %v1135
  %1137 = vmatmul.f32.gmra.mxu0 %v1014
  %v1138 = vpop.f32.mrf.mxu0
  %v1139 = vadd.f32 0.0, %v1138
  %1140 = vmatmul.f32.gmra.mxu0 %v1017
  %v1141 = vpop.f32.mrf.mxu0
  %v1142 = vadd.f32 0.0, %v1141
  %1143 = vmatmul.f32.gmra.mxu0 %v1020
  %v1144 = vpop.f32.mrf.mxu0
  %v1145 = vadd.f32 0.0, %v1144
  %1146 = vmatmul.f32.gmra.mxu0 %v1023
  %v1147 = vpop.f32.mrf.mxu0
  %v1148 = vadd.f32 0.0, %v1147
  %1149 = vmatmul.f32.gmra.mxu0 %v1026
  %v1150 = vpop.f32.mrf.mxu0
  %v1151 = vadd.f32 0.0, %v1150
  %1152 = vmatmul.f32.gmra.mxu0 %v1029
  %v1153 = vpop.f32.mrf.mxu0
  %v1154 = vadd.f32 0.0, %v1153
  %1155 = vmatmul.f32.gmra.mxu0 %v1032
  %v1156 = vpop.f32.mrf.mxu0
  %v1157 = vadd.f32 0.0, %v1156
  %1158 = vmatmul.f32.gmra.mxu0 %v1035
  %v1159 = vpop.f32.mrf.mxu0
  %v1160 = vadd.f32 0.0, %v1159
  %1161 = vmatmul.f32.gmra.mxu0 %v1038
  %v1162 = vpop.f32.mrf.mxu0
  %v1163 = vadd.f32 0.0, %v1162
  %1164 = vmatmul.f32.gmra.mxu0 %v1041
  %v1165 = vpop.f32.mrf.mxu0
  %v1166 = vadd.f32 0.0, %v1165
  %1167 = vmatmul.f32.gmra.mxu0 %v1044
  %v1168 = vpop.f32.mrf.mxu0
  %v1169 = vadd.f32 0.0, %v1168
  %1170 = vmatmul.f32.gmra.mxu0 %v1047
  %v1171 = vpop.f32.mrf.mxu0
  %v1172 = vadd.f32 0.0, %v1171
  %1173 = vdwg.mxu0
  %v1174 = vmax.f32 %v868, %v1067
  %v1175 = vmax.f32 %v869, %v1070
  %v1176 = vmax.f32 %v870, %v1073
  %v1177 = vmax.f32 %v871, %v1076
  %v1178 = vmax.f32 %v872, %v1079
  %v1179 = vmax.f32 %v873, %v1082
  %v1180 = vmax.f32 %v874, %v1085
  %v1181 = vmax.f32 %v875, %v1088
  %v1182 = vmax.f32 %v876, %v1091
  %v1183 = vmax.f32 %v877, %v1094
  %v1184 = vmax.f32 %v878, %v1097
  %v1185 = vmax.f32 %v879, %v1100
  %v1186 = vmax.f32 %v880, %v1103
  %v1187 = vmax.f32 %v881, %v1106
  %v1188 = vmax.f32 %v882, %v1109
  %v1189 = vmax.f32 %v883, %v1112
  %v1190 = vmax.f32 %v884, %v1115
  %v1191 = vmax.f32 %v885, %v1118
  %v1192 = vmax.f32 %v886, %v1121
  %v1193 = vmax.f32 %v887, %v1124
  %v1194 = vmax.f32 %v888, %v1127
  %v1195 = vmax.f32 %v889, %v1130
  %v1196 = vmax.f32 %v890, %v1133
  %v1197 = vmax.f32 %v891, %v1136
  %v1198 = vmax.f32 %v892, %v1139
  %v1199 = vmax.f32 %v893, %v1142
  %v1200 = vmax.f32 %v894, %v1145
  %v1201 = vmax.f32 %v895, %v1148
  %v1202 = vmax.f32 %v896, %v1151
  %v1203 = vmax.f32 %v897, %v1154
  %v1204 = vmax.f32 %v898, %v1157
  %v1205 = vmax.f32 %v899, %v1160
  %v1206 = vmax.f32 %v900, %v1163
  %v1207 = vmax.f32 %v901, %v1166
  %v1208 = vmax.f32 %v902, %v1169
  %v1209 = vmax.f32 %v903, %v1172
  %v1210 = vld [vmem:[%s2] sm:$0x1]
  %v1212 = vperm.slane %v1210, 0
  %v1214 = vadd.f32 %v1174, %v1212
  %v1215 = vadd.f32 %v1175, %v1212
  %v1216 = vadd.f32 %v1176, %v1212
  %v1217 = vadd.f32 %v1177, %v1212
  %v1218 = vadd.f32 %v1178, %v1212
  %v1219 = vadd.f32 %v1179, %v1212
  %v1220 = vadd.f32 %v1180, %v1212
  %v1221 = vadd.f32 %v1181, %v1212
  %v1222 = vadd.f32 %v1182, %v1212
  %v1223 = vadd.f32 %v1183, %v1212
  %v1224 = vadd.f32 %v1184, %v1212
  %v1225 = vadd.f32 %v1185, %v1212
  %v1226 = vadd.f32 %v1186, %v1212
  %v1227 = vadd.f32 %v1187, %v1212
  %v1228 = vadd.f32 %v1188, %v1212
  %v1229 = vadd.f32 %v1189, %v1212
  %v1230 = vadd.f32 %v1190, %v1212
  %v1231 = vadd.f32 %v1191, %v1212
  %v1232 = vadd.f32 %v1192, %v1212
  %v1233 = vadd.f32 %v1193, %v1212
  %v1234 = vadd.f32 %v1194, %v1212
  %v1235 = vadd.f32 %v1195, %v1212
  %v1236 = vadd.f32 %v1196, %v1212
  %v1237 = vadd.f32 %v1197, %v1212
  %v1238 = vadd.f32 %v1198, %v1212
  %v1239 = vadd.f32 %v1199, %v1212
  %v1240 = vadd.f32 %v1200, %v1212
  %v1241 = vadd.f32 %v1201, %v1212
  %v1242 = vadd.f32 %v1202, %v1212
  %v1243 = vadd.f32 %v1203, %v1212
  %v1244 = vadd.f32 %v1204, %v1212
  %v1245 = vadd.f32 %v1205, %v1212
  %v1246 = vadd.f32 %v1206, %v1212
  %v1247 = vadd.f32 %v1207, %v1212
  %v1248 = vadd.f32 %v1208, %v1212
  %v1249 = vadd.f32 %v1209, %v1212
  %v1250 = vmax.f32 %v1214, 0.0
  %v1251 = vmax.f32 %v1215, 0.0
  %v1252 = vmax.f32 %v1216, 0.0
  %v1253 = vmax.f32 %v1217, 0.0
  %v1254 = vmax.f32 %v1218, 0.0
  %v1255 = vmax.f32 %v1219, 0.0
  %v1256 = vmax.f32 %v1220, 0.0
  %v1257 = vmax.f32 %v1221, 0.0
  %v1258 = vmax.f32 %v1222, 0.0
  %v1259 = vmax.f32 %v1223, 0.0
  %v1260 = vmax.f32 %v1224, 0.0
  %v1261 = vmax.f32 %v1225, 0.0
  %v1262 = vmax.f32 %v1226, 0.0
  %v1263 = vmax.f32 %v1227, 0.0
  %v1264 = vmax.f32 %v1228, 0.0
  %v1265 = vmax.f32 %v1229, 0.0
  %v1266 = vmax.f32 %v1230, 0.0
  %v1267 = vmax.f32 %v1231, 0.0
  %v1268 = vmax.f32 %v1232, 0.0
  %v1269 = vmax.f32 %v1233, 0.0
  %v1270 = vmax.f32 %v1234, 0.0
  %v1271 = vmax.f32 %v1235, 0.0
  %v1272 = vmax.f32 %v1236, 0.0
  %v1273 = vmax.f32 %v1237, 0.0
  %v1274 = vmax.f32 %v1238, 0.0
  %v1275 = vmax.f32 %v1239, 0.0
  %v1276 = vmax.f32 %v1240, 0.0
  %v1277 = vmax.f32 %v1241, 0.0
  %v1278 = vmax.f32 %v1242, 0.0
  %v1279 = vmax.f32 %v1243, 0.0
  %v1280 = vmax.f32 %v1244, 0.0
  %v1281 = vmax.f32 %v1245, 0.0
  %v1282 = vmax.f32 %v1246, 0.0
  %v1283 = vmax.f32 %v1247, 0.0
  %v1284 = vmax.f32 %v1248, 0.0
  %v1285 = vmax.f32 %v1249, 0.0
  %vm1286 = vcmask 48128
  %1287 = vst.msk [vmem:[%s3] sm:$0xff] %vm1286, %v1250
  %1288 = vst.msk [vmem:[%s3 + $0x8] sm:$0xff] %vm1286, %v1251
  %1289 = vst.msk [vmem:[%s3 + $0x10] sm:$0xff] %vm1286, %v1252
  %1290 = vst.msk [vmem:[%s3 + $0x18] sm:$0xff] %vm1286, %v1253
  %1291 = vst.msk [vmem:[%s3 + $0x20] sm:$0xff] %vm1286, %v1254
  %1292 = vst.msk [vmem:[%s3 + $0x28] sm:$0xff] %vm1286, %v1255
  %1293 = vst.msk [vmem:[%s3 + $0x30] sm:$0xff] %vm1286, %v1256
  %1294 = vst.msk [vmem:[%s3 + $0x38] sm:$0xff] %vm1286, %v1257
  %1295 = vst.msk [vmem:[%s3 + $0x40] sm:$0xff] %vm1286, %v1258
  %1296 = vst.msk [vmem:[%s3 + $0x48] sm:$0xff] %vm1286, %v1259
  %1297 = vst.msk [vmem:[%s3 + $0x50] sm:$0xff] %vm1286, %v1260
  %1298 = vst.msk [vmem:[%s3 + $0x58] sm:$0xff] %vm1286, %v1261
  %1299 = vst.msk [vmem:[%s3 + $0x60] sm:$0xff] %vm1286, %v1262
  %1300 = vst.msk [vmem:[%s3 + $0x68] sm:$0xff] %vm1286, %v1263
  %1301 = vst.msk [vmem:[%s3 + $0x70] sm:$0xff] %vm1286, %v1264
  %1302 = vst.msk [vmem:[%s3 + $0x78] sm:$0xff] %vm1286, %v1265
  %1303 = vst.msk [vmem:[%s3 + $0x80] sm:$0xff] %vm1286, %v1266
  %1304 = vst.msk [vmem:[%s3 + $0x88] sm:$0xff] %vm1286, %v1267
  %1305 = vst.msk [vmem:[%s3 + $0x90] sm:$0xff] %vm1286, %v1268
  %1306 = vst.msk [vmem:[%s3 + $0x98] sm:$0xff] %vm1286, %v1269
  %1307 = vst.msk [vmem:[%s3 + $0xa0] sm:$0xff] %vm1286, %v1270
  %1308 = vst.msk [vmem:[%s3 + $0xa8] sm:$0xff] %vm1286, %v1271
  %1309 = vst.msk [vmem:[%s3 + $0xb0] sm:$0xff] %vm1286, %v1272
  %1310 = vst.msk [vmem:[%s3 + $0xb8] sm:$0xff] %vm1286, %v1273
  %1311 = vst.msk [vmem:[%s3 + $0xc0] sm:$0xff] %vm1286, %v1274
  %1312 = vst.msk [vmem:[%s3 + $0xc8] sm:$0xff] %vm1286, %v1275
  %1313 = vst.msk [vmem:[%s3 + $0xd0] sm:$0xff] %vm1286, %v1276
  %1314 = vst.msk [vmem:[%s3 + $0xd8] sm:$0xff] %vm1286, %v1277
  %1315 = vst.msk [vmem:[%s3 + $0xe0] sm:$0xff] %vm1286, %v1278
  %1316 = vst.msk [vmem:[%s3 + $0xe8] sm:$0xff] %vm1286, %v1279
  %1317 = vst.msk [vmem:[%s3 + $0xf0] sm:$0xff] %vm1286, %v1280
  %1318 = vst.msk [vmem:[%s3 + $0xf8] sm:$0xff] %vm1286, %v1281
  %1319 = vst.msk [vmem:[%s3 + $0x100] sm:$0xff] %vm1286, %v1282
  %1320 = vst.msk [vmem:[%s3 + $0x108] sm:$0xff] %vm1286, %v1283
  %1321 = vst.msk [vmem:[%s3 + $0x110] sm:$0xff] %vm1286, %v1284
  %1322 = vst.msk [vmem:[%s3 + $0x118] sm:$0xff] %vm1286, %v1285
  // Predicated region
  $region14: #{_lambda_.2} parent=0 // pred_check
    _
  $region15: #{_lambda_.2} parent=0 // pred_check_branch
    %1324 = sbr.rel (0) target = $region17
  $region16: #{_lambda_.2} parent=0 // pred_region
    _
  $region17: #{_lambda_.2} parent=0 // pred_fallthru
    _
  // Predicated region
  $region18: #{_lambda_.2} parent=0 // pred_check
    _
  $region19: #{_lambda_.2} parent=0 // pred_check_branch
    %1326 = sbr.rel (0) target = $region21
  $region20: #{_lambda_.2} parent=0 // pred_region
    _
  $region21: #{_lambda_.2} parent=0 // pred_fallthru
    _

// kernel: _lambda_.3
$region0: #{_lambda_.3}
  #allocation0 [shape = 'u32[]', space=smem, size = 0x4, offset = 0x4, fixed_abs, tag = 'smem constant byte address 0x4 - core index']
  #allocation1 [shape = 'u32[72,128]{1,0:T(1,128)}', space=vmem, size = 0x9000, scoped, tag = 'internal scratch']
  %s0 = inlined_call_operand.vmem [shape: f32[4,2,2400], index: 0, kind: input, shape index: {}]
  %s1 = inlined_call_operand.vmem [shape: f32[2400,256], index: 1, kind: input, shape index: {}]
  %s2 = inlined_call_operand.vmem [shape: f32[1,256], index: 2, kind: input, shape index: {}]
  %s3 = inlined_call_operand.vmem [shape: f32[256,120], index: 3, kind: input, shape index: {}]
  %s4 = inlined_call_operand.vmem [shape: f32[1,120], index: 4, kind: input, shape index: {}]
  %s5 = inlined_call_operand.vmem [shape: f32[120,84], index: 5, kind: input, shape index: {}]
  %s6 = inlined_call_operand.vmem [shape: f32[1,84], index: 6, kind: input, shape index: {}]
  %s7 = inlined_call_operand.vmem [shape: f32[84,10], index: 7, kind: input, shape index: {}]
  %s8 = inlined_call_operand.vmem [shape: f32[1,10], index: 8, kind: input, shape index: {}]
  %s9 = inlined_call_operand.hbm [shape: f32[2,10], index: 9, kind: output, shape index: {}]
  %s10 = sld [smem:[#allocation0]]
  $region46: #{_lambda_.3} parent=0
    _
  %s12 = ssub.s32 1, %s10
  %s13 = scalar_select 0, %s12, %s10
  $region1: #{_lambda_.3} parent=0
    #allocation2 [shape = 'u8[1024]{0}', space=vmem, size = 0x400, scoped, tag = 'output window, operand 0, single buffered']
    #allocation3 [shape = 's32[1]{0}', space=sflag, size = 0x4, scoped, tag = 'scoped memory for _lambda_.3']
    %14 = vsyncpa [#allocation3], 0
    // Predicated region
    $region2: #{_lambda_.3} parent=1 // pred_check
      _
    $region3: #{_lambda_.3} parent=1 // pred_check_branch
      %16 = sbr.rel (0) target = $region5
    $region4: #{_lambda_.3} parent=1 // pred_region
      _
    $region5: #{_lambda_.3} parent=1 // pred_fallthru
      _
    // Predicated region
    $region6: #{_lambda_.3} parent=1 // pred_check
      _
    $region7: #{_lambda_.3} parent=1 // pred_check_branch
      %18 = sbr.rel (0) target = $region9
    $region8: #{_lambda_.3} parent=1 // pred_region
      _
    $region9: #{_lambda_.3} parent=1 // pred_fallthru
      _
    // Predicated region
    $region10: #{_lambda_.3} parent=1 // pred_check
      _
    $region11: #{_lambda_.3} parent=1 // pred_check_branch
      %20 = sbr.rel (0) target = $region13
    $region12: #{_lambda_.3} parent=1 // pred_region
      _
    $region13: #{_lambda_.3} parent=1 // pred_fallthru
      _
    // Predicated region
    $region14: #{_lambda_.3} parent=1 // pred_check
      _
    $region15: #{_lambda_.3} parent=1 // pred_check_branch
      %22 = sbr.rel (0) target = $region17
    $region16: #{_lambda_.3} parent=1 // pred_region
      _
    $region17: #{_lambda_.3} parent=1 // pred_fallthru
      _
    // Predicated region
    $region18: #{_lambda_.3} parent=1 // pred_check
      _
    $region19: #{_lambda_.3} parent=1 // pred_check_branch
      %24 = sbr.rel (0) target = $region21
    $region20: #{_lambda_.3} parent=1 // pred_region
      _
    $region21: #{_lambda_.3} parent=1 // pred_fallthru
      _
    // Predicated region
    $region22: #{_lambda_.3} parent=1 // pred_check
      _
    $region23: #{_lambda_.3} parent=1 // pred_check_branch
      %26 = sbr.rel (0) target = $region25
    $region24: #{_lambda_.3} parent=1 // pred_region
      _
    $region25: #{_lambda_.3} parent=1 // pred_fallthru
      _
    // Predicated region
    $region26: #{_lambda_.3} parent=1 // pred_check
      _
    $region27: #{_lambda_.3} parent=1 // pred_check_branch
      %28 = sbr.rel (0) target = $region29
    $region28: #{_lambda_.3} parent=1 // pred_region
      _
    $region29: #{_lambda_.3} parent=1 // pred_fallthru
      _
    // Predicated region
    $region30: #{_lambda_.3} parent=1 // pred_check
      _
    $region31: #{_lambda_.3} parent=1 // pred_check_branch
      %30 = sbr.rel (0) target = $region33
    $region32: #{_lambda_.3} parent=1 // pred_region
      _
    $region33: #{_lambda_.3} parent=1 // pred_fallthru
      _
    // Predicated region
    $region34: #{_lambda_.3} parent=1 // pred_check
      _
    $region35: #{_lambda_.3} parent=1 // pred_check_branch
      %32 = sbr.rel (0) target = $region37
    $region36: #{_lambda_.3} parent=1 // pred_region
      _
    $region37: #{_lambda_.3} parent=1 // pred_fallthru
      _
    %v33 = vld [vmem:[%s0] sm:$0xff]
    %v34 = vld [vmem:[%s0 + $0x8] sm:$0xff]
    %v35 = vld [vmem:[%s0 + $0x10] sm:$0xff]
    %v36 = vld [vmem:[%s0 + $0x18] sm:$0xff]
    %v37 = vld [vmem:[%s0 + $0x20] sm:$0x3f]
    %v38 = vld [vmem:[%s1] sm:$0xff]
    %v39 = vld [vmem:[%s1 + $0x8] sm:$0xff]
    %v40 = vld [vmem:[%s1 + $0x10] sm:$0xff]
    %v41 = vld [vmem:[%s1 + $0x18] sm:$0xff]
    %v42 = vld [vmem:[%s1 + $0x20] sm:$0xff]
    %v43 = vld [vmem:[%s1 + $0x28] sm:$0xff]
    %v44 = vld [vmem:[%s1 + $0x30] sm:$0xff]
    %v45 = vld [vmem:[%s1 + $0x38] sm:$0xff]
    %v46 = vld [vmem:[%s1 + $0x40] sm:$0xff]
    %v47 = vld [vmem:[%s1 + $0x48] sm:$0xff]
    %v48 = vld [vmem:[%s1 + $0x50] sm:$0xff]
    %v49 = vld [vmem:[%s1 + $0x58] sm:$0xff]
    %v50 = vld [vmem:[%s1 + $0x60] sm:$0xff]
    %v51 = vld [vmem:[%s1 + $0x68] sm:$0xff]
    %v52 = vld [vmem:[%s1 + $0x70] sm:$0xff]
    %v53 = vld [vmem:[%s1 + $0x78] sm:$0xff]
    %v54 = vld [vmem:[%s1 + $0x80] sm:$0xff]
    %v55 = vld [vmem:[%s1 + $0x88] sm:$0xff]
    %v56 = vld [vmem:[%s1 + $0x90] sm:$0xff]
    %v57 = vld [vmem:[%s1 + $0x98] sm:$0xff]
    %v58 = vld [vmem:[%s1 + $0xa0] sm:$0xff]
    %v59 = vld [vmem:[%s1 + $0xa8] sm:$0xff]
    %v60 = vld [vmem:[%s1 + $0xb0] sm:$0xff]
    %v61 = vld [vmem:[%s1 + $0xb8] sm:$0xff]
    %v62 = vld [vmem:[%s1 + $0xc0] sm:$0xff]
    %v63 = vld [vmem:[%s1 + $0xc8] sm:$0xff]
    %v64 = vld [vmem:[%s1 + $0xd0] sm:$0xff]
    %v65 = vld [vmem:[%s1 + $0xd8] sm:$0xff]
    %v66 = vld [vmem:[%s1 + $0xe0] sm:$0xff]
    %v67 = vld [vmem:[%s1 + $0xe8] sm:$0xff]
    %v68 = vld [vmem:[%s1 + $0xf0] sm:$0xff]
    %v69 = vld [vmem:[%s1 + $0xf8] sm:$0xff]
    %v70 = vld [vmem:[%s1 + $0x100] sm:$0xff]
    %v71 = vld [vmem:[%s1 + $0x108] sm:$0xff]
    %v72 = vld [vmem:[%s1 + $0x110] sm:$0xff]
    %v73 = vld [vmem:[%s1 + $0x118] sm:$0xff]
    %v74 = vld [vmem:[%s1 + $0x120] sm:$0xff]
    %v75 = vld [vmem:[%s1 + $0x128] sm:$0xff]
    %v76 = vld [vmem:[%s1 + $0x130] sm:$0xff]
    %v77 = vld [vmem:[%s1 + $0x138] sm:$0xff]
    %v78 = vld [vmem:[%s1 + $0x140] sm:$0xff]
    %v79 = vld [vmem:[%s1 + $0x148] sm:$0xff]
    %v80 = vld [vmem:[%s1 + $0x150] sm:$0xff]
    %v81 = vld [vmem:[%s1 + $0x158] sm:$0xff]
    %v82 = vld [vmem:[%s1 + $0x160] sm:$0xff]
    %v83 = vld [vmem:[%s1 + $0x168] sm:$0xff]
    %v84 = vld [vmem:[%s1 + $0x170] sm:$0xff]
    %v85 = vld [vmem:[%s1 + $0x178] sm:$0xff]
    %v86 = vld [vmem:[%s1 + $0x180] sm:$0xff]
    %v87 = vld [vmem:[%s1 + $0x188] sm:$0xff]
    %v88 = vld [vmem:[%s1 + $0x190] sm:$0xff]
    %v89 = vld [vmem:[%s1 + $0x198] sm:$0xff]
    %v90 = vld [vmem:[%s1 + $0x1a0] sm:$0xff]
    %v91 = vld [vmem:[%s1 + $0x1a8] sm:$0xff]
    %v92 = vld [vmem:[%s1 + $0x1b0] sm:$0xff]
    %v93 = vld [vmem:[%s1 + $0x1b8] sm:$0xff]
    %v94 = vld [vmem:[%s1 + $0x1c0] sm:$0xff]
    %v95 = vld [vmem:[%s1 + $0x1c8] sm:$0xff]
    %v96 = vld [vmem:[%s1 + $0x1d0] sm:$0xff]
    %v97 = vld [vmem:[%s1 + $0x1d8] sm:$0xff]
    %v98 = vld [vmem:[%s1 + $0x1e0] sm:$0xff]
    %v99 = vld [vmem:[%s1 + $0x1e8] sm:$0xff]
    %v100 = vld [vmem:[%s1 + $0x1f0] sm:$0xff]
    %v101 = vld [vmem:[%s1 + $0x1f8] sm:$0xff]
    %v102 = vld [vmem:[%s1 + $0x200] sm:$0xff]
    %v103 = vld [vmem:[%s1 + $0x208] sm:$0xff]
    %v104 = vld [vmem:[%s1 + $0x210] sm:$0xff]
    %v105 = vld [vmem:[%s1 + $0x218] sm:$0xff]
    %v106 = vld [vmem:[%s1 + $0x220] sm:$0xff]
    %v107 = vld [vmem:[%s1 + $0x228] sm:$0xff]
    %v108 = vld [vmem:[%s1 + $0x230] sm:$0xff]
    %v109 = vld [vmem:[%s1 + $0x238] sm:$0xff]
    %v110 = vld [vmem:[%s1 + $0x240] sm:$0xff]
    %v111 = vld [vmem:[%s1 + $0x248] sm:$0xff]
    %v112 = vld [vmem:[%s1 + $0x250] sm:$0xff]
    %v113 = vld [vmem:[%s1 + $0x258] sm:$0xff]
    %v114 = vld [vmem:[%s1 + $0x260] sm:$0xff]
    %v115 = vld [vmem:[%s1 + $0x268] sm:$0xff]
    %v116 = vld [vmem:[%s1 + $0x270] sm:$0xff]
    %v117 = vld [vmem:[%s1 + $0x278] sm:$0xff]
    %v118 = vld [vmem:[%s1 + $0x280] sm:$0xff]
    %v119 = vld [vmem:[%s1 + $0x288] sm:$0xff]
    %v120 = vld [vmem:[%s1 + $0x290] sm:$0xff]
    %v121 = vld [vmem:[%s1 + $0x298] sm:$0xff]
    %v122 = vld [vmem:[%s1 + $0x2a0] sm:$0xff]
    %v123 = vld [vmem:[%s1 + $0x2a8] sm:$0xff]
    %v124 = vld [vmem:[%s1 + $0x2b0] sm:$0xff]
    %v125 = vld [vmem:[%s1 + $0x2b8] sm:$0xff]
    %v126 = vld [vmem:[%s1 + $0x2c0] sm:$0xff]
    %v127 = vld [vmem:[%s1 + $0x2c8] sm:$0xff]
    %v128 = vld [vmem:[%s1 + $0x2d0] sm:$0xff]
    %v129 = vld [vmem:[%s1 + $0x2d8] sm:$0xff]
    %v130 = vld [vmem:[%s1 + $0x2e0] sm:$0xff]
    %v131 = vld [vmem:[%s1 + $0x2e8] sm:$0xff]
    %v132 = vld [vmem:[%s1 + $0x2f0] sm:$0xff]
    %v133 = vld [vmem:[%s1 + $0x2f8] sm:$0xff]
    %v134 = vld [vmem:[%s1 + $0x300] sm:$0xff]
    %v135 = vld [vmem:[%s1 + $0x308] sm:$0xff]
    %v136 = vld [vmem:[%s1 + $0x310] sm:$0xff]
    %v137 = vld [vmem:[%s1 + $0x318] sm:$0xff]
    %v138 = vld [vmem:[%s1 + $0x320] sm:$0xff]
    %v139 = vld [vmem:[%s1 + $0x328] sm:$0xff]
    %v140 = vld [vmem:[%s1 + $0x330] sm:$0xff]
    %v141 = vld [vmem:[%s1 + $0x338] sm:$0xff]
    %v142 = vld [vmem:[%s1 + $0x340] sm:$0xff]
    %v143 = vld [vmem:[%s1 + $0x348] sm:$0xff]
    %v144 = vld [vmem:[%s1 + $0x350] sm:$0xff]
    %v145 = vld [vmem:[%s1 + $0x358] sm:$0xff]
    %v146 = vld [vmem:[%s1 + $0x360] sm:$0xff]
    %v147 = vld [vmem:[%s1 + $0x368] sm:$0xff]
    %v148 = vld [vmem:[%s1 + $0x370] sm:$0xff]
    %v149 = vld [vmem:[%s1 + $0x378] sm:$0xff]
    %v150 = vld [vmem:[%s1 + $0x380] sm:$0xff]
    %v151 = vld [vmem:[%s1 + $0x388] sm:$0xff]
    %v152 = vld [vmem:[%s1 + $0x390] sm:$0xff]
    %v153 = vld [vmem:[%s1 + $0x398] sm:$0xff]
    %v154 = vld [vmem:[%s1 + $0x3a0] sm:$0xff]
    %v155 = vld [vmem:[%s1 + $0x3a8] sm:$0xff]
    %v156 = vld [vmem:[%s1 + $0x3b0] sm:$0xff]
    %v157 = vld [vmem:[%s1 + $0x3b8] sm:$0xff]
    %v158 = vld [vmem:[%s1 + $0x3c0] sm:$0xff]
    %v159 = vld [vmem:[%s1 + $0x3c8] sm:$0xff]
    %v160 = vld [vmem:[%s1 + $0x3d0] sm:$0xff]
    %v161 = vld [vmem:[%s1 + $0x3d8] sm:$0xff]
    %v162 = vld [vmem:[%s1 + $0x3e0] sm:$0xff]
    %v163 = vld [vmem:[%s1 + $0x3e8] sm:$0xff]
    %v164 = vld [vmem:[%s1 + $0x3f0] sm:$0xff]
    %v165 = vld [vmem:[%s1 + $0x3f8] sm:$0xff]
    %v166 = vld [vmem:[%s1 + $0x400] sm:$0xff]
    %v167 = vld [vmem:[%s1 + $0x408] sm:$0xff]
    %v168 = vld [vmem:[%s1 + $0x410] sm:$0xff]
    %v169 = vld [vmem:[%s1 + $0x418] sm:$0xff]
    %v170 = vld [vmem:[%s1 + $0x420] sm:$0xff]
    %v171 = vld [vmem:[%s1 + $0x428] sm:$0xff]
    %v172 = vld [vmem:[%s1 + $0x430] sm:$0xff]
    %v173 = vld [vmem:[%s1 + $0x438] sm:$0xff]
    %v174 = vld [vmem:[%s1 + $0x440] sm:$0xff]
    %v175 = vld [vmem:[%s1 + $0x448] sm:$0xff]
    %v176 = vld [vmem:[%s1 + $0x450] sm:$0xff]
    %v177 = vld [vmem:[%s1 + $0x458] sm:$0xff]
    %v178 = vld [vmem:[%s1 + $0x460] sm:$0xff]
    %v179 = vld [vmem:[%s1 + $0x468] sm:$0xff]
    %v180 = vld [vmem:[%s1 + $0x470] sm:$0xff]
    %v181 = vld [vmem:[%s1 + $0x478] sm:$0xff]
    %v182 = vld [vmem:[%s1 + $0x480] sm:$0xff]
    %v183 = vld [vmem:[%s1 + $0x488] sm:$0xff]
    %v184 = vld [vmem:[%s1 + $0x490] sm:$0xff]
    %v185 = vld [vmem:[%s1 + $0x498] sm:$0xff]
    %v186 = vld [vmem:[%s1 + $0x4a0] sm:$0xff]
    %v187 = vld [vmem:[%s1 + $0x4a8] sm:$0xff]
    %v188 = vld [vmem:[%s1 + $0x4b0] sm:$0xff]
    %v189 = vld [vmem:[%s1 + $0x4b8] sm:$0xff]
    %v190 = vld [vmem:[%s1 + $0x4c0] sm:$0xff]
    %v191 = vld [vmem:[%s1 + $0x4c8] sm:$0xff]
    %v192 = vld [vmem:[%s1 + $0x4d0] sm:$0xff]
    %v193 = vld [vmem:[%s1 + $0x4d8] sm:$0xff]
    %v194 = vld [vmem:[%s1 + $0x4e0] sm:$0xff]
    %v195 = vld [vmem:[%s1 + $0x4e8] sm:$0xff]
    %v196 = vld [vmem:[%s1 + $0x4f0] sm:$0xff]
    %v197 = vld [vmem:[%s1 + $0x4f8] sm:$0xff]
    %v198 = vld [vmem:[%s1 + $0x500] sm:$0xff]
    %v199 = vld [vmem:[%s1 + $0x508] sm:$0xff]
    %v200 = vld [vmem:[%s1 + $0x510] sm:$0xff]
    %v201 = vld [vmem:[%s1 + $0x518] sm:$0xff]
    %v202 = vld [vmem:[%s1 + $0x520] sm:$0xff]
    %v203 = vld [vmem:[%s1 + $0x528] sm:$0xff]
    %v204 = vld [vmem:[%s1 + $0x530] sm:$0xff]
    %v205 = vld [vmem:[%s1 + $0x538] sm:$0xff]
    %v206 = vld [vmem:[%s1 + $0x540] sm:$0xff]
    %v207 = vld [vmem:[%s1 + $0x548] sm:$0xff]
    %v208 = vld [vmem:[%s1 + $0x550] sm:$0xff]
    %v209 = vld [vmem:[%s1 + $0x558] sm:$0xff]
    %v210 = vld [vmem:[%s1 + $0x560] sm:$0xff]
    %v211 = vld [vmem:[%s1 + $0x568] sm:$0xff]
    %v212 = vld [vmem:[%s1 + $0x570] sm:$0xff]
    %v213 = vld [vmem:[%s1 + $0x578] sm:$0xff]
    %v214 = vld [vmem:[%s1 + $0x580] sm:$0xff]
    %v215 = vld [vmem:[%s1 + $0x588] sm:$0xff]
    %v216 = vld [vmem:[%s1 + $0x590] sm:$0xff]
    %v217 = vld [vmem:[%s1 + $0x598] sm:$0xff]
    %v218 = vld [vmem:[%s1 + $0x5a0] sm:$0xff]
    %v219 = vld [vmem:[%s1 + $0x5a8] sm:$0xff]
    %v220 = vld [vmem:[%s1 + $0x5b0] sm:$0xff]
    %v221 = vld [vmem:[%s1 + $0x5b8] sm:$0xff]
    %v222 = vld [vmem:[%s1 + $0x5c0] sm:$0xff]
    %v223 = vld [vmem:[%s1 + $0x5c8] sm:$0xff]
    %v224 = vld [vmem:[%s1 + $0x5d0] sm:$0xff]
    %v225 = vld [vmem:[%s1 + $0x5d8] sm:$0xff]
    %v226 = vld [vmem:[%s1 + $0x5e0] sm:$0xff]
    %v227 = vld [vmem:[%s1 + $0x5e8] sm:$0xff]
    %v228 = vld [vmem:[%s1 + $0x5f0] sm:$0xff]
    %v229 = vld [vmem:[%s1 + $0x5f8] sm:$0xff]
    %v230 = vld [vmem:[%s1 + $0x600] sm:$0xff]
    %v231 = vld [vmem:[%s1 + $0x608] sm:$0xff]
    %v232 = vld [vmem:[%s1 + $0x610] sm:$0xff]
    %v233 = vld [vmem:[%s1 + $0x618] sm:$0xff]
    %v234 = vld [vmem:[%s1 + $0x620] sm:$0xff]
    %v235 = vld [vmem:[%s1 + $0x628] sm:$0xff]
    %v236 = vld [vmem:[%s1 + $0x630] sm:$0xff]
    %v237 = vld [vmem:[%s1 + $0x638] sm:$0xff]
    %v238 = vld [vmem:[%s1 + $0x640] sm:$0xff]
    %v239 = vld [vmem:[%s1 + $0x648] sm:$0xff]
    %v240 = vld [vmem:[%s1 + $0x650] sm:$0xff]
    %v241 = vld [vmem:[%s1 + $0x658] sm:$0xff]
    %v242 = vld [vmem:[%s1 + $0x660] sm:$0xff]
    %v243 = vld [vmem:[%s1 + $0x668] sm:$0xff]
    %v244 = vld [vmem:[%s1 + $0x670] sm:$0xff]
    %v245 = vld [vmem:[%s1 + $0x678] sm:$0xff]
    %v246 = vld [vmem:[%s1 + $0x680] sm:$0xff]
    %v247 = vld [vmem:[%s1 + $0x688] sm:$0xff]
    %v248 = vld [vmem:[%s1 + $0x690] sm:$0xff]
    %v249 = vld [vmem:[%s1 + $0x698] sm:$0xff]
    %v250 = vld [vmem:[%s1 + $0x6a0] sm:$0xff]
    %v251 = vld [vmem:[%s1 + $0x6a8] sm:$0xff]
    %v252 = vld [vmem:[%s1 + $0x6b0] sm:$0xff]
    %v253 = vld [vmem:[%s1 + $0x6b8] sm:$0xff]
    %v254 = vld [vmem:[%s1 + $0x6c0] sm:$0xff]
    %v255 = vld [vmem:[%s1 + $0x6c8] sm:$0xff]
    %v256 = vld [vmem:[%s1 + $0x6d0] sm:$0xff]
    %v257 = vld [vmem:[%s1 + $0x6d8] sm:$0xff]
    %v258 = vld [vmem:[%s1 + $0x6e0] sm:$0xff]
    %v259 = vld [vmem:[%s1 + $0x6e8] sm:$0xff]
    %v260 = vld [vmem:[%s1 + $0x6f0] sm:$0xff]
    %v261 = vld [vmem:[%s1 + $0x6f8] sm:$0xff]
    %v262 = vld [vmem:[%s1 + $0x700] sm:$0xff]
    %v263 = vld [vmem:[%s1 + $0x708] sm:$0xff]
    %v264 = vld [vmem:[%s1 + $0x710] sm:$0xff]
    %v265 = vld [vmem:[%s1 + $0x718] sm:$0xff]
    %v266 = vld [vmem:[%s1 + $0x720] sm:$0xff]
    %v267 = vld [vmem:[%s1 + $0x728] sm:$0xff]
    %v268 = vld [vmem:[%s1 + $0x730] sm:$0xff]
    %v269 = vld [vmem:[%s1 + $0x738] sm:$0xff]
    %v270 = vld [vmem:[%s1 + $0x740] sm:$0xff]
    %v271 = vld [vmem:[%s1 + $0x748] sm:$0xff]
    %v272 = vld [vmem:[%s1 + $0x750] sm:$0xff]
    %v273 = vld [vmem:[%s1 + $0x758] sm:$0xff]
    %v274 = vld [vmem:[%s1 + $0x760] sm:$0xff]
    %v275 = vld [vmem:[%s1 + $0x768] sm:$0xff]
    %v276 = vld [vmem:[%s1 + $0x770] sm:$0xff]
    %v277 = vld [vmem:[%s1 + $0x778] sm:$0xff]
    %v278 = vld [vmem:[%s1 + $0x780] sm:$0xff]
    %v279 = vld [vmem:[%s1 + $0x788] sm:$0xff]
    %v280 = vld [vmem:[%s1 + $0x790] sm:$0xff]
    %v281 = vld [vmem:[%s1 + $0x798] sm:$0xff]
    %v282 = vld [vmem:[%s1 + $0x7a0] sm:$0xff]
    %v283 = vld [vmem:[%s1 + $0x7a8] sm:$0xff]
    %v284 = vld [vmem:[%s1 + $0x7b0] sm:$0xff]
    %v285 = vld [vmem:[%s1 + $0x7b8] sm:$0xff]
    %v286 = vld [vmem:[%s1 + $0x7c0] sm:$0xff]
    %v287 = vld [vmem:[%s1 + $0x7c8] sm:$0xff]
    %v288 = vld [vmem:[%s1 + $0x7d0] sm:$0xff]
    %v289 = vld [vmem:[%s1 + $0x7d8] sm:$0xff]
    %v290 = vld [vmem:[%s1 + $0x7e0] sm:$0xff]
    %v291 = vld [vmem:[%s1 + $0x7e8] sm:$0xff]
    %v292 = vld [vmem:[%s1 + $0x7f0] sm:$0xff]
    %v293 = vld [vmem:[%s1 + $0x7f8] sm:$0xff]
    %v294 = vld [vmem:[%s1 + $0x800] sm:$0xff]
    %v295 = vld [vmem:[%s1 + $0x808] sm:$0xff]
    %v296 = vld [vmem:[%s1 + $0x810] sm:$0xff]
    %v297 = vld [vmem:[%s1 + $0x818] sm:$0xff]
    %v298 = vld [vmem:[%s1 + $0x820] sm:$0xff]
    %v299 = vld [vmem:[%s1 + $0x828] sm:$0xff]
    %v300 = vld [vmem:[%s1 + $0x830] sm:$0xff]
    %v301 = vld [vmem:[%s1 + $0x838] sm:$0xff]
    %v302 = vld [vmem:[%s1 + $0x840] sm:$0xff]
    %v303 = vld [vmem:[%s1 + $0x848] sm:$0xff]
    %v304 = vld [vmem:[%s1 + $0x850] sm:$0xff]
    %v305 = vld [vmem:[%s1 + $0x858] sm:$0xff]
    %v306 = vld [vmem:[%s1 + $0x860] sm:$0xff]
    %v307 = vld [vmem:[%s1 + $0x868] sm:$0xff]
    %v308 = vld [vmem:[%s1 + $0x870] sm:$0xff]
    %v309 = vld [vmem:[%s1 + $0x878] sm:$0xff]
    %v310 = vld [vmem:[%s1 + $0x880] sm:$0xff]
    %v311 = vld [vmem:[%s1 + $0x888] sm:$0xff]
    %v312 = vld [vmem:[%s1 + $0x890] sm:$0xff]
    %v313 = vld [vmem:[%s1 + $0x898] sm:$0xff]
    %v314 = vld [vmem:[%s1 + $0x8a0] sm:$0xff]
    %v315 = vld [vmem:[%s1 + $0x8a8] sm:$0xff]
    %v316 = vld [vmem:[%s1 + $0x8b0] sm:$0xff]
    %v317 = vld [vmem:[%s1 + $0x8b8] sm:$0xff]
    %v318 = vld [vmem:[%s1 + $0x8c0] sm:$0xff]
    %v319 = vld [vmem:[%s1 + $0x8c8] sm:$0xff]
    %v320 = vld [vmem:[%s1 + $0x8d0] sm:$0xff]
    %v321 = vld [vmem:[%s1 + $0x8d8] sm:$0xff]
    %v322 = vld [vmem:[%s1 + $0x8e0] sm:$0xff]
    %v323 = vld [vmem:[%s1 + $0x8e8] sm:$0xff]
    %v324 = vld [vmem:[%s1 + $0x8f0] sm:$0xff]
    %v325 = vld [vmem:[%s1 + $0x8f8] sm:$0xff]
    %v326 = vld [vmem:[%s1 + $0x900] sm:$0xff]
    %v327 = vld [vmem:[%s1 + $0x908] sm:$0xff]
    %v328 = vld [vmem:[%s1 + $0x910] sm:$0xff]
    %v329 = vld [vmem:[%s1 + $0x918] sm:$0xff]
    %v330 = vld [vmem:[%s1 + $0x920] sm:$0xff]
    %v331 = vld [vmem:[%s1 + $0x928] sm:$0xff]
    %v332 = vld [vmem:[%s1 + $0x930] sm:$0xff]
    %v333 = vld [vmem:[%s1 + $0x938] sm:$0xff]
    %v334 = vld [vmem:[%s1 + $0x940] sm:$0xff]
    %v335 = vld [vmem:[%s1 + $0x948] sm:$0xff]
    %v336 = vld [vmem:[%s1 + $0x950] sm:$0xff]
    %v337 = vld [vmem:[%s1 + $0x958] sm:$0xff]
    %v338 = vld [vmem:[%s1 + $0x960] sm:$0xff]
    %v339 = vld [vmem:[%s1 + $0x968] sm:$0xff]
    %v340 = vld [vmem:[%s1 + $0x970] sm:$0xff]
    %v341 = vld [vmem:[%s1 + $0x978] sm:$0xff]
    %v342 = vld [vmem:[%s1 + $0x980] sm:$0xff]
    %v343 = vld [vmem:[%s1 + $0x988] sm:$0xff]
    %v344 = vld [vmem:[%s1 + $0x990] sm:$0xff]
    %v345 = vld [vmem:[%s1 + $0x998] sm:$0xff]
    %v346 = vld [vmem:[%s1 + $0x9a0] sm:$0xff]
    %v347 = vld [vmem:[%s1 + $0x9a8] sm:$0xff]
    %v348 = vld [vmem:[%s1 + $0x9b0] sm:$0xff]
    %v349 = vld [vmem:[%s1 + $0x9b8] sm:$0xff]
    %v350 = vld [vmem:[%s1 + $0x9c0] sm:$0xff]
    %v351 = vld [vmem:[%s1 + $0x9c8] sm:$0xff]
    %v352 = vld [vmem:[%s1 + $0x9d0] sm:$0xff]
    %v353 = vld [vmem:[%s1 + $0x9d8] sm:$0xff]
    %v354 = vld [vmem:[%s1 + $0x9e0] sm:$0xff]
    %v355 = vld [vmem:[%s1 + $0x9e8] sm:$0xff]
    %v356 = vld [vmem:[%s1 + $0x9f0] sm:$0xff]
    %v357 = vld [vmem:[%s1 + $0x9f8] sm:$0xff]
    %v358 = vld [vmem:[%s1 + $0xa00] sm:$0xff]
    %v359 = vld [vmem:[%s1 + $0xa08] sm:$0xff]
    %v360 = vld [vmem:[%s1 + $0xa10] sm:$0xff]
    %v361 = vld [vmem:[%s1 + $0xa18] sm:$0xff]
    %v362 = vld [vmem:[%s1 + $0xa20] sm:$0xff]
    %v363 = vld [vmem:[%s1 + $0xa28] sm:$0xff]
    %v364 = vld [vmem:[%s1 + $0xa30] sm:$0xff]
    %v365 = vld [vmem:[%s1 + $0xa38] sm:$0xff]
    %v366 = vld [vmem:[%s1 + $0xa40] sm:$0xff]
    %v367 = vld [vmem:[%s1 + $0xa48] sm:$0xff]
    %v368 = vld [vmem:[%s1 + $0xa50] sm:$0xff]
    %v369 = vld [vmem:[%s1 + $0xa58] sm:$0xff]
    %v370 = vld [vmem:[%s1 + $0xa60] sm:$0xff]
    %v371 = vld [vmem:[%s1 + $0xa68] sm:$0xff]
    %v372 = vld [vmem:[%s1 + $0xa70] sm:$0xff]
    %v373 = vld [vmem:[%s1 + $0xa78] sm:$0xff]
    %v374 = vld [vmem:[%s1 + $0xa80] sm:$0xff]
    %v375 = vld [vmem:[%s1 + $0xa88] sm:$0xff]
    %v376 = vld [vmem:[%s1 + $0xa90] sm:$0xff]
    %v377 = vld [vmem:[%s1 + $0xa98] sm:$0xff]
    %v378 = vld [vmem:[%s1 + $0xaa0] sm:$0xff]
    %v379 = vld [vmem:[%s1 + $0xaa8] sm:$0xff]
    %v380 = vld [vmem:[%s1 + $0xab0] sm:$0xff]
    %v381 = vld [vmem:[%s1 + $0xab8] sm:$0xff]
    %v382 = vld [vmem:[%s1 + $0xac0] sm:$0xff]
    %v383 = vld [vmem:[%s1 + $0xac8] sm:$0xff]
    %v384 = vld [vmem:[%s1 + $0xad0] sm:$0xff]
    %v385 = vld [vmem:[%s1 + $0xad8] sm:$0xff]
    %v386 = vld [vmem:[%s1 + $0xae0] sm:$0xff]
    %v387 = vld [vmem:[%s1 + $0xae8] sm:$0xff]
    %v388 = vld [vmem:[%s1 + $0xaf0] sm:$0xff]
    %v389 = vld [vmem:[%s1 + $0xaf8] sm:$0xff]
    %v390 = vld [vmem:[%s1 + $0xb00] sm:$0xff]
    %v391 = vld [vmem:[%s1 + $0xb08] sm:$0xff]
    %v392 = vld [vmem:[%s1 + $0xb10] sm:$0xff]
    %v393 = vld [vmem:[%s1 + $0xb18] sm:$0xff]
    %v394 = vld [vmem:[%s1 + $0xb20] sm:$0xff]
    %v395 = vld [vmem:[%s1 + $0xb28] sm:$0xff]
    %v396 = vld [vmem:[%s1 + $0xb30] sm:$0xff]
    %v397 = vld [vmem:[%s1 + $0xb38] sm:$0xff]
    %v398 = vld [vmem:[%s1 + $0xb40] sm:$0xff]
    %v399 = vld [vmem:[%s1 + $0xb48] sm:$0xff]
    %v400 = vld [vmem:[%s1 + $0xb50] sm:$0xff]
    %v401 = vld [vmem:[%s1 + $0xb58] sm:$0xff]
    %v402 = vld [vmem:[%s1 + $0xb60] sm:$0xff]
    %v403 = vld [vmem:[%s1 + $0xb68] sm:$0xff]
    %v404 = vld [vmem:[%s1 + $0xb70] sm:$0xff]
    %v405 = vld [vmem:[%s1 + $0xb78] sm:$0xff]
    %v406 = vld [vmem:[%s1 + $0xb80] sm:$0xff]
    %v407 = vld [vmem:[%s1 + $0xb88] sm:$0xff]
    %v408 = vld [vmem:[%s1 + $0xb90] sm:$0xff]
    %v409 = vld [vmem:[%s1 + $0xb98] sm:$0xff]
    %v410 = vld [vmem:[%s1 + $0xba0] sm:$0xff]
    %v411 = vld [vmem:[%s1 + $0xba8] sm:$0xff]
    %v412 = vld [vmem:[%s1 + $0xbb0] sm:$0xff]
    %v413 = vld [vmem:[%s1 + $0xbb8] sm:$0xff]
    %v414 = vld [vmem:[%s1 + $0xbc0] sm:$0xff]
    %v415 = vld [vmem:[%s1 + $0xbc8] sm:$0xff]
    %v416 = vld [vmem:[%s1 + $0xbd0] sm:$0xff]
    %v417 = vld [vmem:[%s1 + $0xbd8] sm:$0xff]
    %v418 = vld [vmem:[%s1 + $0xbe0] sm:$0xff]
    %v419 = vld [vmem:[%s1 + $0xbe8] sm:$0xff]
    %v420 = vld [vmem:[%s1 + $0xbf0] sm:$0xff]
    %v421 = vld [vmem:[%s1 + $0xbf8] sm:$0xff]
    %v422 = vld [vmem:[%s1 + $0xc00] sm:$0xff]
    %v423 = vld [vmem:[%s1 + $0xc08] sm:$0xff]
    %v424 = vld [vmem:[%s1 + $0xc10] sm:$0xff]
    %v425 = vld [vmem:[%s1 + $0xc18] sm:$0xff]
    %v426 = vld [vmem:[%s1 + $0xc20] sm:$0xff]
    %v427 = vld [vmem:[%s1 + $0xc28] sm:$0xff]
    %v428 = vld [vmem:[%s1 + $0xc30] sm:$0xff]
    %v429 = vld [vmem:[%s1 + $0xc38] sm:$0xff]
    %v430 = vld [vmem:[%s1 + $0xc40] sm:$0xff]
    %v431 = vld [vmem:[%s1 + $0xc48] sm:$0xff]
    %v432 = vld [vmem:[%s1 + $0xc50] sm:$0xff]
    %v433 = vld [vmem:[%s1 + $0xc58] sm:$0xff]
    %v434 = vld [vmem:[%s1 + $0xc60] sm:$0xff]
    %v435 = vld [vmem:[%s1 + $0xc68] sm:$0xff]
    %v436 = vld [vmem:[%s1 + $0xc70] sm:$0xff]
    %v437 = vld [vmem:[%s1 + $0xc78] sm:$0xff]
    %v438 = vld [vmem:[%s1 + $0xc80] sm:$0xff]
    %v439 = vld [vmem:[%s1 + $0xc88] sm:$0xff]
    %v440 = vld [vmem:[%s1 + $0xc90] sm:$0xff]
    %v441 = vld [vmem:[%s1 + $0xc98] sm:$0xff]
    %v442 = vld [vmem:[%s1 + $0xca0] sm:$0xff]
    %v443 = vld [vmem:[%s1 + $0xca8] sm:$0xff]
    %v444 = vld [vmem:[%s1 + $0xcb0] sm:$0xff]
    %v445 = vld [vmem:[%s1 + $0xcb8] sm:$0xff]
    %v446 = vld [vmem:[%s1 + $0xcc0] sm:$0xff]
    %v447 = vld [vmem:[%s1 + $0xcc8] sm:$0xff]
    %v448 = vld [vmem:[%s1 + $0xcd0] sm:$0xff]
    %v449 = vld [vmem:[%s1 + $0xcd8] sm:$0xff]
    %v450 = vld [vmem:[%s1 + $0xce0] sm:$0xff]
    %v451 = vld [vmem:[%s1 + $0xce8] sm:$0xff]
    %v452 = vld [vmem:[%s1 + $0xcf0] sm:$0xff]
    %v453 = vld [vmem:[%s1 + $0xcf8] sm:$0xff]
    %v454 = vld [vmem:[%s1 + $0xd00] sm:$0xff]
    %v455 = vld [vmem:[%s1 + $0xd08] sm:$0xff]
    %v456 = vld [vmem:[%s1 + $0xd10] sm:$0xff]
    %v457 = vld [vmem:[%s1 + $0xd18] sm:$0xff]
    %v458 = vld [vmem:[%s1 + $0xd20] sm:$0xff]
    %v459 = vld [vmem:[%s1 + $0xd28] sm:$0xff]
    %v460 = vld [vmem:[%s1 + $0xd30] sm:$0xff]
    %v461 = vld [vmem:[%s1 + $0xd38] sm:$0xff]
    %v462 = vld [vmem:[%s1 + $0xd40] sm:$0xff]
    %v463 = vld [vmem:[%s1 + $0xd48] sm:$0xff]
    %v464 = vld [vmem:[%s1 + $0xd50] sm:$0xff]
    %v465 = vld [vmem:[%s1 + $0xd58] sm:$0xff]
    %v466 = vld [vmem:[%s1 + $0xd60] sm:$0xff]
    %v467 = vld [vmem:[%s1 + $0xd68] sm:$0xff]
    %v468 = vld [vmem:[%s1 + $0xd70] sm:$0xff]
    %v469 = vld [vmem:[%s1 + $0xd78] sm:$0xff]
    %v470 = vld [vmem:[%s1 + $0xd80] sm:$0xff]
    %v471 = vld [vmem:[%s1 + $0xd88] sm:$0xff]
    %v472 = vld [vmem:[%s1 + $0xd90] sm:$0xff]
    %v473 = vld [vmem:[%s1 + $0xd98] sm:$0xff]
    %v474 = vld [vmem:[%s1 + $0xda0] sm:$0xff]
    %v475 = vld [vmem:[%s1 + $0xda8] sm:$0xff]
    %v476 = vld [vmem:[%s1 + $0xdb0] sm:$0xff]
    %v477 = vld [vmem:[%s1 + $0xdb8] sm:$0xff]
    %v478 = vld [vmem:[%s1 + $0xdc0] sm:$0xff]
    %v479 = vld [vmem:[%s1 + $0xdc8] sm:$0xff]
    %v480 = vld [vmem:[%s1 + $0xdd0] sm:$0xff]
    %v481 = vld [vmem:[%s1 + $0xdd8] sm:$0xff]
    %v482 = vld [vmem:[%s1 + $0xde0] sm:$0xff]
    %v483 = vld [vmem:[%s1 + $0xde8] sm:$0xff]
    %v484 = vld [vmem:[%s1 + $0xdf0] sm:$0xff]
    %v485 = vld [vmem:[%s1 + $0xdf8] sm:$0xff]
    %v486 = vld [vmem:[%s1 + $0xe00] sm:$0xff]
    %v487 = vld [vmem:[%s1 + $0xe08] sm:$0xff]
    %v488 = vld [vmem:[%s1 + $0xe10] sm:$0xff]
    %v489 = vld [vmem:[%s1 + $0xe18] sm:$0xff]
    %v490 = vld [vmem:[%s1 + $0xe20] sm:$0xff]
    %v491 = vld [vmem:[%s1 + $0xe28] sm:$0xff]
    %v492 = vld [vmem:[%s1 + $0xe30] sm:$0xff]
    %v493 = vld [vmem:[%s1 + $0xe38] sm:$0xff]
    %v494 = vld [vmem:[%s1 + $0xe40] sm:$0xff]
    %v495 = vld [vmem:[%s1 + $0xe48] sm:$0xff]
    %v496 = vld [vmem:[%s1 + $0xe50] sm:$0xff]
    %v497 = vld [vmem:[%s1 + $0xe58] sm:$0xff]
    %v498 = vld [vmem:[%s1 + $0xe60] sm:$0xff]
    %v499 = vld [vmem:[%s1 + $0xe68] sm:$0xff]
    %v500 = vld [vmem:[%s1 + $0xe70] sm:$0xff]
    %v501 = vld [vmem:[%s1 + $0xe78] sm:$0xff]
    %v502 = vld [vmem:[%s1 + $0xe80] sm:$0xff]
    %v503 = vld [vmem:[%s1 + $0xe88] sm:$0xff]
    %v504 = vld [vmem:[%s1 + $0xe90] sm:$0xff]
    %v505 = vld [vmem:[%s1 + $0xe98] sm:$0xff]
    %v506 = vld [vmem:[%s1 + $0xea0] sm:$0xff]
    %v507 = vld [vmem:[%s1 + $0xea8] sm:$0xff]
    %v508 = vld [vmem:[%s1 + $0xeb0] sm:$0xff]
    %v509 = vld [vmem:[%s1 + $0xeb8] sm:$0xff]
    %v510 = vld [vmem:[%s1 + $0xec0] sm:$0xff]
    %v511 = vld [vmem:[%s1 + $0xec8] sm:$0xff]
    %v512 = vld [vmem:[%s1 + $0xed0] sm:$0xff]
    %v513 = vld [vmem:[%s1 + $0xed8] sm:$0xff]
    %v514 = vld [vmem:[%s1 + $0xee0] sm:$0xff]
    %v515 = vld [vmem:[%s1 + $0xee8] sm:$0xff]
    %v516 = vld [vmem:[%s1 + $0xef0] sm:$0xff]
    %v517 = vld [vmem:[%s1 + $0xef8] sm:$0xff]
    %v518 = vld [vmem:[%s1 + $0xf00] sm:$0xff]
    %v519 = vld [vmem:[%s1 + $0xf08] sm:$0xff]
    %v520 = vld [vmem:[%s1 + $0xf10] sm:$0xff]
    %v521 = vld [vmem:[%s1 + $0xf18] sm:$0xff]
    %v522 = vld [vmem:[%s1 + $0xf20] sm:$0xff]
    %v523 = vld [vmem:[%s1 + $0xf28] sm:$0xff]
    %v524 = vld [vmem:[%s1 + $0xf30] sm:$0xff]
    %v525 = vld [vmem:[%s1 + $0xf38] sm:$0xff]
    %v526 = vld [vmem:[%s1 + $0xf40] sm:$0xff]
    %v527 = vld [vmem:[%s1 + $0xf48] sm:$0xff]
    %v528 = vld [vmem:[%s1 + $0xf50] sm:$0xff]
    %v529 = vld [vmem:[%s1 + $0xf58] sm:$0xff]
    %v530 = vld [vmem:[%s1 + $0xf60] sm:$0xff]
    %v531 = vld [vmem:[%s1 + $0xf68] sm:$0xff]
    %v532 = vld [vmem:[%s1 + $0xf70] sm:$0xff]
    %v533 = vld [vmem:[%s1 + $0xf78] sm:$0xff]
    %v534 = vld [vmem:[%s1 + $0xf80] sm:$0xff]
    %v535 = vld [vmem:[%s1 + $0xf88] sm:$0xff]
    %v536 = vld [vmem:[%s1 + $0xf90] sm:$0xff]
    %v537 = vld [vmem:[%s1 + $0xf98] sm:$0xff]
    %v538 = vld [vmem:[%s1 + $0xfa0] sm:$0xff]
    %v539 = vld [vmem:[%s1 + $0xfa8] sm:$0xff]
    %v540 = vld [vmem:[%s1 + $0xfb0] sm:$0xff]
    %v541 = vld [vmem:[%s1 + $0xfb8] sm:$0xff]
    %v542 = vld [vmem:[%s1 + $0xfc0] sm:$0xff]
    %v543 = vld [vmem:[%s1 + $0xfc8] sm:$0xff]
    %v544 = vld [vmem:[%s1 + $0xfd0] sm:$0xff]
    %v545 = vld [vmem:[%s1 + $0xfd8] sm:$0xff]
    %v546 = vld [vmem:[%s1 + $0xfe0] sm:$0xff]
    %v547 = vld [vmem:[%s1 + $0xfe8] sm:$0xff]
    %v548 = vld [vmem:[%s1 + $0xff0] sm:$0xff]
    %v549 = vld [vmem:[%s1 + $0xff8] sm:$0xff]
    %v550 = vld [vmem:[%s1 + $0x1000] sm:$0xff]
    %v551 = vld [vmem:[%s1 + $0x1008] sm:$0xff]
    %v552 = vld [vmem:[%s1 + $0x1010] sm:$0xff]
    %v553 = vld [vmem:[%s1 + $0x1018] sm:$0xff]
    %v554 = vld [vmem:[%s1 + $0x1020] sm:$0xff]
    %v555 = vld [vmem:[%s1 + $0x1028] sm:$0xff]
    %v556 = vld [vmem:[%s1 + $0x1030] sm:$0xff]
    %v557 = vld [vmem:[%s1 + $0x1038] sm:$0xff]
    %v558 = vld [vmem:[%s1 + $0x1040] sm:$0xff]
    %v559 = vld [vmem:[%s1 + $0x1048] sm:$0xff]
    %v560 = vld [vmem:[%s1 + $0x1050] sm:$0xff]
    %v561 = vld [vmem:[%s1 + $0x1058] sm:$0xff]
    %v562 = vld [vmem:[%s1 + $0x1060] sm:$0xff]
    %v563 = vld [vmem:[%s1 + $0x1068] sm:$0xff]
    %v564 = vld [vmem:[%s1 + $0x1070] sm:$0xff]
    %v565 = vld [vmem:[%s1 + $0x1078] sm:$0xff]
    %v566 = vld [vmem:[%s1 + $0x1080] sm:$0xff]
    %v567 = vld [vmem:[%s1 + $0x1088] sm:$0xff]
    %v568 = vld [vmem:[%s1 + $0x1090] sm:$0xff]
    %v569 = vld [vmem:[%s1 + $0x1098] sm:$0xff]
    %v570 = vld [vmem:[%s1 + $0x10a0] sm:$0xff]
    %v571 = vld [vmem:[%s1 + $0x10a8] sm:$0xff]
    %v572 = vld [vmem:[%s1 + $0x10b0] sm:$0xff]
    %v573 = vld [vmem:[%s1 + $0x10b8] sm:$0xff]
    %v574 = vld [vmem:[%s1 + $0x10c0] sm:$0xff]
    %v575 = vld [vmem:[%s1 + $0x10c8] sm:$0xff]
    %v576 = vld [vmem:[%s1 + $0x10d0] sm:$0xff]
    %v577 = vld [vmem:[%s1 + $0x10d8] sm:$0xff]
    %v578 = vld [vmem:[%s1 + $0x10e0] sm:$0xff]
    %v579 = vld [vmem:[%s1 + $0x10e8] sm:$0xff]
    %v580 = vld [vmem:[%s1 + $0x10f0] sm:$0xff]
    %v581 = vld [vmem:[%s1 + $0x10f8] sm:$0xff]
    %v582 = vld [vmem:[%s1 + $0x1100] sm:$0xff]
    %v583 = vld [vmem:[%s1 + $0x1108] sm:$0xff]
    %v584 = vld [vmem:[%s1 + $0x1110] sm:$0xff]
    %v585 = vld [vmem:[%s1 + $0x1118] sm:$0xff]
    %v586 = vld [vmem:[%s1 + $0x1120] sm:$0xff]
    %v587 = vld [vmem:[%s1 + $0x1128] sm:$0xff]
    %v588 = vld [vmem:[%s1 + $0x1130] sm:$0xff]
    %v589 = vld [vmem:[%s1 + $0x1138] sm:$0xff]
    %v590 = vld [vmem:[%s1 + $0x1140] sm:$0xff]
    %v591 = vld [vmem:[%s1 + $0x1148] sm:$0xff]
    %v592 = vld [vmem:[%s1 + $0x1150] sm:$0xff]
    %v593 = vld [vmem:[%s1 + $0x1158] sm:$0xff]
    %v594 = vld [vmem:[%s1 + $0x1160] sm:$0xff]
    %v595 = vld [vmem:[%s1 + $0x1168] sm:$0xff]
    %v596 = vld [vmem:[%s1 + $0x1170] sm:$0xff]
    %v597 = vld [vmem:[%s1 + $0x1178] sm:$0xff]
    %v598 = vld [vmem:[%s1 + $0x1180] sm:$0xff]
    %v599 = vld [vmem:[%s1 + $0x1188] sm:$0xff]
    %v600 = vld [vmem:[%s1 + $0x1190] sm:$0xff]
    %v601 = vld [vmem:[%s1 + $0x1198] sm:$0xff]
    %v602 = vld [vmem:[%s1 + $0x11a0] sm:$0xff]
    %v603 = vld [vmem:[%s1 + $0x11a8] sm:$0xff]
    %v604 = vld [vmem:[%s1 + $0x11b0] sm:$0xff]
    %v605 = vld [vmem:[%s1 + $0x11b8] sm:$0xff]
    %v606 = vld [vmem:[%s1 + $0x11c0] sm:$0xff]
    %v607 = vld [vmem:[%s1 + $0x11c8] sm:$0xff]
    %v608 = vld [vmem:[%s1 + $0x11d0] sm:$0xff]
    %v609 = vld [vmem:[%s1 + $0x11d8] sm:$0xff]
    %v610 = vld [vmem:[%s1 + $0x11e0] sm:$0xff]
    %v611 = vld [vmem:[%s1 + $0x11e8] sm:$0xff]
    %v612 = vld [vmem:[%s1 + $0x11f0] sm:$0xff]
    %v613 = vld [vmem:[%s1 + $0x11f8] sm:$0xff]
    %v614 = vld [vmem:[%s1 + $0x1200] sm:$0xff]
    %v615 = vld [vmem:[%s1 + $0x1208] sm:$0xff]
    %v616 = vld [vmem:[%s1 + $0x1210] sm:$0xff]
    %v617 = vld [vmem:[%s1 + $0x1218] sm:$0xff]
    %v618 = vld [vmem:[%s1 + $0x1220] sm:$0xff]
    %v619 = vld [vmem:[%s1 + $0x1228] sm:$0xff]
    %v620 = vld [vmem:[%s1 + $0x1230] sm:$0xff]
    %v621 = vld [vmem:[%s1 + $0x1238] sm:$0xff]
    %v622 = vld [vmem:[%s1 + $0x1240] sm:$0xff]
    %v623 = vld [vmem:[%s1 + $0x1248] sm:$0xff]
    %v624 = vld [vmem:[%s1 + $0x1250] sm:$0xff]
    %v625 = vld [vmem:[%s1 + $0x1258] sm:$0xff]
    %v626 = vld [vmem:[%s1 + $0x1260] sm:$0xff]
    %v627 = vld [vmem:[%s1 + $0x1268] sm:$0xff]
    %v628 = vld [vmem:[%s1 + $0x1270] sm:$0xff]
    %v629 = vld [vmem:[%s1 + $0x1278] sm:$0xff]
    %v630 = vld [vmem:[%s1 + $0x1280] sm:$0xff]
    %v631 = vld [vmem:[%s1 + $0x1288] sm:$0xff]
    %v632 = vld [vmem:[%s1 + $0x1290] sm:$0xff]
    %v633 = vld [vmem:[%s1 + $0x1298] sm:$0xff]
    %v634 = vld [vmem:[%s1 + $0x12a0] sm:$0xff]
    %v635 = vld [vmem:[%s1 + $0x12a8] sm:$0xff]
    %v636 = vld [vmem:[%s1 + $0x12b0] sm:$0xff]
    %v637 = vld [vmem:[%s1 + $0x12b8] sm:$0xff]
    %643 = vst [vmem:[#allocation1] ss:$4 sm:$0xff] %v33
    %s644 = scalar_lea.vmem [#allocation1], 32
    %645 = vst [vmem:[%s644] ss:$4 sm:$0xff] %v34
    %v646 = vld.sshfl [vmem:[#allocation1] sm:$0xff pattern:$0x73625140]
    %v647 = vld.sshfl [vmem:[#allocation1 + $0x8] sm:$0xff pattern:$0x73625140]
    %v648 = vld.sshfl [vmem:[#allocation1 + $0x10] sm:$0xff pattern:$0x73625140]
    %v649 = vld.sshfl [vmem:[#allocation1 + $0x18] sm:$0xff pattern:$0x73625140]
    %v650 = vld.sshfl [vmem:[#allocation1 + $0x20] sm:$0xff pattern:$0x73625140]
    %v651 = vld.sshfl [vmem:[#allocation1 + $0x28] sm:$0xff pattern:$0x73625140]
    %v652 = vld.sshfl [vmem:[#allocation1 + $0x30] sm:$0xff pattern:$0x73625140]
    %v653 = vld.sshfl [vmem:[#allocation1 + $0x38] sm:$0xff pattern:$0x73625140]
    %654 = vst [vmem:[#allocation1] ss:$4 sm:$0xff] %v35
    %655 = vst [vmem:[%s644] ss:$4 sm:$0xff] %v36
    %v656 = vld.sshfl [vmem:[#allocation1] sm:$0xff pattern:$0x73625140]
    %v657 = vld.sshfl [vmem:[#allocation1 + $0x8] sm:$0xff pattern:$0x73625140]
    %v658 = vld.sshfl [vmem:[#allocation1 + $0x10] sm:$0xff pattern:$0x73625140]
    %v659 = vld.sshfl [vmem:[#allocation1 + $0x18] sm:$0xff pattern:$0x73625140]
    %v660 = vld.sshfl [vmem:[#allocation1 + $0x20] sm:$0xff pattern:$0x73625140]
    %v661 = vld.sshfl [vmem:[#allocation1 + $0x28] sm:$0xff pattern:$0x73625140]
    %v662 = vld.sshfl [vmem:[#allocation1 + $0x30] sm:$0xff pattern:$0x73625140]
    %v663 = vld.sshfl [vmem:[#allocation1 + $0x38] sm:$0xff pattern:$0x73625140]
    %664 = vst [vmem:[#allocation1] ss:$4 sm:$0xff] %v37
    %v665 = vld.sshfl [vmem:[#allocation1] sm:$0xff pattern:$0x73625140]
    %v666 = vld.sshfl [vmem:[#allocation1 + $0x8] sm:$0xff pattern:$0x73625140]
    %v667 = vld.sshfl [vmem:[#allocation1 + $0x10] sm:$0xff pattern:$0x73625140]
    %vm686 = vcmask 785408
    %v687 = vsel %vm686, %v667, 0
    %689 = vmatpush.msra.mxu0 %v68
    %690 = vmatpush.msra.mxu0 %v66
    %691 = vmatpush.msra.mxu0 %v64
    %692 = vmatpush.msra.mxu0 %v62
    %693 = vmatpush.msra.mxu0 %v60
    %694 = vmatpush.msra.mxu0 %v58
    %695 = vmatpush.msra.mxu0 %v56
    %696 = vmatpush.msra.mxu0 %v54
    %697 = vmatpush.msra.mxu0 %v52
    %698 = vmatpush.msra.mxu0 %v50
    %699 = vmatpush.msra.mxu0 %v48
    %700 = vmatpush.msra.mxu0 %v46
    %701 = vmatpush.msra.mxu0 %v44
    %702 = vmatpush.msra.mxu0 %v42
    %703 = vmatpush.msra.mxu0 %v40
    %704 = vmatpush.msra.mxu0 %v38
    %705 = vmatmul.f32.gmra.mxu0 %v646
    %v706 = vpop.f32.mrf.mxu0
    %v707 = vadd.f32 0.0, %v706
    %708 = vdwg.mxu0
    %709 = vmatpush.msra.mxu0 %v100
    %710 = vmatpush.msra.mxu0 %v98
    %711 = vmatpush.msra.mxu0 %v96
    %712 = vmatpush.msra.mxu0 %v94
    %713 = vmatpush.msra.mxu0 %v92
    %714 = vmatpush.msra.mxu0 %v90
    %715 = vmatpush.msra.mxu0 %v88
    %716 = vmatpush.msra.mxu0 %v86
    %717 = vmatpush.msra.mxu0 %v84
    %718 = vmatpush.msra.mxu0 %v82
    %719 = vmatpush.msra.mxu0 %v80
    %720 = vmatpush.msra.mxu0 %v78
    %721 = vmatpush.msra.mxu0 %v76
    %722 = vmatpush.msra.mxu0 %v74
    %723 = vmatpush.msra.mxu0 %v72
    %724 = vmatpush.msra.mxu0 %v70
    %725 = vmatmul.f32.gmra.mxu0 %v647
    %v726 = vpop.f32.mrf.mxu0
    %v727 = vadd.f32 %v707, %v726
    %728 = vdwg.mxu0
    %729 = vmatpush.msra.mxu0 %v132
    %730 = vmatpush.msra.mxu0 %v130
    %731 = vmatpush.msra.mxu0 %v128
    %732 = vmatpush.msra.mxu0 %v126
    %733 = vmatpush.msra.mxu0 %v124
    %734 = vmatpush.msra.mxu0 %v122
    %735 = vmatpush.msra.mxu0 %v120
    %736 = vmatpush.msra.mxu0 %v118
    %737 = vmatpush.msra.mxu0 %v116
    %738 = vmatpush.msra.mxu0 %v114
    %739 = vmatpush.msra.mxu0 %v112
    %740 = vmatpush.msra.mxu0 %v110
    %741 = vmatpush.msra.mxu0 %v108
    %742 = vmatpush.msra.mxu0 %v106
    %743 = vmatpush.msra.mxu0 %v104
    %744 = vmatpush.msra.mxu0 %v102
    %745 = vmatmul.f32.gmra.mxu0 %v648
    %v746 = vpop.f32.mrf.mxu0
    %v747 = vadd.f32 %v727, %v746
    %748 = vdwg.mxu0
    %749 = vmatpush.msra.mxu0 %v164
    %750 = vmatpush.msra.mxu0 %v162
    %751 = vmatpush.msra.mxu0 %v160
    %752 = vmatpush.msra.mxu0 %v158
    %753 = vmatpush.msra.mxu0 %v156
    %754 = vmatpush.msra.mxu0 %v154
    %755 = vmatpush.msra.mxu0 %v152
    %756 = vmatpush.msra.mxu0 %v150
    %757 = vmatpush.msra.mxu0 %v148
    %758 = vmatpush.msra.mxu0 %v146
    %759 = vmatpush.msra.mxu0 %v144
    %760 = vmatpush.msra.mxu0 %v142
    %761 = vmatpush.msra.mxu0 %v140
    %762 = vmatpush.msra.mxu0 %v138
    %763 = vmatpush.msra.mxu0 %v136
    %764 = vmatpush.msra.mxu0 %v134
    %765 = vmatmul.f32.gmra.mxu0 %v649
    %v766 = vpop.f32.mrf.mxu0
    %v767 = vadd.f32 %v747, %v766
    %768 = vdwg.mxu0
    %769 = vmatpush.msra.mxu0 %v196
    %770 = vmatpush.msra.mxu0 %v194
    %771 = vmatpush.msra.mxu0 %v192
    %772 = vmatpush.msra.mxu0 %v190
    %773 = vmatpush.msra.mxu0 %v188
    %774 = vmatpush.msra.mxu0 %v186
    %775 = vmatpush.msra.mxu0 %v184
    %776 = vmatpush.msra.mxu0 %v182
    %777 = vmatpush.msra.mxu0 %v180
    %778 = vmatpush.msra.mxu0 %v178
    %779 = vmatpush.msra.mxu0 %v176
    %780 = vmatpush.msra.mxu0 %v174
    %781 = vmatpush.msra.mxu0 %v172
    %782 = vmatpush.msra.mxu0 %v170
    %783 = vmatpush.msra.mxu0 %v168
    %784 = vmatpush.msra.mxu0 %v166
    %785 = vmatmul.f32.gmra.mxu0 %v650
    %v786 = vpop.f32.mrf.mxu0
    %v787 = vadd.f32 %v767, %v786
    %788 = vdwg.mxu0
    %789 = vmatpush.msra.mxu0 %v228
    %790 = vmatpush.msra.mxu0 %v226
    %791 = vmatpush.msra.mxu0 %v224
    %792 = vmatpush.msra.mxu0 %v222
    %793 = vmatpush.msra.mxu0 %v220
    %794 = vmatpush.msra.mxu0 %v218
    %795 = vmatpush.msra.mxu0 %v216
    %796 = vmatpush.msra.mxu0 %v214
    %797 = vmatpush.msra.mxu0 %v212
    %798 = vmatpush.msra.mxu0 %v210
    %799 = vmatpush.msra.mxu0 %v208
    %800 = vmatpush.msra.mxu0 %v206
    %801 = vmatpush.msra.mxu0 %v204
    %802 = vmatpush.msra.mxu0 %v202
    %803 = vmatpush.msra.mxu0 %v200
    %804 = vmatpush.msra.mxu0 %v198
    %805 = vmatmul.f32.gmra.mxu0 %v651
    %v806 = vpop.f32.mrf.mxu0
    %v807 = vadd.f32 %v787, %v806
    %808 = vdwg.mxu0
    %809 = vmatpush.msra.mxu0 %v260
    %810 = vmatpush.msra.mxu0 %v258
    %811 = vmatpush.msra.mxu0 %v256
    %812 = vmatpush.msra.mxu0 %v254
    %813 = vmatpush.msra.mxu0 %v252
    %814 = vmatpush.msra.mxu0 %v250
    %815 = vmatpush.msra.mxu0 %v248
    %816 = vmatpush.msra.mxu0 %v246
    %817 = vmatpush.msra.mxu0 %v244
    %818 = vmatpush.msra.mxu0 %v242
    %819 = vmatpush.msra.mxu0 %v240
    %820 = vmatpush.msra.mxu0 %v238
    %821 = vmatpush.msra.mxu0 %v236
    %822 = vmatpush.msra.mxu0 %v234
    %823 = vmatpush.msra.mxu0 %v232
    %824 = vmatpush.msra.mxu0 %v230
    %825 = vmatmul.f32.gmra.mxu0 %v652
    %v826 = vpop.f32.mrf.mxu0
    %v827 = vadd.f32 %v807, %v826
    %828 = vdwg.mxu0
    %829 = vmatpush.msra.mxu0 %v292
    %830 = vmatpush.msra.mxu0 %v290
    %831 = vmatpush.msra.mxu0 %v288
    %832 = vmatpush.msra.mxu0 %v286
    %833 = vmatpush.msra.mxu0 %v284
    %834 = vmatpush.msra.mxu0 %v282
    %835 = vmatpush.msra.mxu0 %v280
    %836 = vmatpush.msra.mxu0 %v278
    %837 = vmatpush.msra.mxu0 %v276
    %838 = vmatpush.msra.mxu0 %v274
    %839 = vmatpush.msra.mxu0 %v272
    %840 = vmatpush.msra.mxu0 %v270
    %841 = vmatpush.msra.mxu0 %v268
    %842 = vmatpush.msra.mxu0 %v266
    %843 = vmatpush.msra.mxu0 %v264
    %844 = vmatpush.msra.mxu0 %v262
    %845 = vmatmul.f32.gmra.mxu0 %v653
    %v846 = vpop.f32.mrf.mxu0
    %v847 = vadd.f32 %v827, %v846
    %848 = vdwg.mxu0
    %849 = vmatpush.msra.mxu0 %v324
    %850 = vmatpush.msra.mxu0 %v322
    %851 = vmatpush.msra.mxu0 %v320
    %852 = vmatpush.msra.mxu0 %v318
    %853 = vmatpush.msra.mxu0 %v316
    %854 = vmatpush.msra.mxu0 %v314
    %855 = vmatpush.msra.mxu0 %v312
    %856 = vmatpush.msra.mxu0 %v310
    %857 = vmatpush.msra.mxu0 %v308
    %858 = vmatpush.msra.mxu0 %v306
    %859 = vmatpush.msra.mxu0 %v304
    %860 = vmatpush.msra.mxu0 %v302
    %861 = vmatpush.msra.mxu0 %v300
    %862 = vmatpush.msra.mxu0 %v298
    %863 = vmatpush.msra.mxu0 %v296
    %864 = vmatpush.msra.mxu0 %v294
    %865 = vmatmul.f32.gmra.mxu0 %v656
    %v866 = vpop.f32.mrf.mxu0
    %v867 = vadd.f32 %v847, %v866
    %868 = vdwg.mxu0
    %869 = vmatpush.msra.mxu0 %v356
    %870 = vmatpush.msra.mxu0 %v354
    %871 = vmatpush.msra.mxu0 %v352
    %872 = vmatpush.msra.mxu0 %v350
    %873 = vmatpush.msra.mxu0 %v348
    %874 = vmatpush.msra.mxu0 %v346
    %875 = vmatpush.msra.mxu0 %v344
    %876 = vmatpush.msra.mxu0 %v342
    %877 = vmatpush.msra.mxu0 %v340
    %878 = vmatpush.msra.mxu0 %v338
    %879 = vmatpush.msra.mxu0 %v336
    %880 = vmatpush.msra.mxu0 %v334
    %881 = vmatpush.msra.mxu0 %v332
    %882 = vmatpush.msra.mxu0 %v330
    %883 = vmatpush.msra.mxu0 %v328
    %884 = vmatpush.msra.mxu0 %v326
    %885 = vmatmul.f32.gmra.mxu0 %v657
    %v886 = vpop.f32.mrf.mxu0
    %v887 = vadd.f32 %v867, %v886
    %888 = vdwg.mxu0
    %889 = vmatpush.msra.mxu0 %v388
    %890 = vmatpush.msra.mxu0 %v386
    %891 = vmatpush.msra.mxu0 %v384
    %892 = vmatpush.msra.mxu0 %v382
    %893 = vmatpush.msra.mxu0 %v380
    %894 = vmatpush.msra.mxu0 %v378
    %895 = vmatpush.msra.mxu0 %v376
    %896 = vmatpush.msra.mxu0 %v374
    %897 = vmatpush.msra.mxu0 %v372
    %898 = vmatpush.msra.mxu0 %v370
    %899 = vmatpush.msra.mxu0 %v368
    %900 = vmatpush.msra.mxu0 %v366
    %901 = vmatpush.msra.mxu0 %v364
    %902 = vmatpush.msra.mxu0 %v362
    %903 = vmatpush.msra.mxu0 %v360
    %904 = vmatpush.msra.mxu0 %v358
    %905 = vmatmul.f32.gmra.mxu0 %v658
    %v906 = vpop.f32.mrf.mxu0
    %v907 = vadd.f32 %v887, %v906
    %908 = vdwg.mxu0
    %909 = vmatpush.msra.mxu0 %v420
    %910 = vmatpush.msra.mxu0 %v418
    %911 = vmatpush.msra.mxu0 %v416
    %912 = vmatpush.msra.mxu0 %v414
    %913 = vmatpush.msra.mxu0 %v412
    %914 = vmatpush.msra.mxu0 %v410
    %915 = vmatpush.msra.mxu0 %v408
    %916 = vmatpush.msra.mxu0 %v406
    %917 = vmatpush.msra.mxu0 %v404
    %918 = vmatpush.msra.mxu0 %v402
    %919 = vmatpush.msra.mxu0 %v400
    %920 = vmatpush.msra.mxu0 %v398
    %921 = vmatpush.msra.mxu0 %v396
    %922 = vmatpush.msra.mxu0 %v394
    %923 = vmatpush.msra.mxu0 %v392
    %924 = vmatpush.msra.mxu0 %v390
    %925 = vmatmul.f32.gmra.mxu0 %v659
    %v926 = vpop.f32.mrf.mxu0
    %v927 = vadd.f32 %v907, %v926
    %928 = vdwg.mxu0
    %929 = vmatpush.msra.mxu0 %v452
    %930 = vmatpush.msra.mxu0 %v450
    %931 = vmatpush.msra.mxu0 %v448
    %932 = vmatpush.msra.mxu0 %v446
    %933 = vmatpush.msra.mxu0 %v444
    %934 = vmatpush.msra.mxu0 %v442
    %935 = vmatpush.msra.mxu0 %v440
    %936 = vmatpush.msra.mxu0 %v438
    %937 = vmatpush.msra.mxu0 %v436
    %938 = vmatpush.msra.mxu0 %v434
    %939 = vmatpush.msra.mxu0 %v432
    %940 = vmatpush.msra.mxu0 %v430
    %941 = vmatpush.msra.mxu0 %v428
    %942 = vmatpush.msra.mxu0 %v426
    %943 = vmatpush.msra.mxu0 %v424
    %944 = vmatpush.msra.mxu0 %v422
    %945 = vmatmul.f32.gmra.mxu0 %v660
    %v946 = vpop.f32.mrf.mxu0
    %v947 = vadd.f32 %v927, %v946
    %948 = vdwg.mxu0
    %949 = vmatpush.msra.mxu0 %v484
    %950 = vmatpush.msra.mxu0 %v482
    %951 = vmatpush.msra.mxu0 %v480
    %952 = vmatpush.msra.mxu0 %v478
    %953 = vmatpush.msra.mxu0 %v476
    %954 = vmatpush.msra.mxu0 %v474
    %955 = vmatpush.msra.mxu0 %v472
    %956 = vmatpush.msra.mxu0 %v470
    %957 = vmatpush.msra.mxu0 %v468
    %958 = vmatpush.msra.mxu0 %v466
    %959 = vmatpush.msra.mxu0 %v464
    %960 = vmatpush.msra.mxu0 %v462
    %961 = vmatpush.msra.mxu0 %v460
    %962 = vmatpush.msra.mxu0 %v458
    %963 = vmatpush.msra.mxu0 %v456
    %964 = vmatpush.msra.mxu0 %v454
    %965 = vmatmul.f32.gmra.mxu0 %v661
    %v966 = vpop.f32.mrf.mxu0
    %v967 = vadd.f32 %v947, %v966
    %968 = vdwg.mxu0
    %969 = vmatpush.msra.mxu0 %v516
    %970 = vmatpush.msra.mxu0 %v514
    %971 = vmatpush.msra.mxu0 %v512
    %972 = vmatpush.msra.mxu0 %v510
    %973 = vmatpush.msra.mxu0 %v508
    %974 = vmatpush.msra.mxu0 %v506
    %975 = vmatpush.msra.mxu0 %v504
    %976 = vmatpush.msra.mxu0 %v502
    %977 = vmatpush.msra.mxu0 %v500
    %978 = vmatpush.msra.mxu0 %v498
    %979 = vmatpush.msra.mxu0 %v496
    %980 = vmatpush.msra.mxu0 %v494
    %981 = vmatpush.msra.mxu0 %v492
    %982 = vmatpush.msra.mxu0 %v490
    %983 = vmatpush.msra.mxu0 %v488
    %984 = vmatpush.msra.mxu0 %v486
    %985 = vmatmul.f32.gmra.mxu0 %v662
    %v986 = vpop.f32.mrf.mxu0
    %v987 = vadd.f32 %v967, %v986
    %988 = vdwg.mxu0
    %989 = vmatpush.msra.mxu0 %v548
    %990 = vmatpush.msra.mxu0 %v546
    %991 = vmatpush.msra.mxu0 %v544
    %992 = vmatpush.msra.mxu0 %v542
    %993 = vmatpush.msra.mxu0 %v540
    %994 = vmatpush.msra.mxu0 %v538
    %995 = vmatpush.msra.mxu0 %v536
    %996 = vmatpush.msra.mxu0 %v534
    %997 = vmatpush.msra.mxu0 %v532
    %998 = vmatpush.msra.mxu0 %v530
    %999 = vmatpush.msra.mxu0 %v528
    %1000 = vmatpush.msra.mxu0 %v526
    %1001 = vmatpush.msra.mxu0 %v524
    %1002 = vmatpush.msra.mxu0 %v522
    %1003 = vmatpush.msra.mxu0 %v520
    %1004 = vmatpush.msra.mxu0 %v518
    %1005 = vmatmul.f32.gmra.mxu0 %v663
    %v1006 = vpop.f32.mrf.mxu0
    %v1007 = vadd.f32 %v987, %v1006
    %1008 = vdwg.mxu0
    %1009 = vmatpush.msra.mxu0 %v580
    %1010 = vmatpush.msra.mxu0 %v578
    %1011 = vmatpush.msra.mxu0 %v576
    %1012 = vmatpush.msra.mxu0 %v574
    %1013 = vmatpush.msra.mxu0 %v572
    %1014 = vmatpush.msra.mxu0 %v570
    %1015 = vmatpush.msra.mxu0 %v568
    %1016 = vmatpush.msra.mxu0 %v566
    %1017 = vmatpush.msra.mxu0 %v564
    %1018 = vmatpush.msra.mxu0 %v562
    %1019 = vmatpush.msra.mxu0 %v560
    %1020 = vmatpush.msra.mxu0 %v558
    %1021 = vmatpush.msra.mxu0 %v556
    %1022 = vmatpush.msra.mxu0 %v554
    %1023 = vmatpush.msra.mxu0 %v552
    %1024 = vmatpush.msra.mxu0 %v550
    %1025 = vmatmul.f32.gmra.mxu0 %v665
    %v1026 = vpop.f32.mrf.mxu0
    %v1027 = vadd.f32 %v1007, %v1026
    %1028 = vdwg.mxu0
    %1029 = vmatpush.msra.mxu0 %v612
    %1030 = vmatpush.msra.mxu0 %v610
    %1031 = vmatpush.msra.mxu0 %v608
    %1032 = vmatpush.msra.mxu0 %v606
    %1033 = vmatpush.msra.mxu0 %v604
    %1034 = vmatpush.msra.mxu0 %v602
    %1035 = vmatpush.msra.mxu0 %v600
    %1036 = vmatpush.msra.mxu0 %v598
    %1037 = vmatpush.msra.mxu0 %v596
    %1038 = vmatpush.msra.mxu0 %v594
    %1039 = vmatpush.msra.mxu0 %v592
    %1040 = vmatpush.msra.mxu0 %v590
    %1041 = vmatpush.msra.mxu0 %v588
    %1042 = vmatpush.msra.mxu0 %v586
    %1043 = vmatpush.msra.mxu0 %v584
    %1044 = vmatpush.msra.mxu0 %v582
    %1045 = vmatmul.f32.gmra.mxu0 %v666
    %v1046 = vpop.f32.mrf.mxu0
    %v1047 = vadd.f32 %v1027, %v1046
    %1048 = vdwg.mxu0
    %1049 = vmatpush.msra.mxu0 0.0
    %1050 = vmatpush.msra.mxu0 0.0
    %1051 = vmatpush.msra.mxu0 0.0
    %1052 = vmatpush.msra.mxu0 0.0
    %1053 = vmatpush.msra.mxu0 %v636
    %1054 = vmatpush.msra.mxu0 %v634
    %1055 = vmatpush.msra.mxu0 %v632
    %1056 = vmatpush.msra.mxu0 %v630
    %1057 = vmatpush.msra.mxu0 %v628
    %1058 = vmatpush.msra.mxu0 %v626
    %1059 = vmatpush.msra.mxu0 %v624
    %1060 = vmatpush.msra.mxu0 %v622
    %1061 = vmatpush.msra.mxu0 %v620
    %1062 = vmatpush.msra.mxu0 %v618
    %1063 = vmatpush.msra.mxu0 %v616
    %1064 = vmatpush.msra.mxu0 %v614
    %1065 = vmatmul.f32.gmra.mxu0 %v687
    %v1066 = vpop.f32.mrf.mxu0
    %v1067 = vadd.f32 %v1047, %v1066
    %1068 = vdwg.mxu0
    %1069 = vmatpush.msra.mxu0 %v69
    %1070 = vmatpush.msra.mxu0 %v67
    %1071 = vmatpush.msra.mxu0 %v65
    %1072 = vmatpush.msra.mxu0 %v63
    %1073 = vmatpush.msra.mxu0 %v61
    %1074 = vmatpush.msra.mxu0 %v59
    %1075 = vmatpush.msra.mxu0 %v57
    %1076 = vmatpush.msra.mxu0 %v55
    %1077 = vmatpush.msra.mxu0 %v53
    %1078 = vmatpush.msra.mxu0 %v51
    %1079 = vmatpush.msra.mxu0 %v49
    %1080 = vmatpush.msra.mxu0 %v47
    %1081 = vmatpush.msra.mxu0 %v45
    %1082 = vmatpush.msra.mxu0 %v43
    %1083 = vmatpush.msra.mxu0 %v41
    %1084 = vmatpush.msra.mxu0 %v39
    %1085 = vmatmul.f32.gmra.mxu0 %v646
    %v1086 = vpop.f32.mrf.mxu0
    %v1087 = vadd.f32 0.0, %v1086
    %1088 = vdwg.mxu0
    %1089 = vmatpush.msra.mxu0 %v101
    %1090 = vmatpush.msra.mxu0 %v99
    %1091 = vmatpush.msra.mxu0 %v97
    %1092 = vmatpush.msra.mxu0 %v95
    %1093 = vmatpush.msra.mxu0 %v93
    %1094 = vmatpush.msra.mxu0 %v91
    %1095 = vmatpush.msra.mxu0 %v89
    %1096 = vmatpush.msra.mxu0 %v87
    %1097 = vmatpush.msra.mxu0 %v85
    %1098 = vmatpush.msra.mxu0 %v83
    %1099 = vmatpush.msra.mxu0 %v81
    %1100 = vmatpush.msra.mxu0 %v79
    %1101 = vmatpush.msra.mxu0 %v77
    %1102 = vmatpush.msra.mxu0 %v75
    %1103 = vmatpush.msra.mxu0 %v73
    %1104 = vmatpush.msra.mxu0 %v71
    %1105 = vmatmul.f32.gmra.mxu0 %v647
    %v1106 = vpop.f32.mrf.mxu0
    %v1107 = vadd.f32 %v1087, %v1106
    %1108 = vdwg.mxu0
    %1109 = vmatpush.msra.mxu0 %v133
    %1110 = vmatpush.msra.mxu0 %v131
    %1111 = vmatpush.msra.mxu0 %v129
    %1112 = vmatpush.msra.mxu0 %v127
    %1113 = vmatpush.msra.mxu0 %v125
    %1114 = vmatpush.msra.mxu0 %v123
    %1115 = vmatpush.msra.mxu0 %v121
    %1116 = vmatpush.msra.mxu0 %v119
    %1117 = vmatpush.msra.mxu0 %v117
    %1118 = vmatpush.msra.mxu0 %v115
    %1119 = vmatpush.msra.mxu0 %v113
    %1120 = vmatpush.msra.mxu0 %v111
    %1121 = vmatpush.msra.mxu0 %v109
    %1122 = vmatpush.msra.mxu0 %v107
    %1123 = vmatpush.msra.mxu0 %v105
    %1124 = vmatpush.msra.mxu0 %v103
    %1125 = vmatmul.f32.gmra.mxu0 %v648
    %v1126 = vpop.f32.mrf.mxu0
    %v1127 = vadd.f32 %v1107, %v1126
    %1128 = vdwg.mxu0
    %1129 = vmatpush.msra.mxu0 %v165
    %1130 = vmatpush.msra.mxu0 %v163
    %1131 = vmatpush.msra.mxu0 %v161
    %1132 = vmatpush.msra.mxu0 %v159
    %1133 = vmatpush.msra.mxu0 %v157
    %1134 = vmatpush.msra.mxu0 %v155
    %1135 = vmatpush.msra.mxu0 %v153
    %1136 = vmatpush.msra.mxu0 %v151
    %1137 = vmatpush.msra.mxu0 %v149
    %1138 = vmatpush.msra.mxu0 %v147
    %1139 = vmatpush.msra.mxu0 %v145
    %1140 = vmatpush.msra.mxu0 %v143
    %1141 = vmatpush.msra.mxu0 %v141
    %1142 = vmatpush.msra.mxu0 %v139
    %1143 = vmatpush.msra.mxu0 %v137
    %1144 = vmatpush.msra.mxu0 %v135
    %1145 = vmatmul.f32.gmra.mxu0 %v649
    %v1146 = vpop.f32.mrf.mxu0
    %v1147 = vadd.f32 %v1127, %v1146
    %1148 = vdwg.mxu0
    %1149 = vmatpush.msra.mxu0 %v197
    %1150 = vmatpush.msra.mxu0 %v195
    %1151 = vmatpush.msra.mxu0 %v193
    %1152 = vmatpush.msra.mxu0 %v191
    %1153 = vmatpush.msra.mxu0 %v189
    %1154 = vmatpush.msra.mxu0 %v187
    %1155 = vmatpush.msra.mxu0 %v185
    %1156 = vmatpush.msra.mxu0 %v183
    %1157 = vmatpush.msra.mxu0 %v181
    %1158 = vmatpush.msra.mxu0 %v179
    %1159 = vmatpush.msra.mxu0 %v177
    %1160 = vmatpush.msra.mxu0 %v175
    %1161 = vmatpush.msra.mxu0 %v173
    %1162 = vmatpush.msra.mxu0 %v171
    %1163 = vmatpush.msra.mxu0 %v169
    %1164 = vmatpush.msra.mxu0 %v167
    %1165 = vmatmul.f32.gmra.mxu0 %v650
    %v1166 = vpop.f32.mrf.mxu0
    %v1167 = vadd.f32 %v1147, %v1166
    %1168 = vdwg.mxu0
    %1169 = vmatpush.msra.mxu0 %v229
    %1170 = vmatpush.msra.mxu0 %v227
    %1171 = vmatpush.msra.mxu0 %v225
    %1172 = vmatpush.msra.mxu0 %v223
    %1173 = vmatpush.msra.mxu0 %v221
    %1174 = vmatpush.msra.mxu0 %v219
    %1175 = vmatpush.msra.mxu0 %v217
    %1176 = vmatpush.msra.mxu0 %v215
    %1177 = vmatpush.msra.mxu0 %v213
    %1178 = vmatpush.msra.mxu0 %v211
    %1179 = vmatpush.msra.mxu0 %v209
    %1180 = vmatpush.msra.mxu0 %v207
    %1181 = vmatpush.msra.mxu0 %v205
    %1182 = vmatpush.msra.mxu0 %v203
    %1183 = vmatpush.msra.mxu0 %v201
    %1184 = vmatpush.msra.mxu0 %v199
    %1185 = vmatmul.f32.gmra.mxu0 %v651
    %v1186 = vpop.f32.mrf.mxu0
    %v1187 = vadd.f32 %v1167, %v1186
    %1188 = vdwg.mxu0
    %1189 = vmatpush.msra.mxu0 %v261
    %1190 = vmatpush.msra.mxu0 %v259
    %1191 = vmatpush.msra.mxu0 %v257
    %1192 = vmatpush.msra.mxu0 %v255
    %1193 = vmatpush.msra.mxu0 %v253
    %1194 = vmatpush.msra.mxu0 %v251
    %1195 = vmatpush.msra.mxu0 %v249
    %1196 = vmatpush.msra.mxu0 %v247
    %1197 = vmatpush.msra.mxu0 %v245
    %1198 = vmatpush.msra.mxu0 %v243
    %1199 = vmatpush.msra.mxu0 %v241
    %1200 = vmatpush.msra.mxu0 %v239
    %1201 = vmatpush.msra.mxu0 %v237
    %1202 = vmatpush.msra.mxu0 %v235
    %1203 = vmatpush.msra.mxu0 %v233
    %1204 = vmatpush.msra.mxu0 %v231
    %1205 = vmatmul.f32.gmra.mxu0 %v652
    %v1206 = vpop.f32.mrf.mxu0
    %v1207 = vadd.f32 %v1187, %v1206
    %1208 = vdwg.mxu0
    %1209 = vmatpush.msra.mxu0 %v293
    %1210 = vmatpush.msra.mxu0 %v291
    %1211 = vmatpush.msra.mxu0 %v289
    %1212 = vmatpush.msra.mxu0 %v287
    %1213 = vmatpush.msra.mxu0 %v285
    %1214 = vmatpush.msra.mxu0 %v283
    %1215 = vmatpush.msra.mxu0 %v281
    %1216 = vmatpush.msra.mxu0 %v279
    %1217 = vmatpush.msra.mxu0 %v277
    %1218 = vmatpush.msra.mxu0 %v275
    %1219 = vmatpush.msra.mxu0 %v273
    %1220 = vmatpush.msra.mxu0 %v271
    %1221 = vmatpush.msra.mxu0 %v269
    %1222 = vmatpush.msra.mxu0 %v267
    %1223 = vmatpush.msra.mxu0 %v265
    %1224 = vmatpush.msra.mxu0 %v263
    %1225 = vmatmul.f32.gmra.mxu0 %v653
    %v1226 = vpop.f32.mrf.mxu0
    %v1227 = vadd.f32 %v1207, %v1226
    %1228 = vdwg.mxu0
    %1229 = vmatpush.msra.mxu0 %v325
    %1230 = vmatpush.msra.mxu0 %v323
    %1231 = vmatpush.msra.mxu0 %v321
    %1232 = vmatpush.msra.mxu0 %v319
    %1233 = vmatpush.msra.mxu0 %v317
    %1234 = vmatpush.msra.mxu0 %v315
    %1235 = vmatpush.msra.mxu0 %v313
    %1236 = vmatpush.msra.mxu0 %v311
    %1237 = vmatpush.msra.mxu0 %v309
    %1238 = vmatpush.msra.mxu0 %v307
    %1239 = vmatpush.msra.mxu0 %v305
    %1240 = vmatpush.msra.mxu0 %v303
    %1241 = vmatpush.msra.mxu0 %v301
    %1242 = vmatpush.msra.mxu0 %v299
    %1243 = vmatpush.msra.mxu0 %v297
    %1244 = vmatpush.msra.mxu0 %v295
    %1245 = vmatmul.f32.gmra.mxu0 %v656
    %v1246 = vpop.f32.mrf.mxu0
    %v1247 = vadd.f32 %v1227, %v1246
    %1248 = vdwg.mxu0
    %1249 = vmatpush.msra.mxu0 %v357
    %1250 = vmatpush.msra.mxu0 %v355
    %1251 = vmatpush.msra.mxu0 %v353
    %1252 = vmatpush.msra.mxu0 %v351
    %1253 = vmatpush.msra.mxu0 %v349
    %1254 = vmatpush.msra.mxu0 %v347
    %1255 = vmatpush.msra.mxu0 %v345
    %1256 = vmatpush.msra.mxu0 %v343
    %1257 = vmatpush.msra.mxu0 %v341
    %1258 = vmatpush.msra.mxu0 %v339
    %1259 = vmatpush.msra.mxu0 %v337
    %1260 = vmatpush.msra.mxu0 %v335
    %1261 = vmatpush.msra.mxu0 %v333
    %1262 = vmatpush.msra.mxu0 %v331
    %1263 = vmatpush.msra.mxu0 %v329
    %1264 = vmatpush.msra.mxu0 %v327
    %1265 = vmatmul.f32.gmra.mxu0 %v657
    %v1266 = vpop.f32.mrf.mxu0
    %v1267 = vadd.f32 %v1247, %v1266
    %1268 = vdwg.mxu0
    %1269 = vmatpush.msra.mxu0 %v389
    %1270 = vmatpush.msra.mxu0 %v387
    %1271 = vmatpush.msra.mxu0 %v385
    %1272 = vmatpush.msra.mxu0 %v383
    %1273 = vmatpush.msra.mxu0 %v381
    %1274 = vmatpush.msra.mxu0 %v379
    %1275 = vmatpush.msra.mxu0 %v377
    %1276 = vmatpush.msra.mxu0 %v375
    %1277 = vmatpush.msra.mxu0 %v373
    %1278 = vmatpush.msra.mxu0 %v371
    %1279 = vmatpush.msra.mxu0 %v369
    %1280 = vmatpush.msra.mxu0 %v367
    %1281 = vmatpush.msra.mxu0 %v365
    %1282 = vmatpush.msra.mxu0 %v363
    %1283 = vmatpush.msra.mxu0 %v361
    %1284 = vmatpush.msra.mxu0 %v359
    %1285 = vmatmul.f32.gmra.mxu0 %v658
    %v1286 = vpop.f32.mrf.mxu0
    %v1287 = vadd.f32 %v1267, %v1286
    %1288 = vdwg.mxu0
    %1289 = vmatpush.msra.mxu0 %v421
    %1290 = vmatpush.msra.mxu0 %v419
    %1291 = vmatpush.msra.mxu0 %v417
    %1292 = vmatpush.msra.mxu0 %v415
    %1293 = vmatpush.msra.mxu0 %v413
    %1294 = vmatpush.msra.mxu0 %v411
    %1295 = vmatpush.msra.mxu0 %v409
    %1296 = vmatpush.msra.mxu0 %v407
    %1297 = vmatpush.msra.mxu0 %v405
    %1298 = vmatpush.msra.mxu0 %v403
    %1299 = vmatpush.msra.mxu0 %v401
    %1300 = vmatpush.msra.mxu0 %v399
    %1301 = vmatpush.msra.mxu0 %v397
    %1302 = vmatpush.msra.mxu0 %v395
    %1303 = vmatpush.msra.mxu0 %v393
    %1304 = vmatpush.msra.mxu0 %v391
    %1305 = vmatmul.f32.gmra.mxu0 %v659
    %v1306 = vpop.f32.mrf.mxu0
    %v1307 = vadd.f32 %v1287, %v1306
    %1308 = vdwg.mxu0
    %1309 = vmatpush.msra.mxu0 %v453
    %1310 = vmatpush.msra.mxu0 %v451
    %1311 = vmatpush.msra.mxu0 %v449
    %1312 = vmatpush.msra.mxu0 %v447
    %1313 = vmatpush.msra.mxu0 %v445
    %1314 = vmatpush.msra.mxu0 %v443
    %1315 = vmatpush.msra.mxu0 %v441
    %1316 = vmatpush.msra.mxu0 %v439
    %1317 = vmatpush.msra.mxu0 %v437
    %1318 = vmatpush.msra.mxu0 %v435
    %1319 = vmatpush.msra.mxu0 %v433
    %1320 = vmatpush.msra.mxu0 %v431
    %1321 = vmatpush.msra.mxu0 %v429
    %1322 = vmatpush.msra.mxu0 %v427
    %1323 = vmatpush.msra.mxu0 %v425
    %1324 = vmatpush.msra.mxu0 %v423
    %1325 = vmatmul.f32.gmra.mxu0 %v660
    %v1326 = vpop.f32.mrf.mxu0
    %v1327 = vadd.f32 %v1307, %v1326
    %1328 = vdwg.mxu0
    %1329 = vmatpush.msra.mxu0 %v485
    %1330 = vmatpush.msra.mxu0 %v483
    %1331 = vmatpush.msra.mxu0 %v481
    %1332 = vmatpush.msra.mxu0 %v479
    %1333 = vmatpush.msra.mxu0 %v477
    %1334 = vmatpush.msra.mxu0 %v475
    %1335 = vmatpush.msra.mxu0 %v473
    %1336 = vmatpush.msra.mxu0 %v471
    %1337 = vmatpush.msra.mxu0 %v469
    %1338 = vmatpush.msra.mxu0 %v467
    %1339 = vmatpush.msra.mxu0 %v465
    %1340 = vmatpush.msra.mxu0 %v463
    %1341 = vmatpush.msra.mxu0 %v461
    %1342 = vmatpush.msra.mxu0 %v459
    %1343 = vmatpush.msra.mxu0 %v457
    %1344 = vmatpush.msra.mxu0 %v455
    %1345 = vmatmul.f32.gmra.mxu0 %v661
    %v1346 = vpop.f32.mrf.mxu0
    %v1347 = vadd.f32 %v1327, %v1346
    %1348 = vdwg.mxu0
    %1349 = vmatpush.msra.mxu0 %v517
    %1350 = vmatpush.msra.mxu0 %v515
    %1351 = vmatpush.msra.mxu0 %v513
    %1352 = vmatpush.msra.mxu0 %v511
    %1353 = vmatpush.msra.mxu0 %v509
    %1354 = vmatpush.msra.mxu0 %v507
    %1355 = vmatpush.msra.mxu0 %v505
    %1356 = vmatpush.msra.mxu0 %v503
    %1357 = vmatpush.msra.mxu0 %v501
    %1358 = vmatpush.msra.mxu0 %v499
    %1359 = vmatpush.msra.mxu0 %v497
    %1360 = vmatpush.msra.mxu0 %v495
    %1361 = vmatpush.msra.mxu0 %v493
    %1362 = vmatpush.msra.mxu0 %v491
    %1363 = vmatpush.msra.mxu0 %v489
    %1364 = vmatpush.msra.mxu0 %v487
    %1365 = vmatmul.f32.gmra.mxu0 %v662
    %v1366 = vpop.f32.mrf.mxu0
    %v1367 = vadd.f32 %v1347, %v1366
    %1368 = vdwg.mxu0
    %1369 = vmatpush.msra.mxu0 %v549
    %1370 = vmatpush.msra.mxu0 %v547
    %1371 = vmatpush.msra.mxu0 %v545
    %1372 = vmatpush.msra.mxu0 %v543
    %1373 = vmatpush.msra.mxu0 %v541
    %1374 = vmatpush.msra.mxu0 %v539
    %1375 = vmatpush.msra.mxu0 %v537
    %1376 = vmatpush.msra.mxu0 %v535
    %1377 = vmatpush.msra.mxu0 %v533
    %1378 = vmatpush.msra.mxu0 %v531
    %1379 = vmatpush.msra.mxu0 %v529
    %1380 = vmatpush.msra.mxu0 %v527
    %1381 = vmatpush.msra.mxu0 %v525
    %1382 = vmatpush.msra.mxu0 %v523
    %1383 = vmatpush.msra.mxu0 %v521
    %1384 = vmatpush.msra.mxu0 %v519
    %1385 = vmatmul.f32.gmra.mxu0 %v663
    %v1386 = vpop.f32.mrf.mxu0
    %v1387 = vadd.f32 %v1367, %v1386
    %1388 = vdwg.mxu0
    %1389 = vmatpush.msra.mxu0 %v581
    %1390 = vmatpush.msra.mxu0 %v579
    %1391 = vmatpush.msra.mxu0 %v577
    %1392 = vmatpush.msra.mxu0 %v575
    %1393 = vmatpush.msra.mxu0 %v573
    %1394 = vmatpush.msra.mxu0 %v571
    %1395 = vmatpush.msra.mxu0 %v569
    %1396 = vmatpush.msra.mxu0 %v567
    %1397 = vmatpush.msra.mxu0 %v565
    %1398 = vmatpush.msra.mxu0 %v563
    %1399 = vmatpush.msra.mxu0 %v561
    %1400 = vmatpush.msra.mxu0 %v559
    %1401 = vmatpush.msra.mxu0 %v557
    %1402 = vmatpush.msra.mxu0 %v555
    %1403 = vmatpush.msra.mxu0 %v553
    %1404 = vmatpush.msra.mxu0 %v551
    %1405 = vmatmul.f32.gmra.mxu0 %v665
    %v1406 = vpop.f32.mrf.mxu0
    %v1407 = vadd.f32 %v1387, %v1406
    %1408 = vdwg.mxu0
    %1409 = vmatpush.msra.mxu0 %v613
    %1410 = vmatpush.msra.mxu0 %v611
    %1411 = vmatpush.msra.mxu0 %v609
    %1412 = vmatpush.msra.mxu0 %v607
    %1413 = vmatpush.msra.mxu0 %v605
    %1414 = vmatpush.msra.mxu0 %v603
    %1415 = vmatpush.msra.mxu0 %v601
    %1416 = vmatpush.msra.mxu0 %v599
    %1417 = vmatpush.msra.mxu0 %v597
    %1418 = vmatpush.msra.mxu0 %v595
    %1419 = vmatpush.msra.mxu0 %v593
    %1420 = vmatpush.msra.mxu0 %v591
    %1421 = vmatpush.msra.mxu0 %v589
    %1422 = vmatpush.msra.mxu0 %v587
    %1423 = vmatpush.msra.mxu0 %v585
    %1424 = vmatpush.msra.mxu0 %v583
    %1425 = vmatmul.f32.gmra.mxu0 %v666
    %v1426 = vpop.f32.mrf.mxu0
    %v1427 = vadd.f32 %v1407, %v1426
    %1428 = vdwg.mxu0
    %1429 = vmatpush.msra.mxu0 0.0
    %1430 = vmatpush.msra.mxu0 0.0
    %1431 = vmatpush.msra.mxu0 0.0
    %1432 = vmatpush.msra.mxu0 0.0
    %1433 = vmatpush.msra.mxu0 %v637
    %1434 = vmatpush.msra.mxu0 %v635
    %1435 = vmatpush.msra.mxu0 %v633
    %1436 = vmatpush.msra.mxu0 %v631
    %1437 = vmatpush.msra.mxu0 %v629
    %1438 = vmatpush.msra.mxu0 %v627
    %1439 = vmatpush.msra.mxu0 %v625
    %1440 = vmatpush.msra.mxu0 %v623
    %1441 = vmatpush.msra.mxu0 %v621
    %1442 = vmatpush.msra.mxu0 %v619
    %1443 = vmatpush.msra.mxu0 %v617
    %1444 = vmatpush.msra.mxu0 %v615
    %1445 = vmatmul.f32.gmra.mxu0 %v687
    %v1446 = vpop.f32.mrf.mxu0
    %v1447 = vadd.f32 %v1427, %v1446
    %1448 = vdwg.mxu0
    %s1449 = scalar_lea.vmem %s0, 38
    %v1450 = vld [vmem:[%s1449] sm:$0xff]
    %v1451 = vld [vmem:[%s1449 + $0x8] sm:$0xff]
    %v1452 = vld [vmem:[%s1449 + $0x10] sm:$0xff]
    %v1453 = vld [vmem:[%s1449 + $0x18] sm:$0xff]
    %v1454 = vld [vmem:[%s1449 + $0x20] sm:$0x3f]
    %1460 = vst [vmem:[#allocation1] ss:$4 sm:$0xff] %v1450
    %s1461 = scalar_lea.vmem [#allocation1], 32
    %1462 = vst [vmem:[%s1461] ss:$4 sm:$0xff] %v1451
    %v1463 = vld.sshfl [vmem:[#allocation1] sm:$0xff pattern:$0x73625140]
    %v1464 = vld.sshfl [vmem:[#allocation1 + $0x8] sm:$0xff pattern:$0x73625140]
    %v1465 = vld.sshfl [vmem:[#allocation1 + $0x10] sm:$0xff pattern:$0x73625140]
    %v1466 = vld.sshfl [vmem:[#allocation1 + $0x18] sm:$0xff pattern:$0x73625140]
    %v1467 = vld.sshfl [vmem:[#allocation1 + $0x20] sm:$0xff pattern:$0x73625140]
    %v1468 = vld.sshfl [vmem:[#allocation1 + $0x28] sm:$0xff pattern:$0x73625140]
    %v1469 = vld.sshfl [vmem:[#allocation1 + $0x30] sm:$0xff pattern:$0x73625140]
    %v1470 = vld.sshfl [vmem:[#allocation1 + $0x38] sm:$0xff pattern:$0x73625140]
    %1471 = vst [vmem:[#allocation1] ss:$4 sm:$0xff] %v1452
    %1472 = vst [vmem:[%s1461] ss:$4 sm:$0xff] %v1453
    %v1473 = vld.sshfl [vmem:[#allocation1] sm:$0xff pattern:$0x73625140]
    %v1474 = vld.sshfl [vmem:[#allocation1 + $0x8] sm:$0xff pattern:$0x73625140]
    %v1475 = vld.sshfl [vmem:[#allocation1 + $0x10] sm:$0xff pattern:$0x73625140]
    %v1476 = vld.sshfl [vmem:[#allocation1 + $0x18] sm:$0xff pattern:$0x73625140]
    %v1477 = vld.sshfl [vmem:[#allocation1 + $0x20] sm:$0xff pattern:$0x73625140]
    %v1478 = vld.sshfl [vmem:[#allocation1 + $0x28] sm:$0xff pattern:$0x73625140]
    %v1479 = vld.sshfl [vmem:[#allocation1 + $0x30] sm:$0xff pattern:$0x73625140]
    %v1480 = vld.sshfl [vmem:[#allocation1 + $0x38] sm:$0xff pattern:$0x73625140]
    %1481 = vst [vmem:[#allocation1] ss:$4 sm:$0xff] %v1454
    %v1482 = vld.sshfl [vmem:[#allocation1] sm:$0xff pattern:$0x73625140]
    %v1483 = vld.sshfl [vmem:[#allocation1 + $0x8] sm:$0xff pattern:$0x73625140]
    %v1484 = vld.sshfl [vmem:[#allocation1 + $0x10] sm:$0xff pattern:$0x73625140]
    %v1503 = vsel %vm686, %v1484, 0
    %1505 = vmatpush.msra.mxu0 %v68
    %1506 = vmatpush.msra.mxu0 %v66
    %1507 = vmatpush.msra.mxu0 %v64
    %1508 = vmatpush.msra.mxu0 %v62
    %1509 = vmatpush.msra.mxu0 %v60
    %1510 = vmatpush.msra.mxu0 %v58
    %1511 = vmatpush.msra.mxu0 %v56
    %1512 = vmatpush.msra.mxu0 %v54
    %1513 = vmatpush.msra.mxu0 %v52
    %1514 = vmatpush.msra.mxu0 %v50
    %1515 = vmatpush.msra.mxu0 %v48
    %1516 = vmatpush.msra.mxu0 %v46
    %1517 = vmatpush.msra.mxu0 %v44
    %1518 = vmatpush.msra.mxu0 %v42
    %1519 = vmatpush.msra.mxu0 %v40
    %1520 = vmatpush.msra.mxu0 %v38
    %1521 = vmatmul.f32.gmra.mxu0 %v1463
    %v1522 = vpop.f32.mrf.mxu0
    %v1523 = vadd.f32 0.0, %v1522
    %1524 = vdwg.mxu0
    %1525 = vmatpush.msra.mxu0 %v100
    %1526 = vmatpush.msra.mxu0 %v98
    %1527 = vmatpush.msra.mxu0 %v96
    %1528 = vmatpush.msra.mxu0 %v94
    %1529 = vmatpush.msra.mxu0 %v92
    %1530 = vmatpush.msra.mxu0 %v90
    %1531 = vmatpush.msra.mxu0 %v88
    %1532 = vmatpush.msra.mxu0 %v86
    %1533 = vmatpush.msra.mxu0 %v84
    %1534 = vmatpush.msra.mxu0 %v82
    %1535 = vmatpush.msra.mxu0 %v80
    %1536 = vmatpush.msra.mxu0 %v78
    %1537 = vmatpush.msra.mxu0 %v76
    %1538 = vmatpush.msra.mxu0 %v74
    %1539 = vmatpush.msra.mxu0 %v72
    %1540 = vmatpush.msra.mxu0 %v70
    %1541 = vmatmul.f32.gmra.mxu0 %v1464
    %v1542 = vpop.f32.mrf.mxu0
    %v1543 = vadd.f32 %v1523, %v1542
    %1544 = vdwg.mxu0
    %1545 = vmatpush.msra.mxu0 %v132
    %1546 = vmatpush.msra.mxu0 %v130
    %1547 = vmatpush.msra.mxu0 %v128
    %1548 = vmatpush.msra.mxu0 %v126
    %1549 = vmatpush.msra.mxu0 %v124
    %1550 = vmatpush.msra.mxu0 %v122
    %1551 = vmatpush.msra.mxu0 %v120
    %1552 = vmatpush.msra.mxu0 %v118
    %1553 = vmatpush.msra.mxu0 %v116
    %1554 = vmatpush.msra.mxu0 %v114
    %1555 = vmatpush.msra.mxu0 %v112
    %1556 = vmatpush.msra.mxu0 %v110
    %1557 = vmatpush.msra.mxu0 %v108
    %1558 = vmatpush.msra.mxu0 %v106
    %1559 = vmatpush.msra.mxu0 %v104
    %1560 = vmatpush.msra.mxu0 %v102
    %1561 = vmatmul.f32.gmra.mxu0 %v1465
    %v1562 = vpop.f32.mrf.mxu0
    %v1563 = vadd.f32 %v1543, %v1562
    %1564 = vdwg.mxu0
    %1565 = vmatpush.msra.mxu0 %v164
    %1566 = vmatpush.msra.mxu0 %v162
    %1567 = vmatpush.msra.mxu0 %v160
    %1568 = vmatpush.msra.mxu0 %v158
    %1569 = vmatpush.msra.mxu0 %v156
    %1570 = vmatpush.msra.mxu0 %v154
    %1571 = vmatpush.msra.mxu0 %v152
    %1572 = vmatpush.msra.mxu0 %v150
    %1573 = vmatpush.msra.mxu0 %v148
    %1574 = vmatpush.msra.mxu0 %v146
    %1575 = vmatpush.msra.mxu0 %v144
    %1576 = vmatpush.msra.mxu0 %v142
    %1577 = vmatpush.msra.mxu0 %v140
    %1578 = vmatpush.msra.mxu0 %v138
    %1579 = vmatpush.msra.mxu0 %v136
    %1580 = vmatpush.msra.mxu0 %v134
    %1581 = vmatmul.f32.gmra.mxu0 %v1466
    %v1582 = vpop.f32.mrf.mxu0
    %v1583 = vadd.f32 %v1563, %v1582
    %1584 = vdwg.mxu0
    %1585 = vmatpush.msra.mxu0 %v196
    %1586 = vmatpush.msra.mxu0 %v194
    %1587 = vmatpush.msra.mxu0 %v192
    %1588 = vmatpush.msra.mxu0 %v190
    %1589 = vmatpush.msra.mxu0 %v188
    %1590 = vmatpush.msra.mxu0 %v186
    %1591 = vmatpush.msra.mxu0 %v184
    %1592 = vmatpush.msra.mxu0 %v182
    %1593 = vmatpush.msra.mxu0 %v180
    %1594 = vmatpush.msra.mxu0 %v178
    %1595 = vmatpush.msra.mxu0 %v176
    %1596 = vmatpush.msra.mxu0 %v174
    %1597 = vmatpush.msra.mxu0 %v172
    %1598 = vmatpush.msra.mxu0 %v170
    %1599 = vmatpush.msra.mxu0 %v168
    %1600 = vmatpush.msra.mxu0 %v166
    %1601 = vmatmul.f32.gmra.mxu0 %v1467
    %v1602 = vpop.f32.mrf.mxu0
    %v1603 = vadd.f32 %v1583, %v1602
    %1604 = vdwg.mxu0
    %1605 = vmatpush.msra.mxu0 %v228
    %1606 = vmatpush.msra.mxu0 %v226
    %1607 = vmatpush.msra.mxu0 %v224
    %1608 = vmatpush.msra.mxu0 %v222
    %1609 = vmatpush.msra.mxu0 %v220
    %1610 = vmatpush.msra.mxu0 %v218
    %1611 = vmatpush.msra.mxu0 %v216
    %1612 = vmatpush.msra.mxu0 %v214
    %1613 = vmatpush.msra.mxu0 %v212
    %1614 = vmatpush.msra.mxu0 %v210
    %1615 = vmatpush.msra.mxu0 %v208
    %1616 = vmatpush.msra.mxu0 %v206
    %1617 = vmatpush.msra.mxu0 %v204
    %1618 = vmatpush.msra.mxu0 %v202
    %1619 = vmatpush.msra.mxu0 %v200
    %1620 = vmatpush.msra.mxu0 %v198
    %1621 = vmatmul.f32.gmra.mxu0 %v1468
    %v1622 = vpop.f32.mrf.mxu0
    %v1623 = vadd.f32 %v1603, %v1622
    %1624 = vdwg.mxu0
    %1625 = vmatpush.msra.mxu0 %v260
    %1626 = vmatpush.msra.mxu0 %v258
    %1627 = vmatpush.msra.mxu0 %v256
    %1628 = vmatpush.msra.mxu0 %v254
    %1629 = vmatpush.msra.mxu0 %v252
    %1630 = vmatpush.msra.mxu0 %v250
    %1631 = vmatpush.msra.mxu0 %v248
    %1632 = vmatpush.msra.mxu0 %v246
    %1633 = vmatpush.msra.mxu0 %v244
    %1634 = vmatpush.msra.mxu0 %v242
    %1635 = vmatpush.msra.mxu0 %v240
    %1636 = vmatpush.msra.mxu0 %v238
    %1637 = vmatpush.msra.mxu0 %v236
    %1638 = vmatpush.msra.mxu0 %v234
    %1639 = vmatpush.msra.mxu0 %v232
    %1640 = vmatpush.msra.mxu0 %v230
    %1641 = vmatmul.f32.gmra.mxu0 %v1469
    %v1642 = vpop.f32.mrf.mxu0
    %v1643 = vadd.f32 %v1623, %v1642
    %1644 = vdwg.mxu0
    %1645 = vmatpush.msra.mxu0 %v292
    %1646 = vmatpush.msra.mxu0 %v290
    %1647 = vmatpush.msra.mxu0 %v288
    %1648 = vmatpush.msra.mxu0 %v286
    %1649 = vmatpush.msra.mxu0 %v284
    %1650 = vmatpush.msra.mxu0 %v282
    %1651 = vmatpush.msra.mxu0 %v280
    %1652 = vmatpush.msra.mxu0 %v278
    %1653 = vmatpush.msra.mxu0 %v276
    %1654 = vmatpush.msra.mxu0 %v274
    %1655 = vmatpush.msra.mxu0 %v272
    %1656 = vmatpush.msra.mxu0 %v270
    %1657 = vmatpush.msra.mxu0 %v268
    %1658 = vmatpush.msra.mxu0 %v266
    %1659 = vmatpush.msra.mxu0 %v264
    %1660 = vmatpush.msra.mxu0 %v262
    %1661 = vmatmul.f32.gmra.mxu0 %v1470
    %v1662 = vpop.f32.mrf.mxu0
    %v1663 = vadd.f32 %v1643, %v1662
    %1664 = vdwg.mxu0
    %1665 = vmatpush.msra.mxu0 %v324
    %1666 = vmatpush.msra.mxu0 %v322
    %1667 = vmatpush.msra.mxu0 %v320
    %1668 = vmatpush.msra.mxu0 %v318
    %1669 = vmatpush.msra.mxu0 %v316
    %1670 = vmatpush.msra.mxu0 %v314
    %1671 = vmatpush.msra.mxu0 %v312
    %1672 = vmatpush.msra.mxu0 %v310
    %1673 = vmatpush.msra.mxu0 %v308
    %1674 = vmatpush.msra.mxu0 %v306
    %1675 = vmatpush.msra.mxu0 %v304
    %1676 = vmatpush.msra.mxu0 %v302
    %1677 = vmatpush.msra.mxu0 %v300
    %1678 = vmatpush.msra.mxu0 %v298
    %1679 = vmatpush.msra.mxu0 %v296
    %1680 = vmatpush.msra.mxu0 %v294
    %1681 = vmatmul.f32.gmra.mxu0 %v1473
    %v1682 = vpop.f32.mrf.mxu0
    %v1683 = vadd.f32 %v1663, %v1682
    %1684 = vdwg.mxu0
    %1685 = vmatpush.msra.mxu0 %v356
    %1686 = vmatpush.msra.mxu0 %v354
    %1687 = vmatpush.msra.mxu0 %v352
    %1688 = vmatpush.msra.mxu0 %v350
    %1689 = vmatpush.msra.mxu0 %v348
    %1690 = vmatpush.msra.mxu0 %v346
    %1691 = vmatpush.msra.mxu0 %v344
    %1692 = vmatpush.msra.mxu0 %v342
    %1693 = vmatpush.msra.mxu0 %v340
    %1694 = vmatpush.msra.mxu0 %v338
    %1695 = vmatpush.msra.mxu0 %v336
    %1696 = vmatpush.msra.mxu0 %v334
    %1697 = vmatpush.msra.mxu0 %v332
    %1698 = vmatpush.msra.mxu0 %v330
    %1699 = vmatpush.msra.mxu0 %v328
    %1700 = vmatpush.msra.mxu0 %v326
    %1701 = vmatmul.f32.gmra.mxu0 %v1474
    %v1702 = vpop.f32.mrf.mxu0
    %v1703 = vadd.f32 %v1683, %v1702
    %1704 = vdwg.mxu0
    %1705 = vmatpush.msra.mxu0 %v388
    %1706 = vmatpush.msra.mxu0 %v386
    %1707 = vmatpush.msra.mxu0 %v384
    %1708 = vmatpush.msra.mxu0 %v382
    %1709 = vmatpush.msra.mxu0 %v380
    %1710 = vmatpush.msra.mxu0 %v378
    %1711 = vmatpush.msra.mxu0 %v376
    %1712 = vmatpush.msra.mxu0 %v374
    %1713 = vmatpush.msra.mxu0 %v372
    %1714 = vmatpush.msra.mxu0 %v370
    %1715 = vmatpush.msra.mxu0 %v368
    %1716 = vmatpush.msra.mxu0 %v366
    %1717 = vmatpush.msra.mxu0 %v364
    %1718 = vmatpush.msra.mxu0 %v362
    %1719 = vmatpush.msra.mxu0 %v360
    %1720 = vmatpush.msra.mxu0 %v358
    %1721 = vmatmul.f32.gmra.mxu0 %v1475
    %v1722 = vpop.f32.mrf.mxu0
    %v1723 = vadd.f32 %v1703, %v1722
    %1724 = vdwg.mxu0
    %1725 = vmatpush.msra.mxu0 %v420
    %1726 = vmatpush.msra.mxu0 %v418
    %1727 = vmatpush.msra.mxu0 %v416
    %1728 = vmatpush.msra.mxu0 %v414
    %1729 = vmatpush.msra.mxu0 %v412
    %1730 = vmatpush.msra.mxu0 %v410
    %1731 = vmatpush.msra.mxu0 %v408
    %1732 = vmatpush.msra.mxu0 %v406
    %1733 = vmatpush.msra.mxu0 %v404
    %1734 = vmatpush.msra.mxu0 %v402
    %1735 = vmatpush.msra.mxu0 %v400
    %1736 = vmatpush.msra.mxu0 %v398
    %1737 = vmatpush.msra.mxu0 %v396
    %1738 = vmatpush.msra.mxu0 %v394
    %1739 = vmatpush.msra.mxu0 %v392
    %1740 = vmatpush.msra.mxu0 %v390
    %1741 = vmatmul.f32.gmra.mxu0 %v1476
    %v1742 = vpop.f32.mrf.mxu0
    %v1743 = vadd.f32 %v1723, %v1742
    %1744 = vdwg.mxu0
    %1745 = vmatpush.msra.mxu0 %v452
    %1746 = vmatpush.msra.mxu0 %v450
    %1747 = vmatpush.msra.mxu0 %v448
    %1748 = vmatpush.msra.mxu0 %v446
    %1749 = vmatpush.msra.mxu0 %v444
    %1750 = vmatpush.msra.mxu0 %v442
    %1751 = vmatpush.msra.mxu0 %v440
    %1752 = vmatpush.msra.mxu0 %v438
    %1753 = vmatpush.msra.mxu0 %v436
    %1754 = vmatpush.msra.mxu0 %v434
    %1755 = vmatpush.msra.mxu0 %v432
    %1756 = vmatpush.msra.mxu0 %v430
    %1757 = vmatpush.msra.mxu0 %v428
    %1758 = vmatpush.msra.mxu0 %v426
    %1759 = vmatpush.msra.mxu0 %v424
    %1760 = vmatpush.msra.mxu0 %v422
    %1761 = vmatmul.f32.gmra.mxu0 %v1477
    %v1762 = vpop.f32.mrf.mxu0
    %v1763 = vadd.f32 %v1743, %v1762
    %1764 = vdwg.mxu0
    %1765 = vmatpush.msra.mxu0 %v484
    %1766 = vmatpush.msra.mxu0 %v482
    %1767 = vmatpush.msra.mxu0 %v480
    %1768 = vmatpush.msra.mxu0 %v478
    %1769 = vmatpush.msra.mxu0 %v476
    %1770 = vmatpush.msra.mxu0 %v474
    %1771 = vmatpush.msra.mxu0 %v472
    %1772 = vmatpush.msra.mxu0 %v470
    %1773 = vmatpush.msra.mxu0 %v468
    %1774 = vmatpush.msra.mxu0 %v466
    %1775 = vmatpush.msra.mxu0 %v464
    %1776 = vmatpush.msra.mxu0 %v462
    %1777 = vmatpush.msra.mxu0 %v460
    %1778 = vmatpush.msra.mxu0 %v458
    %1779 = vmatpush.msra.mxu0 %v456
    %1780 = vmatpush.msra.mxu0 %v454
    %1781 = vmatmul.f32.gmra.mxu0 %v1478
    %v1782 = vpop.f32.mrf.mxu0
    %v1783 = vadd.f32 %v1763, %v1782
    %1784 = vdwg.mxu0
    %1785 = vmatpush.msra.mxu0 %v516
    %1786 = vmatpush.msra.mxu0 %v514
    %1787 = vmatpush.msra.mxu0 %v512
    %1788 = vmatpush.msra.mxu0 %v510
    %1789 = vmatpush.msra.mxu0 %v508
    %1790 = vmatpush.msra.mxu0 %v506
    %1791 = vmatpush.msra.mxu0 %v504
    %1792 = vmatpush.msra.mxu0 %v502
    %1793 = vmatpush.msra.mxu0 %v500
    %1794 = vmatpush.msra.mxu0 %v498
    %1795 = vmatpush.msra.mxu0 %v496
    %1796 = vmatpush.msra.mxu0 %v494
    %1797 = vmatpush.msra.mxu0 %v492
    %1798 = vmatpush.msra.mxu0 %v490
    %1799 = vmatpush.msra.mxu0 %v488
    %1800 = vmatpush.msra.mxu0 %v486
    %1801 = vmatmul.f32.gmra.mxu0 %v1479
    %v1802 = vpop.f32.mrf.mxu0
    %v1803 = vadd.f32 %v1783, %v1802
    %1804 = vdwg.mxu0
    %1805 = vmatpush.msra.mxu0 %v548
    %1806 = vmatpush.msra.mxu0 %v546
    %1807 = vmatpush.msra.mxu0 %v544
    %1808 = vmatpush.msra.mxu0 %v542
    %1809 = vmatpush.msra.mxu0 %v540
    %1810 = vmatpush.msra.mxu0 %v538
    %1811 = vmatpush.msra.mxu0 %v536
    %1812 = vmatpush.msra.mxu0 %v534
    %1813 = vmatpush.msra.mxu0 %v532
    %1814 = vmatpush.msra.mxu0 %v530
    %1815 = vmatpush.msra.mxu0 %v528
    %1816 = vmatpush.msra.mxu0 %v526
    %1817 = vmatpush.msra.mxu0 %v524
    %1818 = vmatpush.msra.mxu0 %v522
    %1819 = vmatpush.msra.mxu0 %v520
    %1820 = vmatpush.msra.mxu0 %v518
    %1821 = vmatmul.f32.gmra.mxu0 %v1480
    %v1822 = vpop.f32.mrf.mxu0
    %v1823 = vadd.f32 %v1803, %v1822
    %1824 = vdwg.mxu0
    %1825 = vmatpush.msra.mxu0 %v580
    %1826 = vmatpush.msra.mxu0 %v578
    %1827 = vmatpush.msra.mxu0 %v576
    %1828 = vmatpush.msra.mxu0 %v574
    %1829 = vmatpush.msra.mxu0 %v572
    %1830 = vmatpush.msra.mxu0 %v570
    %1831 = vmatpush.msra.mxu0 %v568
    %1832 = vmatpush.msra.mxu0 %v566
    %1833 = vmatpush.msra.mxu0 %v564
    %1834 = vmatpush.msra.mxu0 %v562
    %1835 = vmatpush.msra.mxu0 %v560
    %1836 = vmatpush.msra.mxu0 %v558
    %1837 = vmatpush.msra.mxu0 %v556
    %1838 = vmatpush.msra.mxu0 %v554
    %1839 = vmatpush.msra.mxu0 %v552
    %1840 = vmatpush.msra.mxu0 %v550
    %1841 = vmatmul.f32.gmra.mxu0 %v1482
    %v1842 = vpop.f32.mrf.mxu0
    %v1843 = vadd.f32 %v1823, %v1842
    %1844 = vdwg.mxu0
    %1845 = vmatpush.msra.mxu0 %v612
    %1846 = vmatpush.msra.mxu0 %v610
    %1847 = vmatpush.msra.mxu0 %v608
    %1848 = vmatpush.msra.mxu0 %v606
    %1849 = vmatpush.msra.mxu0 %v604
    %1850 = vmatpush.msra.mxu0 %v602
    %1851 = vmatpush.msra.mxu0 %v600
    %1852 = vmatpush.msra.mxu0 %v598
    %1853 = vmatpush.msra.mxu0 %v596
    %1854 = vmatpush.msra.mxu0 %v594
    %1855 = vmatpush.msra.mxu0 %v592
    %1856 = vmatpush.msra.mxu0 %v590
    %1857 = vmatpush.msra.mxu0 %v588
    %1858 = vmatpush.msra.mxu0 %v586
    %1859 = vmatpush.msra.mxu0 %v584
    %1860 = vmatpush.msra.mxu0 %v582
    %1861 = vmatmul.f32.gmra.mxu0 %v1483
    %v1862 = vpop.f32.mrf.mxu0
    %v1863 = vadd.f32 %v1843, %v1862
    %1864 = vdwg.mxu0
    %1865 = vmatpush.msra.mxu0 0.0
    %1866 = vmatpush.msra.mxu0 0.0
    %1867 = vmatpush.msra.mxu0 0.0
    %1868 = vmatpush.msra.mxu0 0.0
    %1869 = vmatpush.msra.mxu0 %v636
    %1870 = vmatpush.msra.mxu0 %v634
    %1871 = vmatpush.msra.mxu0 %v632
    %1872 = vmatpush.msra.mxu0 %v630
    %1873 = vmatpush.msra.mxu0 %v628
    %1874 = vmatpush.msra.mxu0 %v626
    %1875 = vmatpush.msra.mxu0 %v624
    %1876 = vmatpush.msra.mxu0 %v622
    %1877 = vmatpush.msra.mxu0 %v620
    %1878 = vmatpush.msra.mxu0 %v618
    %1879 = vmatpush.msra.mxu0 %v616
    %1880 = vmatpush.msra.mxu0 %v614
    %1881 = vmatmul.f32.gmra.mxu0 %v1503
    %v1882 = vpop.f32.mrf.mxu0
    %v1883 = vadd.f32 %v1863, %v1882
    %1884 = vdwg.mxu0
    %1885 = vmatpush.msra.mxu0 %v69
    %1886 = vmatpush.msra.mxu0 %v67
    %1887 = vmatpush.msra.mxu0 %v65
    %1888 = vmatpush.msra.mxu0 %v63
    %1889 = vmatpush.msra.mxu0 %v61
    %1890 = vmatpush.msra.mxu0 %v59
    %1891 = vmatpush.msra.mxu0 %v57
    %1892 = vmatpush.msra.mxu0 %v55
    %1893 = vmatpush.msra.mxu0 %v53
    %1894 = vmatpush.msra.mxu0 %v51
    %1895 = vmatpush.msra.mxu0 %v49
    %1896 = vmatpush.msra.mxu0 %v47
    %1897 = vmatpush.msra.mxu0 %v45
    %1898 = vmatpush.msra.mxu0 %v43
    %1899 = vmatpush.msra.mxu0 %v41
    %1900 = vmatpush.msra.mxu0 %v39
    %1901 = vmatmul.f32.gmra.mxu0 %v1463
    %v1902 = vpop.f32.mrf.mxu0
    %v1903 = vadd.f32 0.0, %v1902
    %1904 = vdwg.mxu0
    %1905 = vmatpush.msra.mxu0 %v101
    %1906 = vmatpush.msra.mxu0 %v99
    %1907 = vmatpush.msra.mxu0 %v97
    %1908 = vmatpush.msra.mxu0 %v95
    %1909 = vmatpush.msra.mxu0 %v93
    %1910 = vmatpush.msra.mxu0 %v91
    %1911 = vmatpush.msra.mxu0 %v89
    %1912 = vmatpush.msra.mxu0 %v87
    %1913 = vmatpush.msra.mxu0 %v85
    %1914 = vmatpush.msra.mxu0 %v83
    %1915 = vmatpush.msra.mxu0 %v81
    %1916 = vmatpush.msra.mxu0 %v79
    %1917 = vmatpush.msra.mxu0 %v77
    %1918 = vmatpush.msra.mxu0 %v75
    %1919 = vmatpush.msra.mxu0 %v73
    %1920 = vmatpush.msra.mxu0 %v71
    %1921 = vmatmul.f32.gmra.mxu0 %v1464
    %v1922 = vpop.f32.mrf.mxu0
    %v1923 = vadd.f32 %v1903, %v1922
    %1924 = vdwg.mxu0
    %1925 = vmatpush.msra.mxu0 %v133
    %1926 = vmatpush.msra.mxu0 %v131
    %1927 = vmatpush.msra.mxu0 %v129
    %1928 = vmatpush.msra.mxu0 %v127
    %1929 = vmatpush.msra.mxu0 %v125
    %1930 = vmatpush.msra.mxu0 %v123
    %1931 = vmatpush.msra.mxu0 %v121
    %1932 = vmatpush.msra.mxu0 %v119
    %1933 = vmatpush.msra.mxu0 %v117
    %1934 = vmatpush.msra.mxu0 %v115
    %1935 = vmatpush.msra.mxu0 %v113
    %1936 = vmatpush.msra.mxu0 %v111
    %1937 = vmatpush.msra.mxu0 %v109
    %1938 = vmatpush.msra.mxu0 %v107
    %1939 = vmatpush.msra.mxu0 %v105
    %1940 = vmatpush.msra.mxu0 %v103
    %1941 = vmatmul.f32.gmra.mxu0 %v1465
    %v1942 = vpop.f32.mrf.mxu0
    %v1943 = vadd.f32 %v1923, %v1942
    %1944 = vdwg.mxu0
    %1945 = vmatpush.msra.mxu0 %v165
    %1946 = vmatpush.msra.mxu0 %v163
    %1947 = vmatpush.msra.mxu0 %v161
    %1948 = vmatpush.msra.mxu0 %v159
    %1949 = vmatpush.msra.mxu0 %v157
    %1950 = vmatpush.msra.mxu0 %v155
    %1951 = vmatpush.msra.mxu0 %v153
    %1952 = vmatpush.msra.mxu0 %v151
    %1953 = vmatpush.msra.mxu0 %v149
    %1954 = vmatpush.msra.mxu0 %v147
    %1955 = vmatpush.msra.mxu0 %v145
    %1956 = vmatpush.msra.mxu0 %v143
    %1957 = vmatpush.msra.mxu0 %v141
    %1958 = vmatpush.msra.mxu0 %v139
    %1959 = vmatpush.msra.mxu0 %v137
    %1960 = vmatpush.msra.mxu0 %v135
    %1961 = vmatmul.f32.gmra.mxu0 %v1466
    %v1962 = vpop.f32.mrf.mxu0
    %v1963 = vadd.f32 %v1943, %v1962
    %1964 = vdwg.mxu0
    %1965 = vmatpush.msra.mxu0 %v197
    %1966 = vmatpush.msra.mxu0 %v195
    %1967 = vmatpush.msra.mxu0 %v193
    %1968 = vmatpush.msra.mxu0 %v191
    %1969 = vmatpush.msra.mxu0 %v189
    %1970 = vmatpush.msra.mxu0 %v187
    %1971 = vmatpush.msra.mxu0 %v185
    %1972 = vmatpush.msra.mxu0 %v183
    %1973 = vmatpush.msra.mxu0 %v181
    %1974 = vmatpush.msra.mxu0 %v179
    %1975 = vmatpush.msra.mxu0 %v177
    %1976 = vmatpush.msra.mxu0 %v175
    %1977 = vmatpush.msra.mxu0 %v173
    %1978 = vmatpush.msra.mxu0 %v171
    %1979 = vmatpush.msra.mxu0 %v169
    %1980 = vmatpush.msra.mxu0 %v167
    %1981 = vmatmul.f32.gmra.mxu0 %v1467
    %v1982 = vpop.f32.mrf.mxu0
    %v1983 = vadd.f32 %v1963, %v1982
    %1984 = vdwg.mxu0
    %1985 = vmatpush.msra.mxu0 %v229
    %1986 = vmatpush.msra.mxu0 %v227
    %1987 = vmatpush.msra.mxu0 %v225
    %1988 = vmatpush.msra.mxu0 %v223
    %1989 = vmatpush.msra.mxu0 %v221
    %1990 = vmatpush.msra.mxu0 %v219
    %1991 = vmatpush.msra.mxu0 %v217
    %1992 = vmatpush.msra.mxu0 %v215
    %1993 = vmatpush.msra.mxu0 %v213
    %1994 = vmatpush.msra.mxu0 %v211
    %1995 = vmatpush.msra.mxu0 %v209
    %1996 = vmatpush.msra.mxu0 %v207
    %1997 = vmatpush.msra.mxu0 %v205
    %1998 = vmatpush.msra.mxu0 %v203
    %1999 = vmatpush.msra.mxu0 %v201
    %2000 = vmatpush.msra.mxu0 %v199
    %2001 = vmatmul.f32.gmra.mxu0 %v1468
    %v2002 = vpop.f32.mrf.mxu0
    %v2003 = vadd.f32 %v1983, %v2002
    %2004 = vdwg.mxu0
    %2005 = vmatpush.msra.mxu0 %v261
    %2006 = vmatpush.msra.mxu0 %v259
    %2007 = vmatpush.msra.mxu0 %v257
    %2008 = vmatpush.msra.mxu0 %v255
    %2009 = vmatpush.msra.mxu0 %v253
    %2010 = vmatpush.msra.mxu0 %v251
    %2011 = vmatpush.msra.mxu0 %v249
    %2012 = vmatpush.msra.mxu0 %v247
    %2013 = vmatpush.msra.mxu0 %v245
    %2014 = vmatpush.msra.mxu0 %v243
    %2015 = vmatpush.msra.mxu0 %v241
    %2016 = vmatpush.msra.mxu0 %v239
    %2017 = vmatpush.msra.mxu0 %v237
    %2018 = vmatpush.msra.mxu0 %v235
    %2019 = vmatpush.msra.mxu0 %v233
    %2020 = vmatpush.msra.mxu0 %v231
    %2021 = vmatmul.f32.gmra.mxu0 %v1469
    %v2022 = vpop.f32.mrf.mxu0
    %v2023 = vadd.f32 %v2003, %v2022
    %2024 = vdwg.mxu0
    %2025 = vmatpush.msra.mxu0 %v293
    %2026 = vmatpush.msra.mxu0 %v291
    %2027 = vmatpush.msra.mxu0 %v289
    %2028 = vmatpush.msra.mxu0 %v287
    %2029 = vmatpush.msra.mxu0 %v285
    %2030 = vmatpush.msra.mxu0 %v283
    %2031 = vmatpush.msra.mxu0 %v281
    %2032 = vmatpush.msra.mxu0 %v279
    %2033 = vmatpush.msra.mxu0 %v277
    %2034 = vmatpush.msra.mxu0 %v275
    %2035 = vmatpush.msra.mxu0 %v273
    %2036 = vmatpush.msra.mxu0 %v271
    %2037 = vmatpush.msra.mxu0 %v269
    %2038 = vmatpush.msra.mxu0 %v267
    %2039 = vmatpush.msra.mxu0 %v265
    %2040 = vmatpush.msra.mxu0 %v263
    %2041 = vmatmul.f32.gmra.mxu0 %v1470
    %v2042 = vpop.f32.mrf.mxu0
    %v2043 = vadd.f32 %v2023, %v2042
    %2044 = vdwg.mxu0
    %2045 = vmatpush.msra.mxu0 %v325
    %2046 = vmatpush.msra.mxu0 %v323
    %2047 = vmatpush.msra.mxu0 %v321
    %2048 = vmatpush.msra.mxu0 %v319
    %2049 = vmatpush.msra.mxu0 %v317
    %2050 = vmatpush.msra.mxu0 %v315
    %2051 = vmatpush.msra.mxu0 %v313
    %2052 = vmatpush.msra.mxu0 %v311
    %2053 = vmatpush.msra.mxu0 %v309
    %2054 = vmatpush.msra.mxu0 %v307
    %2055 = vmatpush.msra.mxu0 %v305
    %2056 = vmatpush.msra.mxu0 %v303
    %2057 = vmatpush.msra.mxu0 %v301
    %2058 = vmatpush.msra.mxu0 %v299
    %2059 = vmatpush.msra.mxu0 %v297
    %2060 = vmatpush.msra.mxu0 %v295
    %2061 = vmatmul.f32.gmra.mxu0 %v1473
    %v2062 = vpop.f32.mrf.mxu0
    %v2063 = vadd.f32 %v2043, %v2062
    %2064 = vdwg.mxu0
    %2065 = vmatpush.msra.mxu0 %v357
    %2066 = vmatpush.msra.mxu0 %v355
    %2067 = vmatpush.msra.mxu0 %v353
    %2068 = vmatpush.msra.mxu0 %v351
    %2069 = vmatpush.msra.mxu0 %v349
    %2070 = vmatpush.msra.mxu0 %v347
    %2071 = vmatpush.msra.mxu0 %v345
    %2072 = vmatpush.msra.mxu0 %v343
    %2073 = vmatpush.msra.mxu0 %v341
    %2074 = vmatpush.msra.mxu0 %v339
    %2075 = vmatpush.msra.mxu0 %v337
    %2076 = vmatpush.msra.mxu0 %v335
    %2077 = vmatpush.msra.mxu0 %v333
    %2078 = vmatpush.msra.mxu0 %v331
    %2079 = vmatpush.msra.mxu0 %v329
    %2080 = vmatpush.msra.mxu0 %v327
    %2081 = vmatmul.f32.gmra.mxu0 %v1474
    %v2082 = vpop.f32.mrf.mxu0
    %v2083 = vadd.f32 %v2063, %v2082
    %2084 = vdwg.mxu0
    %2085 = vmatpush.msra.mxu0 %v389
    %2086 = vmatpush.msra.mxu0 %v387
    %2087 = vmatpush.msra.mxu0 %v385
    %2088 = vmatpush.msra.mxu0 %v383
    %2089 = vmatpush.msra.mxu0 %v381
    %2090 = vmatpush.msra.mxu0 %v379
    %2091 = vmatpush.msra.mxu0 %v377
    %2092 = vmatpush.msra.mxu0 %v375
    %2093 = vmatpush.msra.mxu0 %v373
    %2094 = vmatpush.msra.mxu0 %v371
    %2095 = vmatpush.msra.mxu0 %v369
    %2096 = vmatpush.msra.mxu0 %v367
    %2097 = vmatpush.msra.mxu0 %v365
    %2098 = vmatpush.msra.mxu0 %v363
    %2099 = vmatpush.msra.mxu0 %v361
    %2100 = vmatpush.msra.mxu0 %v359
    %2101 = vmatmul.f32.gmra.mxu0 %v1475
    %v2102 = vpop.f32.mrf.mxu0
    %v2103 = vadd.f32 %v2083, %v2102
    %2104 = vdwg.mxu0
    %2105 = vmatpush.msra.mxu0 %v421
    %2106 = vmatpush.msra.mxu0 %v419
    %2107 = vmatpush.msra.mxu0 %v417
    %2108 = vmatpush.msra.mxu0 %v415
    %2109 = vmatpush.msra.mxu0 %v413
    %2110 = vmatpush.msra.mxu0 %v411
    %2111 = vmatpush.msra.mxu0 %v409
    %2112 = vmatpush.msra.mxu0 %v407
    %2113 = vmatpush.msra.mxu0 %v405
    %2114 = vmatpush.msra.mxu0 %v403
    %2115 = vmatpush.msra.mxu0 %v401
    %2116 = vmatpush.msra.mxu0 %v399
    %2117 = vmatpush.msra.mxu0 %v397
    %2118 = vmatpush.msra.mxu0 %v395
    %2119 = vmatpush.msra.mxu0 %v393
    %2120 = vmatpush.msra.mxu0 %v391
    %2121 = vmatmul.f32.gmra.mxu0 %v1476
    %v2122 = vpop.f32.mrf.mxu0
    %v2123 = vadd.f32 %v2103, %v2122
    %2124 = vdwg.mxu0
    %2125 = vmatpush.msra.mxu0 %v453
    %2126 = vmatpush.msra.mxu0 %v451
    %2127 = vmatpush.msra.mxu0 %v449
    %2128 = vmatpush.msra.mxu0 %v447
    %2129 = vmatpush.msra.mxu0 %v445
    %2130 = vmatpush.msra.mxu0 %v443
    %2131 = vmatpush.msra.mxu0 %v441
    %2132 = vmatpush.msra.mxu0 %v439
    %2133 = vmatpush.msra.mxu0 %v437
    %2134 = vmatpush.msra.mxu0 %v435
    %2135 = vmatpush.msra.mxu0 %v433
    %2136 = vmatpush.msra.mxu0 %v431
    %2137 = vmatpush.msra.mxu0 %v429
    %2138 = vmatpush.msra.mxu0 %v427
    %2139 = vmatpush.msra.mxu0 %v425
    %2140 = vmatpush.msra.mxu0 %v423
    %2141 = vmatmul.f32.gmra.mxu0 %v1477
    %v2142 = vpop.f32.mrf.mxu0
    %v2143 = vadd.f32 %v2123, %v2142
    %2144 = vdwg.mxu0
    %2145 = vmatpush.msra.mxu0 %v485
    %2146 = vmatpush.msra.mxu0 %v483
    %2147 = vmatpush.msra.mxu0 %v481
    %2148 = vmatpush.msra.mxu0 %v479
    %2149 = vmatpush.msra.mxu0 %v477
    %2150 = vmatpush.msra.mxu0 %v475
    %2151 = vmatpush.msra.mxu0 %v473
    %2152 = vmatpush.msra.mxu0 %v471
    %2153 = vmatpush.msra.mxu0 %v469
    %2154 = vmatpush.msra.mxu0 %v467
    %2155 = vmatpush.msra.mxu0 %v465
    %2156 = vmatpush.msra.mxu0 %v463
    %2157 = vmatpush.msra.mxu0 %v461
    %2158 = vmatpush.msra.mxu0 %v459
    %2159 = vmatpush.msra.mxu0 %v457
    %2160 = vmatpush.msra.mxu0 %v455
    %2161 = vmatmul.f32.gmra.mxu0 %v1478
    %v2162 = vpop.f32.mrf.mxu0
    %v2163 = vadd.f32 %v2143, %v2162
    %2164 = vdwg.mxu0
    %2165 = vmatpush.msra.mxu0 %v517
    %2166 = vmatpush.msra.mxu0 %v515
    %2167 = vmatpush.msra.mxu0 %v513
    %2168 = vmatpush.msra.mxu0 %v511
    %2169 = vmatpush.msra.mxu0 %v509
    %2170 = vmatpush.msra.mxu0 %v507
    %2171 = vmatpush.msra.mxu0 %v505
    %2172 = vmatpush.msra.mxu0 %v503
    %2173 = vmatpush.msra.mxu0 %v501
    %2174 = vmatpush.msra.mxu0 %v499
    %2175 = vmatpush.msra.mxu0 %v497
    %2176 = vmatpush.msra.mxu0 %v495
    %2177 = vmatpush.msra.mxu0 %v493
    %2178 = vmatpush.msra.mxu0 %v491
    %2179 = vmatpush.msra.mxu0 %v489
    %2180 = vmatpush.msra.mxu0 %v487
    %2181 = vmatmul.f32.gmra.mxu0 %v1479
    %v2182 = vpop.f32.mrf.mxu0
    %v2183 = vadd.f32 %v2163, %v2182
    %2184 = vdwg.mxu0
    %2185 = vmatpush.msra.mxu0 %v549
    %2186 = vmatpush.msra.mxu0 %v547
    %2187 = vmatpush.msra.mxu0 %v545
    %2188 = vmatpush.msra.mxu0 %v543
    %2189 = vmatpush.msra.mxu0 %v541
    %2190 = vmatpush.msra.mxu0 %v539
    %2191 = vmatpush.msra.mxu0 %v537
    %2192 = vmatpush.msra.mxu0 %v535
    %2193 = vmatpush.msra.mxu0 %v533
    %2194 = vmatpush.msra.mxu0 %v531
    %2195 = vmatpush.msra.mxu0 %v529
    %2196 = vmatpush.msra.mxu0 %v527
    %2197 = vmatpush.msra.mxu0 %v525
    %2198 = vmatpush.msra.mxu0 %v523
    %2199 = vmatpush.msra.mxu0 %v521
    %2200 = vmatpush.msra.mxu0 %v519
    %2201 = vmatmul.f32.gmra.mxu0 %v1480
    %v2202 = vpop.f32.mrf.mxu0
    %v2203 = vadd.f32 %v2183, %v2202
    %2204 = vdwg.mxu0
    %2205 = vmatpush.msra.mxu0 %v581
    %2206 = vmatpush.msra.mxu0 %v579
    %2207 = vmatpush.msra.mxu0 %v577
    %2208 = vmatpush.msra.mxu0 %v575
    %2209 = vmatpush.msra.mxu0 %v573
    %2210 = vmatpush.msra.mxu0 %v571
    %2211 = vmatpush.msra.mxu0 %v569
    %2212 = vmatpush.msra.mxu0 %v567
    %2213 = vmatpush.msra.mxu0 %v565
    %2214 = vmatpush.msra.mxu0 %v563
    %2215 = vmatpush.msra.mxu0 %v561
    %2216 = vmatpush.msra.mxu0 %v559
    %2217 = vmatpush.msra.mxu0 %v557
    %2218 = vmatpush.msra.mxu0 %v555
    %2219 = vmatpush.msra.mxu0 %v553
    %2220 = vmatpush.msra.mxu0 %v551
    %2221 = vmatmul.f32.gmra.mxu0 %v1482
    %v2222 = vpop.f32.mrf.mxu0
    %v2223 = vadd.f32 %v2203, %v2222
    %2224 = vdwg.mxu0
    %2225 = vmatpush.msra.mxu0 %v613
    %2226 = vmatpush.msra.mxu0 %v611
    %2227 = vmatpush.msra.mxu0 %v609
    %2228 = vmatpush.msra.mxu0 %v607
    %2229 = vmatpush.msra.mxu0 %v605
    %2230 = vmatpush.msra.mxu0 %v603
    %2231 = vmatpush.msra.mxu0 %v601
    %2232 = vmatpush.msra.mxu0 %v599
    %2233 = vmatpush.msra.mxu0 %v597
    %2234 = vmatpush.msra.mxu0 %v595
    %2235 = vmatpush.msra.mxu0 %v593
    %2236 = vmatpush.msra.mxu0 %v591
    %2237 = vmatpush.msra.mxu0 %v589
    %2238 = vmatpush.msra.mxu0 %v587
    %2239 = vmatpush.msra.mxu0 %v585
    %2240 = vmatpush.msra.mxu0 %v583
    %2241 = vmatmul.f32.gmra.mxu0 %v1483
    %v2242 = vpop.f32.mrf.mxu0
    %v2243 = vadd.f32 %v2223, %v2242
    %2244 = vdwg.mxu0
    %2245 = vmatpush.msra.mxu0 0.0
    %2246 = vmatpush.msra.mxu0 0.0
    %2247 = vmatpush.msra.mxu0 0.0
    %2248 = vmatpush.msra.mxu0 0.0
    %2249 = vmatpush.msra.mxu0 %v637
    %2250 = vmatpush.msra.mxu0 %v635
    %2251 = vmatpush.msra.mxu0 %v633
    %2252 = vmatpush.msra.mxu0 %v631
    %2253 = vmatpush.msra.mxu0 %v629
    %2254 = vmatpush.msra.mxu0 %v627
    %2255 = vmatpush.msra.mxu0 %v625
    %2256 = vmatpush.msra.mxu0 %v623
    %2257 = vmatpush.msra.mxu0 %v621
    %2258 = vmatpush.msra.mxu0 %v619
    %2259 = vmatpush.msra.mxu0 %v617
    %2260 = vmatpush.msra.mxu0 %v615
    %2261 = vmatmul.f32.gmra.mxu0 %v1503
    %v2262 = vpop.f32.mrf.mxu0
    %v2263 = vadd.f32 %v2243, %v2262
    %2264 = vdwg.mxu0
    %v2265 = vmax.f32 %v1067, %v1883
    %v2266 = vmax.f32 %v1447, %v2263
    %s2267 = scalar_lea.vmem %s0, 76
    %v2268 = vld [vmem:[%s2267] sm:$0xff]
    %v2269 = vld [vmem:[%s2267 + $0x8] sm:$0xff]
    %v2270 = vld [vmem:[%s2267 + $0x10] sm:$0xff]
    %v2271 = vld [vmem:[%s2267 + $0x18] sm:$0xff]
    %v2272 = vld [vmem:[%s2267 + $0x20] sm:$0x3f]
    %2278 = vst [vmem:[#allocation1] ss:$4 sm:$0xff] %v2268
    %s2279 = scalar_lea.vmem [#allocation1], 32
    %2280 = vst [vmem:[%s2279] ss:$4 sm:$0xff] %v2269
    %v2281 = vld.sshfl [vmem:[#allocation1] sm:$0xff pattern:$0x73625140]
    %v2282 = vld.sshfl [vmem:[#allocation1 + $0x8] sm:$0xff pattern:$0x73625140]
    %v2283 = vld.sshfl [vmem:[#allocation1 + $0x10] sm:$0xff pattern:$0x73625140]
    %v2284 = vld.sshfl [vmem:[#allocation1 + $0x18] sm:$0xff pattern:$0x73625140]
    %v2285 = vld.sshfl [vmem:[#allocation1 + $0x20] sm:$0xff pattern:$0x73625140]
    %v2286 = vld.sshfl [vmem:[#allocation1 + $0x28] sm:$0xff pattern:$0x73625140]
    %v2287 = vld.sshfl [vmem:[#allocation1 + $0x30] sm:$0xff pattern:$0x73625140]
    %v2288 = vld.sshfl [vmem:[#allocation1 + $0x38] sm:$0xff pattern:$0x73625140]
    %2289 = vst [vmem:[#allocation1] ss:$4 sm:$0xff] %v2270
    %2290 = vst [vmem:[%s2279] ss:$4 sm:$0xff] %v2271
    %v2291 = vld.sshfl [vmem:[#allocation1] sm:$0xff pattern:$0x73625140]
    %v2292 = vld.sshfl [vmem:[#allocation1 + $0x8] sm:$0xff pattern:$0x73625140]
    %v2293 = vld.sshfl [vmem:[#allocation1 + $0x10] sm:$0xff pattern:$0x73625140]
    %v2294 = vld.sshfl [vmem:[#allocation1 + $0x18] sm:$0xff pattern:$0x73625140]
    %v2295 = vld.sshfl [vmem:[#allocation1 + $0x20] sm:$0xff pattern:$0x73625140]
    %v2296 = vld.sshfl [vmem:[#allocation1 + $0x28] sm:$0xff pattern:$0x73625140]
    %v2297 = vld.sshfl [vmem:[#allocation1 + $0x30] sm:$0xff pattern:$0x73625140]
    %v2298 = vld.sshfl [vmem:[#allocation1 + $0x38] sm:$0xff pattern:$0x73625140]
    %2299 = vst [vmem:[#allocation1] ss:$4 sm:$0xff] %v2272
    %v2300 = vld.sshfl [vmem:[#allocation1] sm:$0xff pattern:$0x73625140]
    %v2301 = vld.sshfl [vmem:[#allocation1 + $0x8] sm:$0xff pattern:$0x73625140]
    %v2302 = vld.sshfl [vmem:[#allocation1 + $0x10] sm:$0xff pattern:$0x73625140]
    %v2321 = vsel %vm686, %v2302, 0
    %2323 = vmatpush.msra.mxu0 %v68
    %2324 = vmatpush.msra.mxu0 %v66
    %2325 = vmatpush.msra.mxu0 %v64
    %2326 = vmatpush.msra.mxu0 %v62
    %2327 = vmatpush.msra.mxu0 %v60
    %2328 = vmatpush.msra.mxu0 %v58
    %2329 = vmatpush.msra.mxu0 %v56
    %2330 = vmatpush.msra.mxu0 %v54
    %2331 = vmatpush.msra.mxu0 %v52
    %2332 = vmatpush.msra.mxu0 %v50
    %2333 = vmatpush.msra.mxu0 %v48
    %2334 = vmatpush.msra.mxu0 %v46
    %2335 = vmatpush.msra.mxu0 %v44
    %2336 = vmatpush.msra.mxu0 %v42
    %2337 = vmatpush.msra.mxu0 %v40
    %2338 = vmatpush.msra.mxu0 %v38
    %2339 = vmatmul.f32.gmra.mxu0 %v2281
    %v2340 = vpop.f32.mrf.mxu0
    %v2341 = vadd.f32 0.0, %v2340
    %2342 = vdwg.mxu0
    %2343 = vmatpush.msra.mxu0 %v100
    %2344 = vmatpush.msra.mxu0 %v98
    %2345 = vmatpush.msra.mxu0 %v96
    %2346 = vmatpush.msra.mxu0 %v94
    %2347 = vmatpush.msra.mxu0 %v92
    %2348 = vmatpush.msra.mxu0 %v90
    %2349 = vmatpush.msra.mxu0 %v88
    %2350 = vmatpush.msra.mxu0 %v86
    %2351 = vmatpush.msra.mxu0 %v84
    %2352 = vmatpush.msra.mxu0 %v82
    %2353 = vmatpush.msra.mxu0 %v80
    %2354 = vmatpush.msra.mxu0 %v78
    %2355 = vmatpush.msra.mxu0 %v76
    %2356 = vmatpush.msra.mxu0 %v74
    %2357 = vmatpush.msra.mxu0 %v72
    %2358 = vmatpush.msra.mxu0 %v70
    %2359 = vmatmul.f32.gmra.mxu0 %v2282
    %v2360 = vpop.f32.mrf.mxu0
    %v2361 = vadd.f32 %v2341, %v2360
    %2362 = vdwg.mxu0
    %2363 = vmatpush.msra.mxu0 %v132
    %2364 = vmatpush.msra.mxu0 %v130
    %2365 = vmatpush.msra.mxu0 %v128
    %2366 = vmatpush.msra.mxu0 %v126
    %2367 = vmatpush.msra.mxu0 %v124
    %2368 = vmatpush.msra.mxu0 %v122
    %2369 = vmatpush.msra.mxu0 %v120
    %2370 = vmatpush.msra.mxu0 %v118
    %2371 = vmatpush.msra.mxu0 %v116
    %2372 = vmatpush.msra.mxu0 %v114
    %2373 = vmatpush.msra.mxu0 %v112
    %2374 = vmatpush.msra.mxu0 %v110
    %2375 = vmatpush.msra.mxu0 %v108
    %2376 = vmatpush.msra.mxu0 %v106
    %2377 = vmatpush.msra.mxu0 %v104
    %2378 = vmatpush.msra.mxu0 %v102
    %2379 = vmatmul.f32.gmra.mxu0 %v2283
    %v2380 = vpop.f32.mrf.mxu0
    %v2381 = vadd.f32 %v2361, %v2380
    %2382 = vdwg.mxu0
    %2383 = vmatpush.msra.mxu0 %v164
    %2384 = vmatpush.msra.mxu0 %v162
    %2385 = vmatpush.msra.mxu0 %v160
    %2386 = vmatpush.msra.mxu0 %v158
    %2387 = vmatpush.msra.mxu0 %v156
    %2388 = vmatpush.msra.mxu0 %v154
    %2389 = vmatpush.msra.mxu0 %v152
    %2390 = vmatpush.msra.mxu0 %v150
    %2391 = vmatpush.msra.mxu0 %v148
    %2392 = vmatpush.msra.mxu0 %v146
    %2393 = vmatpush.msra.mxu0 %v144
    %2394 = vmatpush.msra.mxu0 %v142
    %2395 = vmatpush.msra.mxu0 %v140
    %2396 = vmatpush.msra.mxu0 %v138
    %2397 = vmatpush.msra.mxu0 %v136
    %2398 = vmatpush.msra.mxu0 %v134
    %2399 = vmatmul.f32.gmra.mxu0 %v2284
    %v2400 = vpop.f32.mrf.mxu0
    %v2401 = vadd.f32 %v2381, %v2400
    %2402 = vdwg.mxu0
    %2403 = vmatpush.msra.mxu0 %v196
    %2404 = vmatpush.msra.mxu0 %v194
    %2405 = vmatpush.msra.mxu0 %v192
    %2406 = vmatpush.msra.mxu0 %v190
    %2407 = vmatpush.msra.mxu0 %v188
    %2408 = vmatpush.msra.mxu0 %v186
    %2409 = vmatpush.msra.mxu0 %v184
    %2410 = vmatpush.msra.mxu0 %v182
    %2411 = vmatpush.msra.mxu0 %v180
    %2412 = vmatpush.msra.mxu0 %v178
    %2413 = vmatpush.msra.mxu0 %v176
    %2414 = vmatpush.msra.mxu0 %v174
    %2415 = vmatpush.msra.mxu0 %v172
    %2416 = vmatpush.msra.mxu0 %v170
    %2417 = vmatpush.msra.mxu0 %v168
    %2418 = vmatpush.msra.mxu0 %v166
    %2419 = vmatmul.f32.gmra.mxu0 %v2285
    %v2420 = vpop.f32.mrf.mxu0
    %v2421 = vadd.f32 %v2401, %v2420
    %2422 = vdwg.mxu0
    %2423 = vmatpush.msra.mxu0 %v228
    %2424 = vmatpush.msra.mxu0 %v226
    %2425 = vmatpush.msra.mxu0 %v224
    %2426 = vmatpush.msra.mxu0 %v222
    %2427 = vmatpush.msra.mxu0 %v220
    %2428 = vmatpush.msra.mxu0 %v218
    %2429 = vmatpush.msra.mxu0 %v216
    %2430 = vmatpush.msra.mxu0 %v214
    %2431 = vmatpush.msra.mxu0 %v212
    %2432 = vmatpush.msra.mxu0 %v210
    %2433 = vmatpush.msra.mxu0 %v208
    %2434 = vmatpush.msra.mxu0 %v206
    %2435 = vmatpush.msra.mxu0 %v204
    %2436 = vmatpush.msra.mxu0 %v202
    %2437 = vmatpush.msra.mxu0 %v200
    %2438 = vmatpush.msra.mxu0 %v198
    %2439 = vmatmul.f32.gmra.mxu0 %v2286
    %v2440 = vpop.f32.mrf.mxu0
    %v2441 = vadd.f32 %v2421, %v2440
    %2442 = vdwg.mxu0
    %2443 = vmatpush.msra.mxu0 %v260
    %2444 = vmatpush.msra.mxu0 %v258
    %2445 = vmatpush.msra.mxu0 %v256
    %2446 = vmatpush.msra.mxu0 %v254
    %2447 = vmatpush.msra.mxu0 %v252
    %2448 = vmatpush.msra.mxu0 %v250
    %2449 = vmatpush.msra.mxu0 %v248
    %2450 = vmatpush.msra.mxu0 %v246
    %2451 = vmatpush.msra.mxu0 %v244
    %2452 = vmatpush.msra.mxu0 %v242
    %2453 = vmatpush.msra.mxu0 %v240
    %2454 = vmatpush.msra.mxu0 %v238
    %2455 = vmatpush.msra.mxu0 %v236
    %2456 = vmatpush.msra.mxu0 %v234
    %2457 = vmatpush.msra.mxu0 %v232
    %2458 = vmatpush.msra.mxu0 %v230
    %2459 = vmatmul.f32.gmra.mxu0 %v2287
    %v2460 = vpop.f32.mrf.mxu0
    %v2461 = vadd.f32 %v2441, %v2460
    %2462 = vdwg.mxu0
    %2463 = vmatpush.msra.mxu0 %v292
    %2464 = vmatpush.msra.mxu0 %v290
    %2465 = vmatpush.msra.mxu0 %v288
    %2466 = vmatpush.msra.mxu0 %v286
    %2467 = vmatpush.msra.mxu0 %v284
    %2468 = vmatpush.msra.mxu0 %v282
    %2469 = vmatpush.msra.mxu0 %v280
    %2470 = vmatpush.msra.mxu0 %v278
    %2471 = vmatpush.msra.mxu0 %v276
    %2472 = vmatpush.msra.mxu0 %v274
    %2473 = vmatpush.msra.mxu0 %v272
    %2474 = vmatpush.msra.mxu0 %v270
    %2475 = vmatpush.msra.mxu0 %v268
    %2476 = vmatpush.msra.mxu0 %v266
    %2477 = vmatpush.msra.mxu0 %v264
    %2478 = vmatpush.msra.mxu0 %v262
    %2479 = vmatmul.f32.gmra.mxu0 %v2288
    %v2480 = vpop.f32.mrf.mxu0
    %v2481 = vadd.f32 %v2461, %v2480
    %2482 = vdwg.mxu0
    %2483 = vmatpush.msra.mxu0 %v324
    %2484 = vmatpush.msra.mxu0 %v322
    %2485 = vmatpush.msra.mxu0 %v320
    %2486 = vmatpush.msra.mxu0 %v318
    %2487 = vmatpush.msra.mxu0 %v316
    %2488 = vmatpush.msra.mxu0 %v314
    %2489 = vmatpush.msra.mxu0 %v312
    %2490 = vmatpush.msra.mxu0 %v310
    %2491 = vmatpush.msra.mxu0 %v308
    %2492 = vmatpush.msra.mxu0 %v306
    %2493 = vmatpush.msra.mxu0 %v304
    %2494 = vmatpush.msra.mxu0 %v302
    %2495 = vmatpush.msra.mxu0 %v300
    %2496 = vmatpush.msra.mxu0 %v298
    %2497 = vmatpush.msra.mxu0 %v296
    %2498 = vmatpush.msra.mxu0 %v294
    %2499 = vmatmul.f32.gmra.mxu0 %v2291
    %v2500 = vpop.f32.mrf.mxu0
    %v2501 = vadd.f32 %v2481, %v2500
    %2502 = vdwg.mxu0
    %2503 = vmatpush.msra.mxu0 %v356
    %2504 = vmatpush.msra.mxu0 %v354
    %2505 = vmatpush.msra.mxu0 %v352
    %2506 = vmatpush.msra.mxu0 %v350
    %2507 = vmatpush.msra.mxu0 %v348
    %2508 = vmatpush.msra.mxu0 %v346
    %2509 = vmatpush.msra.mxu0 %v344
    %2510 = vmatpush.msra.mxu0 %v342
    %2511 = vmatpush.msra.mxu0 %v340
    %2512 = vmatpush.msra.mxu0 %v338
    %2513 = vmatpush.msra.mxu0 %v336
    %2514 = vmatpush.msra.mxu0 %v334
    %2515 = vmatpush.msra.mxu0 %v332
    %2516 = vmatpush.msra.mxu0 %v330
    %2517 = vmatpush.msra.mxu0 %v328
    %2518 = vmatpush.msra.mxu0 %v326
    %2519 = vmatmul.f32.gmra.mxu0 %v2292
    %v2520 = vpop.f32.mrf.mxu0
    %v2521 = vadd.f32 %v2501, %v2520
    %2522 = vdwg.mxu0
    %2523 = vmatpush.msra.mxu0 %v388
    %2524 = vmatpush.msra.mxu0 %v386
    %2525 = vmatpush.msra.mxu0 %v384
    %2526 = vmatpush.msra.mxu0 %v382
    %2527 = vmatpush.msra.mxu0 %v380
    %2528 = vmatpush.msra.mxu0 %v378
    %2529 = vmatpush.msra.mxu0 %v376
    %2530 = vmatpush.msra.mxu0 %v374
    %2531 = vmatpush.msra.mxu0 %v372
    %2532 = vmatpush.msra.mxu0 %v370
    %2533 = vmatpush.msra.mxu0 %v368
    %2534 = vmatpush.msra.mxu0 %v366
    %2535 = vmatpush.msra.mxu0 %v364
    %2536 = vmatpush.msra.mxu0 %v362
    %2537 = vmatpush.msra.mxu0 %v360
    %2538 = vmatpush.msra.mxu0 %v358
    %2539 = vmatmul.f32.gmra.mxu0 %v2293
    %v2540 = vpop.f32.mrf.mxu0
    %v2541 = vadd.f32 %v2521, %v2540
    %2542 = vdwg.mxu0
    %2543 = vmatpush.msra.mxu0 %v420
    %2544 = vmatpush.msra.mxu0 %v418
    %2545 = vmatpush.msra.mxu0 %v416
    %2546 = vmatpush.msra.mxu0 %v414
    %2547 = vmatpush.msra.mxu0 %v412
    %2548 = vmatpush.msra.mxu0 %v410
    %2549 = vmatpush.msra.mxu0 %v408
    %2550 = vmatpush.msra.mxu0 %v406
    %2551 = vmatpush.msra.mxu0 %v404
    %2552 = vmatpush.msra.mxu0 %v402
    %2553 = vmatpush.msra.mxu0 %v400
    %2554 = vmatpush.msra.mxu0 %v398
    %2555 = vmatpush.msra.mxu0 %v396
    %2556 = vmatpush.msra.mxu0 %v394
    %2557 = vmatpush.msra.mxu0 %v392
    %2558 = vmatpush.msra.mxu0 %v390
    %2559 = vmatmul.f32.gmra.mxu0 %v2294
    %v2560 = vpop.f32.mrf.mxu0
    %v2561 = vadd.f32 %v2541, %v2560
    %2562 = vdwg.mxu0
    %2563 = vmatpush.msra.mxu0 %v452
    %2564 = vmatpush.msra.mxu0 %v450
    %2565 = vmatpush.msra.mxu0 %v448
    %2566 = vmatpush.msra.mxu0 %v446
    %2567 = vmatpush.msra.mxu0 %v444
    %2568 = vmatpush.msra.mxu0 %v442
    %2569 = vmatpush.msra.mxu0 %v440
    %2570 = vmatpush.msra.mxu0 %v438
    %2571 = vmatpush.msra.mxu0 %v436
    %2572 = vmatpush.msra.mxu0 %v434
    %2573 = vmatpush.msra.mxu0 %v432
    %2574 = vmatpush.msra.mxu0 %v430
    %2575 = vmatpush.msra.mxu0 %v428
    %2576 = vmatpush.msra.mxu0 %v426
    %2577 = vmatpush.msra.mxu0 %v424
    %2578 = vmatpush.msra.mxu0 %v422
    %2579 = vmatmul.f32.gmra.mxu0 %v2295
    %v2580 = vpop.f32.mrf.mxu0
    %v2581 = vadd.f32 %v2561, %v2580
    %2582 = vdwg.mxu0
    %2583 = vmatpush.msra.mxu0 %v484
    %2584 = vmatpush.msra.mxu0 %v482
    %2585 = vmatpush.msra.mxu0 %v480
    %2586 = vmatpush.msra.mxu0 %v478
    %2587 = vmatpush.msra.mxu0 %v476
    %2588 = vmatpush.msra.mxu0 %v474
    %2589 = vmatpush.msra.mxu0 %v472
    %2590 = vmatpush.msra.mxu0 %v470
    %2591 = vmatpush.msra.mxu0 %v468
    %2592 = vmatpush.msra.mxu0 %v466
    %2593 = vmatpush.msra.mxu0 %v464
    %2594 = vmatpush.msra.mxu0 %v462
    %2595 = vmatpush.msra.mxu0 %v460
    %2596 = vmatpush.msra.mxu0 %v458
    %2597 = vmatpush.msra.mxu0 %v456
    %2598 = vmatpush.msra.mxu0 %v454
    %2599 = vmatmul.f32.gmra.mxu0 %v2296
    %v2600 = vpop.f32.mrf.mxu0
    %v2601 = vadd.f32 %v2581, %v2600
    %2602 = vdwg.mxu0
    %2603 = vmatpush.msra.mxu0 %v516
    %2604 = vmatpush.msra.mxu0 %v514
    %2605 = vmatpush.msra.mxu0 %v512
    %2606 = vmatpush.msra.mxu0 %v510
    %2607 = vmatpush.msra.mxu0 %v508
    %2608 = vmatpush.msra.mxu0 %v506
    %2609 = vmatpush.msra.mxu0 %v504
    %2610 = vmatpush.msra.mxu0 %v502
    %2611 = vmatpush.msra.mxu0 %v500
    %2612 = vmatpush.msra.mxu0 %v498
    %2613 = vmatpush.msra.mxu0 %v496
    %2614 = vmatpush.msra.mxu0 %v494
    %2615 = vmatpush.msra.mxu0 %v492
    %2616 = vmatpush.msra.mxu0 %v490
    %2617 = vmatpush.msra.mxu0 %v488
    %2618 = vmatpush.msra.mxu0 %v486
    %2619 = vmatmul.f32.gmra.mxu0 %v2297
    %v2620 = vpop.f32.mrf.mxu0
    %v2621 = vadd.f32 %v2601, %v2620
    %2622 = vdwg.mxu0
    %2623 = vmatpush.msra.mxu0 %v548
    %2624 = vmatpush.msra.mxu0 %v546
    %2625 = vmatpush.msra.mxu0 %v544
    %2626 = vmatpush.msra.mxu0 %v542
    %2627 = vmatpush.msra.mxu0 %v540
    %2628 = vmatpush.msra.mxu0 %v538
    %2629 = vmatpush.msra.mxu0 %v536
    %2630 = vmatpush.msra.mxu0 %v534
    %2631 = vmatpush.msra.mxu0 %v532
    %2632 = vmatpush.msra.mxu0 %v530
    %2633 = vmatpush.msra.mxu0 %v528
    %2634 = vmatpush.msra.mxu0 %v526
    %2635 = vmatpush.msra.mxu0 %v524
    %2636 = vmatpush.msra.mxu0 %v522
    %2637 = vmatpush.msra.mxu0 %v520
    %2638 = vmatpush.msra.mxu0 %v518
    %2639 = vmatmul.f32.gmra.mxu0 %v2298
    %v2640 = vpop.f32.mrf.mxu0
    %v2641 = vadd.f32 %v2621, %v2640
    %2642 = vdwg.mxu0
    %2643 = vmatpush.msra.mxu0 %v580
    %2644 = vmatpush.msra.mxu0 %v578
    %2645 = vmatpush.msra.mxu0 %v576
    %2646 = vmatpush.msra.mxu0 %v574
    %2647 = vmatpush.msra.mxu0 %v572
    %2648 = vmatpush.msra.mxu0 %v570
    %2649 = vmatpush.msra.mxu0 %v568
    %2650 = vmatpush.msra.mxu0 %v566
    %2651 = vmatpush.msra.mxu0 %v564
    %2652 = vmatpush.msra.mxu0 %v562
    %2653 = vmatpush.msra.mxu0 %v560
    %2654 = vmatpush.msra.mxu0 %v558
    %2655 = vmatpush.msra.mxu0 %v556
    %2656 = vmatpush.msra.mxu0 %v554
    %2657 = vmatpush.msra.mxu0 %v552
    %2658 = vmatpush.msra.mxu0 %v550
    %2659 = vmatmul.f32.gmra.mxu0 %v2300
    %v2660 = vpop.f32.mrf.mxu0
    %v2661 = vadd.f32 %v2641, %v2660
    %2662 = vdwg.mxu0
    %2663 = vmatpush.msra.mxu0 %v612
    %2664 = vmatpush.msra.mxu0 %v610
    %2665 = vmatpush.msra.mxu0 %v608
    %2666 = vmatpush.msra.mxu0 %v606
    %2667 = vmatpush.msra.mxu0 %v604
    %2668 = vmatpush.msra.mxu0 %v602
    %2669 = vmatpush.msra.mxu0 %v600
    %2670 = vmatpush.msra.mxu0 %v598
    %2671 = vmatpush.msra.mxu0 %v596
    %2672 = vmatpush.msra.mxu0 %v594
    %2673 = vmatpush.msra.mxu0 %v592
    %2674 = vmatpush.msra.mxu0 %v590
    %2675 = vmatpush.msra.mxu0 %v588
    %2676 = vmatpush.msra.mxu0 %v586
    %2677 = vmatpush.msra.mxu0 %v584
    %2678 = vmatpush.msra.mxu0 %v582
    %2679 = vmatmul.f32.gmra.mxu0 %v2301
    %v2680 = vpop.f32.mrf.mxu0
    %v2681 = vadd.f32 %v2661, %v2680
    %2682 = vdwg.mxu0
    %2683 = vmatpush.msra.mxu0 0.0
    %2684 = vmatpush.msra.mxu0 0.0
    %2685 = vmatpush.msra.mxu0 0.0
    %2686 = vmatpush.msra.mxu0 0.0
    %2687 = vmatpush.msra.mxu0 %v636
    %2688 = vmatpush.msra.mxu0 %v634
    %2689 = vmatpush.msra.mxu0 %v632
    %2690 = vmatpush.msra.mxu0 %v630
    %2691 = vmatpush.msra.mxu0 %v628
    %2692 = vmatpush.msra.mxu0 %v626
    %2693 = vmatpush.msra.mxu0 %v624
    %2694 = vmatpush.msra.mxu0 %v622
    %2695 = vmatpush.msra.mxu0 %v620
    %2696 = vmatpush.msra.mxu0 %v618
    %2697 = vmatpush.msra.mxu0 %v616
    %2698 = vmatpush.msra.mxu0 %v614
    %2699 = vmatmul.f32.gmra.mxu0 %v2321
    %v2700 = vpop.f32.mrf.mxu0
    %v2701 = vadd.f32 %v2681, %v2700
    %2702 = vdwg.mxu0
    %2703 = vmatpush.msra.mxu0 %v69
    %2704 = vmatpush.msra.mxu0 %v67
    %2705 = vmatpush.msra.mxu0 %v65
    %2706 = vmatpush.msra.mxu0 %v63
    %2707 = vmatpush.msra.mxu0 %v61
    %2708 = vmatpush.msra.mxu0 %v59
    %2709 = vmatpush.msra.mxu0 %v57
    %2710 = vmatpush.msra.mxu0 %v55
    %2711 = vmatpush.msra.mxu0 %v53
    %2712 = vmatpush.msra.mxu0 %v51
    %2713 = vmatpush.msra.mxu0 %v49
    %2714 = vmatpush.msra.mxu0 %v47
    %2715 = vmatpush.msra.mxu0 %v45
    %2716 = vmatpush.msra.mxu0 %v43
    %2717 = vmatpush.msra.mxu0 %v41
    %2718 = vmatpush.msra.mxu0 %v39
    %2719 = vmatmul.f32.gmra.mxu0 %v2281
    %v2720 = vpop.f32.mrf.mxu0
    %v2721 = vadd.f32 0.0, %v2720
    %2722 = vdwg.mxu0
    %2723 = vmatpush.msra.mxu0 %v101
    %2724 = vmatpush.msra.mxu0 %v99
    %2725 = vmatpush.msra.mxu0 %v97
    %2726 = vmatpush.msra.mxu0 %v95
    %2727 = vmatpush.msra.mxu0 %v93
    %2728 = vmatpush.msra.mxu0 %v91
    %2729 = vmatpush.msra.mxu0 %v89
    %2730 = vmatpush.msra.mxu0 %v87
    %2731 = vmatpush.msra.mxu0 %v85
    %2732 = vmatpush.msra.mxu0 %v83
    %2733 = vmatpush.msra.mxu0 %v81
    %2734 = vmatpush.msra.mxu0 %v79
    %2735 = vmatpush.msra.mxu0 %v77
    %2736 = vmatpush.msra.mxu0 %v75
    %2737 = vmatpush.msra.mxu0 %v73
    %2738 = vmatpush.msra.mxu0 %v71
    %2739 = vmatmul.f32.gmra.mxu0 %v2282
    %v2740 = vpop.f32.mrf.mxu0
    %v2741 = vadd.f32 %v2721, %v2740
    %2742 = vdwg.mxu0
    %2743 = vmatpush.msra.mxu0 %v133
    %2744 = vmatpush.msra.mxu0 %v131
    %2745 = vmatpush.msra.mxu0 %v129
    %2746 = vmatpush.msra.mxu0 %v127
    %2747 = vmatpush.msra.mxu0 %v125
    %2748 = vmatpush.msra.mxu0 %v123
    %2749 = vmatpush.msra.mxu0 %v121
    %2750 = vmatpush.msra.mxu0 %v119
    %2751 = vmatpush.msra.mxu0 %v117
    %2752 = vmatpush.msra.mxu0 %v115
    %2753 = vmatpush.msra.mxu0 %v113
    %2754 = vmatpush.msra.mxu0 %v111
    %2755 = vmatpush.msra.mxu0 %v109
    %2756 = vmatpush.msra.mxu0 %v107
    %2757 = vmatpush.msra.mxu0 %v105
    %2758 = vmatpush.msra.mxu0 %v103
    %2759 = vmatmul.f32.gmra.mxu0 %v2283
    %v2760 = vpop.f32.mrf.mxu0
    %v2761 = vadd.f32 %v2741, %v2760
    %2762 = vdwg.mxu0
    %2763 = vmatpush.msra.mxu0 %v165
    %2764 = vmatpush.msra.mxu0 %v163
    %2765 = vmatpush.msra.mxu0 %v161
    %2766 = vmatpush.msra.mxu0 %v159
    %2767 = vmatpush.msra.mxu0 %v157
    %2768 = vmatpush.msra.mxu0 %v155
    %2769 = vmatpush.msra.mxu0 %v153
    %2770 = vmatpush.msra.mxu0 %v151
    %2771 = vmatpush.msra.mxu0 %v149
    %2772 = vmatpush.msra.mxu0 %v147
    %2773 = vmatpush.msra.mxu0 %v145
    %2774 = vmatpush.msra.mxu0 %v143
    %2775 = vmatpush.msra.mxu0 %v141
    %2776 = vmatpush.msra.mxu0 %v139
    %2777 = vmatpush.msra.mxu0 %v137
    %2778 = vmatpush.msra.mxu0 %v135
    %2779 = vmatmul.f32.gmra.mxu0 %v2284
    %v2780 = vpop.f32.mrf.mxu0
    %v2781 = vadd.f32 %v2761, %v2780
    %2782 = vdwg.mxu0
    %2783 = vmatpush.msra.mxu0 %v197
    %2784 = vmatpush.msra.mxu0 %v195
    %2785 = vmatpush.msra.mxu0 %v193
    %2786 = vmatpush.msra.mxu0 %v191
    %2787 = vmatpush.msra.mxu0 %v189
    %2788 = vmatpush.msra.mxu0 %v187
    %2789 = vmatpush.msra.mxu0 %v185
    %2790 = vmatpush.msra.mxu0 %v183
    %2791 = vmatpush.msra.mxu0 %v181
    %2792 = vmatpush.msra.mxu0 %v179
    %2793 = vmatpush.msra.mxu0 %v177
    %2794 = vmatpush.msra.mxu0 %v175
    %2795 = vmatpush.msra.mxu0 %v173
    %2796 = vmatpush.msra.mxu0 %v171
    %2797 = vmatpush.msra.mxu0 %v169
    %2798 = vmatpush.msra.mxu0 %v167
    %2799 = vmatmul.f32.gmra.mxu0 %v2285
    %v2800 = vpop.f32.mrf.mxu0
    %v2801 = vadd.f32 %v2781, %v2800
    %2802 = vdwg.mxu0
    %2803 = vmatpush.msra.mxu0 %v229
    %2804 = vmatpush.msra.mxu0 %v227
    %2805 = vmatpush.msra.mxu0 %v225
    %2806 = vmatpush.msra.mxu0 %v223
    %2807 = vmatpush.msra.mxu0 %v221
    %2808 = vmatpush.msra.mxu0 %v219
    %2809 = vmatpush.msra.mxu0 %v217
    %2810 = vmatpush.msra.mxu0 %v215
    %2811 = vmatpush.msra.mxu0 %v213
    %2812 = vmatpush.msra.mxu0 %v211
    %2813 = vmatpush.msra.mxu0 %v209
    %2814 = vmatpush.msra.mxu0 %v207
    %2815 = vmatpush.msra.mxu0 %v205
    %2816 = vmatpush.msra.mxu0 %v203
    %2817 = vmatpush.msra.mxu0 %v201
    %2818 = vmatpush.msra.mxu0 %v199
    %2819 = vmatmul.f32.gmra.mxu0 %v2286
    %v2820 = vpop.f32.mrf.mxu0
    %v2821 = vadd.f32 %v2801, %v2820
    %2822 = vdwg.mxu0
    %2823 = vmatpush.msra.mxu0 %v261
    %2824 = vmatpush.msra.mxu0 %v259
    %2825 = vmatpush.msra.mxu0 %v257
    %2826 = vmatpush.msra.mxu0 %v255
    %2827 = vmatpush.msra.mxu0 %v253
    %2828 = vmatpush.msra.mxu0 %v251
    %2829 = vmatpush.msra.mxu0 %v249
    %2830 = vmatpush.msra.mxu0 %v247
    %2831 = vmatpush.msra.mxu0 %v245
    %2832 = vmatpush.msra.mxu0 %v243
    %2833 = vmatpush.msra.mxu0 %v241
    %2834 = vmatpush.msra.mxu0 %v239
    %2835 = vmatpush.msra.mxu0 %v237
    %2836 = vmatpush.msra.mxu0 %v235
    %2837 = vmatpush.msra.mxu0 %v233
    %2838 = vmatpush.msra.mxu0 %v231
    %2839 = vmatmul.f32.gmra.mxu0 %v2287
    %v2840 = vpop.f32.mrf.mxu0
    %v2841 = vadd.f32 %v2821, %v2840
    %2842 = vdwg.mxu0
    %2843 = vmatpush.msra.mxu0 %v293
    %2844 = vmatpush.msra.mxu0 %v291
    %2845 = vmatpush.msra.mxu0 %v289
    %2846 = vmatpush.msra.mxu0 %v287
    %2847 = vmatpush.msra.mxu0 %v285
    %2848 = vmatpush.msra.mxu0 %v283
    %2849 = vmatpush.msra.mxu0 %v281
    %2850 = vmatpush.msra.mxu0 %v279
    %2851 = vmatpush.msra.mxu0 %v277
    %2852 = vmatpush.msra.mxu0 %v275
    %2853 = vmatpush.msra.mxu0 %v273
    %2854 = vmatpush.msra.mxu0 %v271
    %2855 = vmatpush.msra.mxu0 %v269
    %2856 = vmatpush.msra.mxu0 %v267
    %2857 = vmatpush.msra.mxu0 %v265
    %2858 = vmatpush.msra.mxu0 %v263
    %2859 = vmatmul.f32.gmra.mxu0 %v2288
    %v2860 = vpop.f32.mrf.mxu0
    %v2861 = vadd.f32 %v2841, %v2860
    %2862 = vdwg.mxu0
    %2863 = vmatpush.msra.mxu0 %v325
    %2864 = vmatpush.msra.mxu0 %v323
    %2865 = vmatpush.msra.mxu0 %v321
    %2866 = vmatpush.msra.mxu0 %v319
    %2867 = vmatpush.msra.mxu0 %v317
    %2868 = vmatpush.msra.mxu0 %v315
    %2869 = vmatpush.msra.mxu0 %v313
    %2870 = vmatpush.msra.mxu0 %v311
    %2871 = vmatpush.msra.mxu0 %v309
    %2872 = vmatpush.msra.mxu0 %v307
    %2873 = vmatpush.msra.mxu0 %v305
    %2874 = vmatpush.msra.mxu0 %v303
    %2875 = vmatpush.msra.mxu0 %v301
    %2876 = vmatpush.msra.mxu0 %v299
    %2877 = vmatpush.msra.mxu0 %v297
    %2878 = vmatpush.msra.mxu0 %v295
    %2879 = vmatmul.f32.gmra.mxu0 %v2291
    %v2880 = vpop.f32.mrf.mxu0
    %v2881 = vadd.f32 %v2861, %v2880
    %2882 = vdwg.mxu0
    %2883 = vmatpush.msra.mxu0 %v357
    %2884 = vmatpush.msra.mxu0 %v355
    %2885 = vmatpush.msra.mxu0 %v353
    %2886 = vmatpush.msra.mxu0 %v351
    %2887 = vmatpush.msra.mxu0 %v349
    %2888 = vmatpush.msra.mxu0 %v347
    %2889 = vmatpush.msra.mxu0 %v345
    %2890 = vmatpush.msra.mxu0 %v343
    %2891 = vmatpush.msra.mxu0 %v341
    %2892 = vmatpush.msra.mxu0 %v339
    %2893 = vmatpush.msra.mxu0 %v337
    %2894 = vmatpush.msra.mxu0 %v335
    %2895 = vmatpush.msra.mxu0 %v333
    %2896 = vmatpush.msra.mxu0 %v331
    %2897 = vmatpush.msra.mxu0 %v329
    %2898 = vmatpush.msra.mxu0 %v327
    %2899 = vmatmul.f32.gmra.mxu0 %v2292
    %v2900 = vpop.f32.mrf.mxu0
    %v2901 = vadd.f32 %v2881, %v2900
    %2902 = vdwg.mxu0
    %2903 = vmatpush.msra.mxu0 %v389
    %2904 = vmatpush.msra.mxu0 %v387
    %2905 = vmatpush.msra.mxu0 %v385
    %2906 = vmatpush.msra.mxu0 %v383
    %2907 = vmatpush.msra.mxu0 %v381
    %2908 = vmatpush.msra.mxu0 %v379
    %2909 = vmatpush.msra.mxu0 %v377
    %2910 = vmatpush.msra.mxu0 %v375
    %2911 = vmatpush.msra.mxu0 %v373
    %2912 = vmatpush.msra.mxu0 %v371
    %2913 = vmatpush.msra.mxu0 %v369
    %2914 = vmatpush.msra.mxu0 %v367
    %2915 = vmatpush.msra.mxu0 %v365
    %2916 = vmatpush.msra.mxu0 %v363
    %2917 = vmatpush.msra.mxu0 %v361
    %2918 = vmatpush.msra.mxu0 %v359
    %2919 = vmatmul.f32.gmra.mxu0 %v2293
    %v2920 = vpop.f32.mrf.mxu0
    %v2921 = vadd.f32 %v2901, %v2920
    %2922 = vdwg.mxu0
    %2923 = vmatpush.msra.mxu0 %v421
    %2924 = vmatpush.msra.mxu0 %v419
    %2925 = vmatpush.msra.mxu0 %v417
    %2926 = vmatpush.msra.mxu0 %v415
    %2927 = vmatpush.msra.mxu0 %v413
    %2928 = vmatpush.msra.mxu0 %v411
    %2929 = vmatpush.msra.mxu0 %v409
    %2930 = vmatpush.msra.mxu0 %v407
    %2931 = vmatpush.msra.mxu0 %v405
    %2932 = vmatpush.msra.mxu0 %v403
    %2933 = vmatpush.msra.mxu0 %v401
    %2934 = vmatpush.msra.mxu0 %v399
    %2935 = vmatpush.msra.mxu0 %v397
    %2936 = vmatpush.msra.mxu0 %v395
    %2937 = vmatpush.msra.mxu0 %v393
    %2938 = vmatpush.msra.mxu0 %v391
    %2939 = vmatmul.f32.gmra.mxu0 %v2294
    %v2940 = vpop.f32.mrf.mxu0
    %v2941 = vadd.f32 %v2921, %v2940
    %2942 = vdwg.mxu0
    %2943 = vmatpush.msra.mxu0 %v453
    %2944 = vmatpush.msra.mxu0 %v451
    %2945 = vmatpush.msra.mxu0 %v449
    %2946 = vmatpush.msra.mxu0 %v447
    %2947 = vmatpush.msra.mxu0 %v445
    %2948 = vmatpush.msra.mxu0 %v443
    %2949 = vmatpush.msra.mxu0 %v441
    %2950 = vmatpush.msra.mxu0 %v439
    %2951 = vmatpush.msra.mxu0 %v437
    %2952 = vmatpush.msra.mxu0 %v435
    %2953 = vmatpush.msra.mxu0 %v433
    %2954 = vmatpush.msra.mxu0 %v431
    %2955 = vmatpush.msra.mxu0 %v429
    %2956 = vmatpush.msra.mxu0 %v427
    %2957 = vmatpush.msra.mxu0 %v425
    %2958 = vmatpush.msra.mxu0 %v423
    %2959 = vmatmul.f32.gmra.mxu0 %v2295
    %v2960 = vpop.f32.mrf.mxu0
    %v2961 = vadd.f32 %v2941, %v2960
    %2962 = vdwg.mxu0
    %2963 = vmatpush.msra.mxu0 %v485
    %2964 = vmatpush.msra.mxu0 %v483
    %2965 = vmatpush.msra.mxu0 %v481
    %2966 = vmatpush.msra.mxu0 %v479
    %2967 = vmatpush.msra.mxu0 %v477
    %2968 = vmatpush.msra.mxu0 %v475
    %2969 = vmatpush.msra.mxu0 %v473
    %2970 = vmatpush.msra.mxu0 %v471
    %2971 = vmatpush.msra.mxu0 %v469
    %2972 = vmatpush.msra.mxu0 %v467
    %2973 = vmatpush.msra.mxu0 %v465
    %2974 = vmatpush.msra.mxu0 %v463
    %2975 = vmatpush.msra.mxu0 %v461
    %2976 = vmatpush.msra.mxu0 %v459
    %2977 = vmatpush.msra.mxu0 %v457
    %2978 = vmatpush.msra.mxu0 %v455
    %2979 = vmatmul.f32.gmra.mxu0 %v2296
    %v2980 = vpop.f32.mrf.mxu0
    %v2981 = vadd.f32 %v2961, %v2980
    %2982 = vdwg.mxu0
    %2983 = vmatpush.msra.mxu0 %v517
    %2984 = vmatpush.msra.mxu0 %v515
    %2985 = vmatpush.msra.mxu0 %v513
    %2986 = vmatpush.msra.mxu0 %v511
    %2987 = vmatpush.msra.mxu0 %v509
    %2988 = vmatpush.msra.mxu0 %v507
    %2989 = vmatpush.msra.mxu0 %v505
    %2990 = vmatpush.msra.mxu0 %v503
    %2991 = vmatpush.msra.mxu0 %v501
    %2992 = vmatpush.msra.mxu0 %v499
    %2993 = vmatpush.msra.mxu0 %v497
    %2994 = vmatpush.msra.mxu0 %v495
    %2995 = vmatpush.msra.mxu0 %v493
    %2996 = vmatpush.msra.mxu0 %v491
    %2997 = vmatpush.msra.mxu0 %v489
    %2998 = vmatpush.msra.mxu0 %v487
    %2999 = vmatmul.f32.gmra.mxu0 %v2297
    %v3000 = vpop.f32.mrf.mxu0
    %v3001 = vadd.f32 %v2981, %v3000
    %3002 = vdwg.mxu0
    %3003 = vmatpush.msra.mxu0 %v549
    %3004 = vmatpush.msra.mxu0 %v547
    %3005 = vmatpush.msra.mxu0 %v545
    %3006 = vmatpush.msra.mxu0 %v543
    %3007 = vmatpush.msra.mxu0 %v541
    %3008 = vmatpush.msra.mxu0 %v539
    %3009 = vmatpush.msra.mxu0 %v537
    %3010 = vmatpush.msra.mxu0 %v535
    %3011 = vmatpush.msra.mxu0 %v533
    %3012 = vmatpush.msra.mxu0 %v531
    %3013 = vmatpush.msra.mxu0 %v529
    %3014 = vmatpush.msra.mxu0 %v527
    %3015 = vmatpush.msra.mxu0 %v525
    %3016 = vmatpush.msra.mxu0 %v523
    %3017 = vmatpush.msra.mxu0 %v521
    %3018 = vmatpush.msra.mxu0 %v519
    %3019 = vmatmul.f32.gmra.mxu0 %v2298
    %v3020 = vpop.f32.mrf.mxu0
    %v3021 = vadd.f32 %v3001, %v3020
    %3022 = vdwg.mxu0
    %3023 = vmatpush.msra.mxu0 %v581
    %3024 = vmatpush.msra.mxu0 %v579
    %3025 = vmatpush.msra.mxu0 %v577
    %3026 = vmatpush.msra.mxu0 %v575
    %3027 = vmatpush.msra.mxu0 %v573
    %3028 = vmatpush.msra.mxu0 %v571
    %3029 = vmatpush.msra.mxu0 %v569
    %3030 = vmatpush.msra.mxu0 %v567
    %3031 = vmatpush.msra.mxu0 %v565
    %3032 = vmatpush.msra.mxu0 %v563
    %3033 = vmatpush.msra.mxu0 %v561
    %3034 = vmatpush.msra.mxu0 %v559
    %3035 = vmatpush.msra.mxu0 %v557
    %3036 = vmatpush.msra.mxu0 %v555
    %3037 = vmatpush.msra.mxu0 %v553
    %3038 = vmatpush.msra.mxu0 %v551
    %3039 = vmatmul.f32.gmra.mxu0 %v2300
    %v3040 = vpop.f32.mrf.mxu0
    %v3041 = vadd.f32 %v3021, %v3040
    %3042 = vdwg.mxu0
    %3043 = vmatpush.msra.mxu0 %v613
    %3044 = vmatpush.msra.mxu0 %v611
    %3045 = vmatpush.msra.mxu0 %v609
    %3046 = vmatpush.msra.mxu0 %v607
    %3047 = vmatpush.msra.mxu0 %v605
    %3048 = vmatpush.msra.mxu0 %v603
    %3049 = vmatpush.msra.mxu0 %v601
    %3050 = vmatpush.msra.mxu0 %v599
    %3051 = vmatpush.msra.mxu0 %v597
    %3052 = vmatpush.msra.mxu0 %v595
    %3053 = vmatpush.msra.mxu0 %v593
    %3054 = vmatpush.msra.mxu0 %v591
    %3055 = vmatpush.msra.mxu0 %v589
    %3056 = vmatpush.msra.mxu0 %v587
    %3057 = vmatpush.msra.mxu0 %v585
    %3058 = vmatpush.msra.mxu0 %v583
    %3059 = vmatmul.f32.gmra.mxu0 %v2301
    %v3060 = vpop.f32.mrf.mxu0
    %v3061 = vadd.f32 %v3041, %v3060
    %3062 = vdwg.mxu0
    %3063 = vmatpush.msra.mxu0 0.0
    %3064 = vmatpush.msra.mxu0 0.0
    %3065 = vmatpush.msra.mxu0 0.0
    %3066 = vmatpush.msra.mxu0 0.0
    %3067 = vmatpush.msra.mxu0 %v637
    %3068 = vmatpush.msra.mxu0 %v635
    %3069 = vmatpush.msra.mxu0 %v633
    %3070 = vmatpush.msra.mxu0 %v631
    %3071 = vmatpush.msra.mxu0 %v629
    %3072 = vmatpush.msra.mxu0 %v627
    %3073 = vmatpush.msra.mxu0 %v625
    %3074 = vmatpush.msra.mxu0 %v623
    %3075 = vmatpush.msra.mxu0 %v621
    %3076 = vmatpush.msra.mxu0 %v619
    %3077 = vmatpush.msra.mxu0 %v617
    %3078 = vmatpush.msra.mxu0 %v615
    %3079 = vmatmul.f32.gmra.mxu0 %v2321
    %v3080 = vpop.f32.mrf.mxu0
    %v3081 = vadd.f32 %v3061, %v3080
    %3082 = vdwg.mxu0
    %v3083 = vmax.f32 %v2265, %v2701
    %v3084 = vmax.f32 %v2266, %v3081
    %s3085 = scalar_lea.vmem %s0, 114
    %v3086 = vld [vmem:[%s3085] sm:$0xff]
    %v3087 = vld [vmem:[%s3085 + $0x8] sm:$0xff]
    %v3088 = vld [vmem:[%s3085 + $0x10] sm:$0xff]
    %v3089 = vld [vmem:[%s3085 + $0x18] sm:$0xff]
    %v3090 = vld [vmem:[%s3085 + $0x20] sm:$0x3f]
    %3096 = vst [vmem:[#allocation1] ss:$4 sm:$0xff] %v3086
    %s3097 = scalar_lea.vmem [#allocation1], 32
    %3098 = vst [vmem:[%s3097] ss:$4 sm:$0xff] %v3087
    %v3099 = vld.sshfl [vmem:[#allocation1] sm:$0xff pattern:$0x73625140]
    %v3100 = vld.sshfl [vmem:[#allocation1 + $0x8] sm:$0xff pattern:$0x73625140]
    %v3101 = vld.sshfl [vmem:[#allocation1 + $0x10] sm:$0xff pattern:$0x73625140]
    %v3102 = vld.sshfl [vmem:[#allocation1 + $0x18] sm:$0xff pattern:$0x73625140]
    %v3103 = vld.sshfl [vmem:[#allocation1 + $0x20] sm:$0xff pattern:$0x73625140]
    %v3104 = vld.sshfl [vmem:[#allocation1 + $0x28] sm:$0xff pattern:$0x73625140]
    %v3105 = vld.sshfl [vmem:[#allocation1 + $0x30] sm:$0xff pattern:$0x73625140]
    %v3106 = vld.sshfl [vmem:[#allocation1 + $0x38] sm:$0xff pattern:$0x73625140]
    %3107 = vst [vmem:[#allocation1] ss:$4 sm:$0xff] %v3088
    %3108 = vst [vmem:[%s3097] ss:$4 sm:$0xff] %v3089
    %v3109 = vld.sshfl [vmem:[#allocation1] sm:$0xff pattern:$0x73625140]
    %v3110 = vld.sshfl [vmem:[#allocation1 + $0x8] sm:$0xff pattern:$0x73625140]
    %v3111 = vld.sshfl [vmem:[#allocation1 + $0x10] sm:$0xff pattern:$0x73625140]
    %v3112 = vld.sshfl [vmem:[#allocation1 + $0x18] sm:$0xff pattern:$0x73625140]
    %v3113 = vld.sshfl [vmem:[#allocation1 + $0x20] sm:$0xff pattern:$0x73625140]
    %v3114 = vld.sshfl [vmem:[#allocation1 + $0x28] sm:$0xff pattern:$0x73625140]
    %v3115 = vld.sshfl [vmem:[#allocation1 + $0x30] sm:$0xff pattern:$0x73625140]
    %v3116 = vld.sshfl [vmem:[#allocation1 + $0x38] sm:$0xff pattern:$0x73625140]
    %3117 = vst [vmem:[#allocation1] ss:$4 sm:$0xff] %v3090
    %v3118 = vld.sshfl [vmem:[#allocation1] sm:$0xff pattern:$0x73625140]
    %v3119 = vld.sshfl [vmem:[#allocation1 + $0x8] sm:$0xff pattern:$0x73625140]
    %v3120 = vld.sshfl [vmem:[#allocation1 + $0x10] sm:$0xff pattern:$0x73625140]
    %v3139 = vsel %vm686, %v3120, 0
    %3141 = vmatpush.msra.mxu0 %v68
    %3142 = vmatpush.msra.mxu0 %v66
    %3143 = vmatpush.msra.mxu0 %v64
    %3144 = vmatpush.msra.mxu0 %v62
    %3145 = vmatpush.msra.mxu0 %v60
    %3146 = vmatpush.msra.mxu0 %v58
    %3147 = vmatpush.msra.mxu0 %v56
    %3148 = vmatpush.msra.mxu0 %v54
    %3149 = vmatpush.msra.mxu0 %v52
    %3150 = vmatpush.msra.mxu0 %v50
    %3151 = vmatpush.msra.mxu0 %v48
    %3152 = vmatpush.msra.mxu0 %v46
    %3153 = vmatpush.msra.mxu0 %v44
    %3154 = vmatpush.msra.mxu0 %v42
    %3155 = vmatpush.msra.mxu0 %v40
    %3156 = vmatpush.msra.mxu0 %v38
    %3157 = vmatmul.f32.gmra.mxu0 %v3099
    %v3158 = vpop.f32.mrf.mxu0
    %v3159 = vadd.f32 0.0, %v3158
    %3160 = vdwg.mxu0
    %3161 = vmatpush.msra.mxu0 %v100
    %3162 = vmatpush.msra.mxu0 %v98
    %3163 = vmatpush.msra.mxu0 %v96
    %3164 = vmatpush.msra.mxu0 %v94
    %3165 = vmatpush.msra.mxu0 %v92
    %3166 = vmatpush.msra.mxu0 %v90
    %3167 = vmatpush.msra.mxu0 %v88
    %3168 = vmatpush.msra.mxu0 %v86
    %3169 = vmatpush.msra.mxu0 %v84
    %3170 = vmatpush.msra.mxu0 %v82
    %3171 = vmatpush.msra.mxu0 %v80
    %3172 = vmatpush.msra.mxu0 %v78
    %3173 = vmatpush.msra.mxu0 %v76
    %3174 = vmatpush.msra.mxu0 %v74
    %3175 = vmatpush.msra.mxu0 %v72
    %3176 = vmatpush.msra.mxu0 %v70
    %3177 = vmatmul.f32.gmra.mxu0 %v3100
    %v3178 = vpop.f32.mrf.mxu0
    %v3179 = vadd.f32 %v3159, %v3178
    %3180 = vdwg.mxu0
    %3181 = vmatpush.msra.mxu0 %v132
    %3182 = vmatpush.msra.mxu0 %v130
    %3183 = vmatpush.msra.mxu0 %v128
    %3184 = vmatpush.msra.mxu0 %v126
    %3185 = vmatpush.msra.mxu0 %v124
    %3186 = vmatpush.msra.mxu0 %v122
    %3187 = vmatpush.msra.mxu0 %v120
    %3188 = vmatpush.msra.mxu0 %v118
    %3189 = vmatpush.msra.mxu0 %v116
    %3190 = vmatpush.msra.mxu0 %v114
    %3191 = vmatpush.msra.mxu0 %v112
    %3192 = vmatpush.msra.mxu0 %v110
    %3193 = vmatpush.msra.mxu0 %v108
    %3194 = vmatpush.msra.mxu0 %v106
    %3195 = vmatpush.msra.mxu0 %v104
    %3196 = vmatpush.msra.mxu0 %v102
    %3197 = vmatmul.f32.gmra.mxu0 %v3101
    %v3198 = vpop.f32.mrf.mxu0
    %v3199 = vadd.f32 %v3179, %v3198
    %3200 = vdwg.mxu0
    %3201 = vmatpush.msra.mxu0 %v164
    %3202 = vmatpush.msra.mxu0 %v162
    %3203 = vmatpush.msra.mxu0 %v160
    %3204 = vmatpush.msra.mxu0 %v158
    %3205 = vmatpush.msra.mxu0 %v156
    %3206 = vmatpush.msra.mxu0 %v154
    %3207 = vmatpush.msra.mxu0 %v152
    %3208 = vmatpush.msra.mxu0 %v150
    %3209 = vmatpush.msra.mxu0 %v148
    %3210 = vmatpush.msra.mxu0 %v146
    %3211 = vmatpush.msra.mxu0 %v144
    %3212 = vmatpush.msra.mxu0 %v142
    %3213 = vmatpush.msra.mxu0 %v140
    %3214 = vmatpush.msra.mxu0 %v138
    %3215 = vmatpush.msra.mxu0 %v136
    %3216 = vmatpush.msra.mxu0 %v134
    %3217 = vmatmul.f32.gmra.mxu0 %v3102
    %v3218 = vpop.f32.mrf.mxu0
    %v3219 = vadd.f32 %v3199, %v3218
    %3220 = vdwg.mxu0
    %3221 = vmatpush.msra.mxu0 %v196
    %3222 = vmatpush.msra.mxu0 %v194
    %3223 = vmatpush.msra.mxu0 %v192
    %3224 = vmatpush.msra.mxu0 %v190
    %3225 = vmatpush.msra.mxu0 %v188
    %3226 = vmatpush.msra.mxu0 %v186
    %3227 = vmatpush.msra.mxu0 %v184
    %3228 = vmatpush.msra.mxu0 %v182
    %3229 = vmatpush.msra.mxu0 %v180
    %3230 = vmatpush.msra.mxu0 %v178
    %3231 = vmatpush.msra.mxu0 %v176
    %3232 = vmatpush.msra.mxu0 %v174
    %3233 = vmatpush.msra.mxu0 %v172
    %3234 = vmatpush.msra.mxu0 %v170
    %3235 = vmatpush.msra.mxu0 %v168
    %3236 = vmatpush.msra.mxu0 %v166
    %3237 = vmatmul.f32.gmra.mxu0 %v3103
    %v3238 = vpop.f32.mrf.mxu0
    %v3239 = vadd.f32 %v3219, %v3238
    %3240 = vdwg.mxu0
    %3241 = vmatpush.msra.mxu0 %v228
    %3242 = vmatpush.msra.mxu0 %v226
    %3243 = vmatpush.msra.mxu0 %v224
    %3244 = vmatpush.msra.mxu0 %v222
    %3245 = vmatpush.msra.mxu0 %v220
    %3246 = vmatpush.msra.mxu0 %v218
    %3247 = vmatpush.msra.mxu0 %v216
    %3248 = vmatpush.msra.mxu0 %v214
    %3249 = vmatpush.msra.mxu0 %v212
    %3250 = vmatpush.msra.mxu0 %v210
    %3251 = vmatpush.msra.mxu0 %v208
    %3252 = vmatpush.msra.mxu0 %v206
    %3253 = vmatpush.msra.mxu0 %v204
    %3254 = vmatpush.msra.mxu0 %v202
    %3255 = vmatpush.msra.mxu0 %v200
    %3256 = vmatpush.msra.mxu0 %v198
    %3257 = vmatmul.f32.gmra.mxu0 %v3104
    %v3258 = vpop.f32.mrf.mxu0
    %v3259 = vadd.f32 %v3239, %v3258
    %3260 = vdwg.mxu0
    %3261 = vmatpush.msra.mxu0 %v260
    %3262 = vmatpush.msra.mxu0 %v258
    %3263 = vmatpush.msra.mxu0 %v256
    %3264 = vmatpush.msra.mxu0 %v254
    %3265 = vmatpush.msra.mxu0 %v252
    %3266 = vmatpush.msra.mxu0 %v250
    %3267 = vmatpush.msra.mxu0 %v248
    %3268 = vmatpush.msra.mxu0 %v246
    %3269 = vmatpush.msra.mxu0 %v244
    %3270 = vmatpush.msra.mxu0 %v242
    %3271 = vmatpush.msra.mxu0 %v240
    %3272 = vmatpush.msra.mxu0 %v238
    %3273 = vmatpush.msra.mxu0 %v236
    %3274 = vmatpush.msra.mxu0 %v234
    %3275 = vmatpush.msra.mxu0 %v232
    %3276 = vmatpush.msra.mxu0 %v230
    %3277 = vmatmul.f32.gmra.mxu0 %v3105
    %v3278 = vpop.f32.mrf.mxu0
    %v3279 = vadd.f32 %v3259, %v3278
    %3280 = vdwg.mxu0
    %3281 = vmatpush.msra.mxu0 %v292
    %3282 = vmatpush.msra.mxu0 %v290
    %3283 = vmatpush.msra.mxu0 %v288
    %3284 = vmatpush.msra.mxu0 %v286
    %3285 = vmatpush.msra.mxu0 %v284
    %3286 = vmatpush.msra.mxu0 %v282
    %3287 = vmatpush.msra.mxu0 %v280
    %3288 = vmatpush.msra.mxu0 %v278
    %3289 = vmatpush.msra.mxu0 %v276
    %3290 = vmatpush.msra.mxu0 %v274
    %3291 = vmatpush.msra.mxu0 %v272
    %3292 = vmatpush.msra.mxu0 %v270
    %3293 = vmatpush.msra.mxu0 %v268
    %3294 = vmatpush.msra.mxu0 %v266
    %3295 = vmatpush.msra.mxu0 %v264
    %3296 = vmatpush.msra.mxu0 %v262
    %3297 = vmatmul.f32.gmra.mxu0 %v3106
    %v3298 = vpop.f32.mrf.mxu0
    %v3299 = vadd.f32 %v3279, %v3298
    %3300 = vdwg.mxu0
    %3301 = vmatpush.msra.mxu0 %v324
    %3302 = vmatpush.msra.mxu0 %v322
    %3303 = vmatpush.msra.mxu0 %v320
    %3304 = vmatpush.msra.mxu0 %v318
    %3305 = vmatpush.msra.mxu0 %v316
    %3306 = vmatpush.msra.mxu0 %v314
    %3307 = vmatpush.msra.mxu0 %v312
    %3308 = vmatpush.msra.mxu0 %v310
    %3309 = vmatpush.msra.mxu0 %v308
    %3310 = vmatpush.msra.mxu0 %v306
    %3311 = vmatpush.msra.mxu0 %v304
    %3312 = vmatpush.msra.mxu0 %v302
    %3313 = vmatpush.msra.mxu0 %v300
    %3314 = vmatpush.msra.mxu0 %v298
    %3315 = vmatpush.msra.mxu0 %v296
    %3316 = vmatpush.msra.mxu0 %v294
    %3317 = vmatmul.f32.gmra.mxu0 %v3109
    %v3318 = vpop.f32.mrf.mxu0
    %v3319 = vadd.f32 %v3299, %v3318
    %3320 = vdwg.mxu0
    %3321 = vmatpush.msra.mxu0 %v356
    %3322 = vmatpush.msra.mxu0 %v354
    %3323 = vmatpush.msra.mxu0 %v352
    %3324 = vmatpush.msra.mxu0 %v350
    %3325 = vmatpush.msra.mxu0 %v348
    %3326 = vmatpush.msra.mxu0 %v346
    %3327 = vmatpush.msra.mxu0 %v344
    %3328 = vmatpush.msra.mxu0 %v342
    %3329 = vmatpush.msra.mxu0 %v340
    %3330 = vmatpush.msra.mxu0 %v338
    %3331 = vmatpush.msra.mxu0 %v336
    %3332 = vmatpush.msra.mxu0 %v334
    %3333 = vmatpush.msra.mxu0 %v332
    %3334 = vmatpush.msra.mxu0 %v330
    %3335 = vmatpush.msra.mxu0 %v328
    %3336 = vmatpush.msra.mxu0 %v326
    %3337 = vmatmul.f32.gmra.mxu0 %v3110
    %v3338 = vpop.f32.mrf.mxu0
    %v3339 = vadd.f32 %v3319, %v3338
    %3340 = vdwg.mxu0
    %3341 = vmatpush.msra.mxu0 %v388
    %3342 = vmatpush.msra.mxu0 %v386
    %3343 = vmatpush.msra.mxu0 %v384
    %3344 = vmatpush.msra.mxu0 %v382
    %3345 = vmatpush.msra.mxu0 %v380
    %3346 = vmatpush.msra.mxu0 %v378
    %3347 = vmatpush.msra.mxu0 %v376
    %3348 = vmatpush.msra.mxu0 %v374
    %3349 = vmatpush.msra.mxu0 %v372
    %3350 = vmatpush.msra.mxu0 %v370
    %3351 = vmatpush.msra.mxu0 %v368
    %3352 = vmatpush.msra.mxu0 %v366
    %3353 = vmatpush.msra.mxu0 %v364
    %3354 = vmatpush.msra.mxu0 %v362
    %3355 = vmatpush.msra.mxu0 %v360
    %3356 = vmatpush.msra.mxu0 %v358
    %3357 = vmatmul.f32.gmra.mxu0 %v3111
    %v3358 = vpop.f32.mrf.mxu0
    %v3359 = vadd.f32 %v3339, %v3358
    %3360 = vdwg.mxu0
    %3361 = vmatpush.msra.mxu0 %v420
    %3362 = vmatpush.msra.mxu0 %v418
    %3363 = vmatpush.msra.mxu0 %v416
    %3364 = vmatpush.msra.mxu0 %v414
    %3365 = vmatpush.msra.mxu0 %v412
    %3366 = vmatpush.msra.mxu0 %v410
    %3367 = vmatpush.msra.mxu0 %v408
    %3368 = vmatpush.msra.mxu0 %v406
    %3369 = vmatpush.msra.mxu0 %v404
    %3370 = vmatpush.msra.mxu0 %v402
    %3371 = vmatpush.msra.mxu0 %v400
    %3372 = vmatpush.msra.mxu0 %v398
    %3373 = vmatpush.msra.mxu0 %v396
    %3374 = vmatpush.msra.mxu0 %v394
    %3375 = vmatpush.msra.mxu0 %v392
    %3376 = vmatpush.msra.mxu0 %v390
    %3377 = vmatmul.f32.gmra.mxu0 %v3112
    %v3378 = vpop.f32.mrf.mxu0
    %v3379 = vadd.f32 %v3359, %v3378
    %3380 = vdwg.mxu0
    %3381 = vmatpush.msra.mxu0 %v452
    %3382 = vmatpush.msra.mxu0 %v450
    %3383 = vmatpush.msra.mxu0 %v448
    %3384 = vmatpush.msra.mxu0 %v446
    %3385 = vmatpush.msra.mxu0 %v444
    %3386 = vmatpush.msra.mxu0 %v442
    %3387 = vmatpush.msra.mxu0 %v440
    %3388 = vmatpush.msra.mxu0 %v438
    %3389 = vmatpush.msra.mxu0 %v436
    %3390 = vmatpush.msra.mxu0 %v434
    %3391 = vmatpush.msra.mxu0 %v432
    %3392 = vmatpush.msra.mxu0 %v430
    %3393 = vmatpush.msra.mxu0 %v428
    %3394 = vmatpush.msra.mxu0 %v426
    %3395 = vmatpush.msra.mxu0 %v424
    %3396 = vmatpush.msra.mxu0 %v422
    %3397 = vmatmul.f32.gmra.mxu0 %v3113
    %v3398 = vpop.f32.mrf.mxu0
    %v3399 = vadd.f32 %v3379, %v3398
    %3400 = vdwg.mxu0
    %3401 = vmatpush.msra.mxu0 %v484
    %3402 = vmatpush.msra.mxu0 %v482
    %3403 = vmatpush.msra.mxu0 %v480
    %3404 = vmatpush.msra.mxu0 %v478
    %3405 = vmatpush.msra.mxu0 %v476
    %3406 = vmatpush.msra.mxu0 %v474
    %3407 = vmatpush.msra.mxu0 %v472
    %3408 = vmatpush.msra.mxu0 %v470
    %3409 = vmatpush.msra.mxu0 %v468
    %3410 = vmatpush.msra.mxu0 %v466
    %3411 = vmatpush.msra.mxu0 %v464
    %3412 = vmatpush.msra.mxu0 %v462
    %3413 = vmatpush.msra.mxu0 %v460
    %3414 = vmatpush.msra.mxu0 %v458
    %3415 = vmatpush.msra.mxu0 %v456
    %3416 = vmatpush.msra.mxu0 %v454
    %3417 = vmatmul.f32.gmra.mxu0 %v3114
    %v3418 = vpop.f32.mrf.mxu0
    %v3419 = vadd.f32 %v3399, %v3418
    %3420 = vdwg.mxu0
    %3421 = vmatpush.msra.mxu0 %v516
    %3422 = vmatpush.msra.mxu0 %v514
    %3423 = vmatpush.msra.mxu0 %v512
    %3424 = vmatpush.msra.mxu0 %v510
    %3425 = vmatpush.msra.mxu0 %v508
    %3426 = vmatpush.msra.mxu0 %v506
    %3427 = vmatpush.msra.mxu0 %v504
    %3428 = vmatpush.msra.mxu0 %v502
    %3429 = vmatpush.msra.mxu0 %v500
    %3430 = vmatpush.msra.mxu0 %v498
    %3431 = vmatpush.msra.mxu0 %v496
    %3432 = vmatpush.msra.mxu0 %v494
    %3433 = vmatpush.msra.mxu0 %v492
    %3434 = vmatpush.msra.mxu0 %v490
    %3435 = vmatpush.msra.mxu0 %v488
    %3436 = vmatpush.msra.mxu0 %v486
    %3437 = vmatmul.f32.gmra.mxu0 %v3115
    %v3438 = vpop.f32.mrf.mxu0
    %v3439 = vadd.f32 %v3419, %v3438
    %3440 = vdwg.mxu0
    %3441 = vmatpush.msra.mxu0 %v548
    %3442 = vmatpush.msra.mxu0 %v546
    %3443 = vmatpush.msra.mxu0 %v544
    %3444 = vmatpush.msra.mxu0 %v542
    %3445 = vmatpush.msra.mxu0 %v540
    %3446 = vmatpush.msra.mxu0 %v538
    %3447 = vmatpush.msra.mxu0 %v536
    %3448 = vmatpush.msra.mxu0 %v534
    %3449 = vmatpush.msra.mxu0 %v532
    %3450 = vmatpush.msra.mxu0 %v530
    %3451 = vmatpush.msra.mxu0 %v528
    %3452 = vmatpush.msra.mxu0 %v526
    %3453 = vmatpush.msra.mxu0 %v524
    %3454 = vmatpush.msra.mxu0 %v522
    %3455 = vmatpush.msra.mxu0 %v520
    %3456 = vmatpush.msra.mxu0 %v518
    %3457 = vmatmul.f32.gmra.mxu0 %v3116
    %v3458 = vpop.f32.mrf.mxu0
    %v3459 = vadd.f32 %v3439, %v3458
    %3460 = vdwg.mxu0
    %3461 = vmatpush.msra.mxu0 %v580
    %3462 = vmatpush.msra.mxu0 %v578
    %3463 = vmatpush.msra.mxu0 %v576
    %3464 = vmatpush.msra.mxu0 %v574
    %3465 = vmatpush.msra.mxu0 %v572
    %3466 = vmatpush.msra.mxu0 %v570
    %3467 = vmatpush.msra.mxu0 %v568
    %3468 = vmatpush.msra.mxu0 %v566
    %3469 = vmatpush.msra.mxu0 %v564
    %3470 = vmatpush.msra.mxu0 %v562
    %3471 = vmatpush.msra.mxu0 %v560
    %3472 = vmatpush.msra.mxu0 %v558
    %3473 = vmatpush.msra.mxu0 %v556
    %3474 = vmatpush.msra.mxu0 %v554
    %3475 = vmatpush.msra.mxu0 %v552
    %3476 = vmatpush.msra.mxu0 %v550
    %3477 = vmatmul.f32.gmra.mxu0 %v3118
    %v3478 = vpop.f32.mrf.mxu0
    %v3479 = vadd.f32 %v3459, %v3478
    %3480 = vdwg.mxu0
    %3481 = vmatpush.msra.mxu0 %v612
    %3482 = vmatpush.msra.mxu0 %v610
    %3483 = vmatpush.msra.mxu0 %v608
    %3484 = vmatpush.msra.mxu0 %v606
    %3485 = vmatpush.msra.mxu0 %v604
    %3486 = vmatpush.msra.mxu0 %v602
    %3487 = vmatpush.msra.mxu0 %v600
    %3488 = vmatpush.msra.mxu0 %v598
    %3489 = vmatpush.msra.mxu0 %v596
    %3490 = vmatpush.msra.mxu0 %v594
    %3491 = vmatpush.msra.mxu0 %v592
    %3492 = vmatpush.msra.mxu0 %v590
    %3493 = vmatpush.msra.mxu0 %v588
    %3494 = vmatpush.msra.mxu0 %v586
    %3495 = vmatpush.msra.mxu0 %v584
    %3496 = vmatpush.msra.mxu0 %v582
    %3497 = vmatmul.f32.gmra.mxu0 %v3119
    %v3498 = vpop.f32.mrf.mxu0
    %v3499 = vadd.f32 %v3479, %v3498
    %3500 = vdwg.mxu0
    %3501 = vmatpush.msra.mxu0 0.0
    %3502 = vmatpush.msra.mxu0 0.0
    %3503 = vmatpush.msra.mxu0 0.0
    %3504 = vmatpush.msra.mxu0 0.0
    %3505 = vmatpush.msra.mxu0 %v636
    %3506 = vmatpush.msra.mxu0 %v634
    %3507 = vmatpush.msra.mxu0 %v632
    %3508 = vmatpush.msra.mxu0 %v630
    %3509 = vmatpush.msra.mxu0 %v628
    %3510 = vmatpush.msra.mxu0 %v626
    %3511 = vmatpush.msra.mxu0 %v624
    %3512 = vmatpush.msra.mxu0 %v622
    %3513 = vmatpush.msra.mxu0 %v620
    %3514 = vmatpush.msra.mxu0 %v618
    %3515 = vmatpush.msra.mxu0 %v616
    %3516 = vmatpush.msra.mxu0 %v614
    %3517 = vmatmul.f32.gmra.mxu0 %v3139
    %v3518 = vpop.f32.mrf.mxu0
    %v3519 = vadd.f32 %v3499, %v3518
    %3520 = vdwg.mxu0
    %3521 = vmatpush.msra.mxu0 %v69
    %3522 = vmatpush.msra.mxu0 %v67
    %3523 = vmatpush.msra.mxu0 %v65
    %3524 = vmatpush.msra.mxu0 %v63
    %3525 = vmatpush.msra.mxu0 %v61
    %3526 = vmatpush.msra.mxu0 %v59
    %3527 = vmatpush.msra.mxu0 %v57
    %3528 = vmatpush.msra.mxu0 %v55
    %3529 = vmatpush.msra.mxu0 %v53
    %3530 = vmatpush.msra.mxu0 %v51
    %3531 = vmatpush.msra.mxu0 %v49
    %3532 = vmatpush.msra.mxu0 %v47
    %3533 = vmatpush.msra.mxu0 %v45
    %3534 = vmatpush.msra.mxu0 %v43
    %3535 = vmatpush.msra.mxu0 %v41
    %3536 = vmatpush.msra.mxu0 %v39
    %3537 = vmatmul.f32.gmra.mxu0 %v3099
    %v3538 = vpop.f32.mrf.mxu0
    %v3539 = vadd.f32 0.0, %v3538
    %3540 = vdwg.mxu0
    %3541 = vmatpush.msra.mxu0 %v101
    %3542 = vmatpush.msra.mxu0 %v99
    %3543 = vmatpush.msra.mxu0 %v97
    %3544 = vmatpush.msra.mxu0 %v95
    %3545 = vmatpush.msra.mxu0 %v93
    %3546 = vmatpush.msra.mxu0 %v91
    %3547 = vmatpush.msra.mxu0 %v89
    %3548 = vmatpush.msra.mxu0 %v87
    %3549 = vmatpush.msra.mxu0 %v85
    %3550 = vmatpush.msra.mxu0 %v83
    %3551 = vmatpush.msra.mxu0 %v81
    %3552 = vmatpush.msra.mxu0 %v79
    %3553 = vmatpush.msra.mxu0 %v77
    %3554 = vmatpush.msra.mxu0 %v75
    %3555 = vmatpush.msra.mxu0 %v73
    %3556 = vmatpush.msra.mxu0 %v71
    %3557 = vmatmul.f32.gmra.mxu0 %v3100
    %v3558 = vpop.f32.mrf.mxu0
    %v3559 = vadd.f32 %v3539, %v3558
    %3560 = vdwg.mxu0
    %3561 = vmatpush.msra.mxu0 %v133
    %3562 = vmatpush.msra.mxu0 %v131
    %3563 = vmatpush.msra.mxu0 %v129
    %3564 = vmatpush.msra.mxu0 %v127
    %3565 = vmatpush.msra.mxu0 %v125
    %3566 = vmatpush.msra.mxu0 %v123
    %3567 = vmatpush.msra.mxu0 %v121
    %3568 = vmatpush.msra.mxu0 %v119
    %3569 = vmatpush.msra.mxu0 %v117
    %3570 = vmatpush.msra.mxu0 %v115
    %3571 = vmatpush.msra.mxu0 %v113
    %3572 = vmatpush.msra.mxu0 %v111
    %3573 = vmatpush.msra.mxu0 %v109
    %3574 = vmatpush.msra.mxu0 %v107
    %3575 = vmatpush.msra.mxu0 %v105
    %3576 = vmatpush.msra.mxu0 %v103
    %3577 = vmatmul.f32.gmra.mxu0 %v3101
    %v3578 = vpop.f32.mrf.mxu0
    %v3579 = vadd.f32 %v3559, %v3578
    %3580 = vdwg.mxu0
    %3581 = vmatpush.msra.mxu0 %v165
    %3582 = vmatpush.msra.mxu0 %v163
    %3583 = vmatpush.msra.mxu0 %v161
    %3584 = vmatpush.msra.mxu0 %v159
    %3585 = vmatpush.msra.mxu0 %v157
    %3586 = vmatpush.msra.mxu0 %v155
    %3587 = vmatpush.msra.mxu0 %v153
    %3588 = vmatpush.msra.mxu0 %v151
    %3589 = vmatpush.msra.mxu0 %v149
    %3590 = vmatpush.msra.mxu0 %v147
    %3591 = vmatpush.msra.mxu0 %v145
    %3592 = vmatpush.msra.mxu0 %v143
    %3593 = vmatpush.msra.mxu0 %v141
    %3594 = vmatpush.msra.mxu0 %v139
    %3595 = vmatpush.msra.mxu0 %v137
    %3596 = vmatpush.msra.mxu0 %v135
    %3597 = vmatmul.f32.gmra.mxu0 %v3102
    %v3598 = vpop.f32.mrf.mxu0
    %v3599 = vadd.f32 %v3579, %v3598
    %3600 = vdwg.mxu0
    %3601 = vmatpush.msra.mxu0 %v197
    %3602 = vmatpush.msra.mxu0 %v195
    %3603 = vmatpush.msra.mxu0 %v193
    %3604 = vmatpush.msra.mxu0 %v191
    %3605 = vmatpush.msra.mxu0 %v189
    %3606 = vmatpush.msra.mxu0 %v187
    %3607 = vmatpush.msra.mxu0 %v185
    %3608 = vmatpush.msra.mxu0 %v183
    %3609 = vmatpush.msra.mxu0 %v181
    %3610 = vmatpush.msra.mxu0 %v179
    %3611 = vmatpush.msra.mxu0 %v177
    %3612 = vmatpush.msra.mxu0 %v175
    %3613 = vmatpush.msra.mxu0 %v173
    %3614 = vmatpush.msra.mxu0 %v171
    %3615 = vmatpush.msra.mxu0 %v169
    %3616 = vmatpush.msra.mxu0 %v167
    %3617 = vmatmul.f32.gmra.mxu0 %v3103
    %v3618 = vpop.f32.mrf.mxu0
    %v3619 = vadd.f32 %v3599, %v3618
    %3620 = vdwg.mxu0
    %3621 = vmatpush.msra.mxu0 %v229
    %3622 = vmatpush.msra.mxu0 %v227
    %3623 = vmatpush.msra.mxu0 %v225
    %3624 = vmatpush.msra.mxu0 %v223
    %3625 = vmatpush.msra.mxu0 %v221
    %3626 = vmatpush.msra.mxu0 %v219
    %3627 = vmatpush.msra.mxu0 %v217
    %3628 = vmatpush.msra.mxu0 %v215
    %3629 = vmatpush.msra.mxu0 %v213
    %3630 = vmatpush.msra.mxu0 %v211
    %3631 = vmatpush.msra.mxu0 %v209
    %3632 = vmatpush.msra.mxu0 %v207
    %3633 = vmatpush.msra.mxu0 %v205
    %3634 = vmatpush.msra.mxu0 %v203
    %3635 = vmatpush.msra.mxu0 %v201
    %3636 = vmatpush.msra.mxu0 %v199
    %3637 = vmatmul.f32.gmra.mxu0 %v3104
    %v3638 = vpop.f32.mrf.mxu0
    %v3639 = vadd.f32 %v3619, %v3638
    %3640 = vdwg.mxu0
    %3641 = vmatpush.msra.mxu0 %v261
    %3642 = vmatpush.msra.mxu0 %v259
    %3643 = vmatpush.msra.mxu0 %v257
    %3644 = vmatpush.msra.mxu0 %v255
    %3645 = vmatpush.msra.mxu0 %v253
    %3646 = vmatpush.msra.mxu0 %v251
    %3647 = vmatpush.msra.mxu0 %v249
    %3648 = vmatpush.msra.mxu0 %v247
    %3649 = vmatpush.msra.mxu0 %v245
    %3650 = vmatpush.msra.mxu0 %v243
    %3651 = vmatpush.msra.mxu0 %v241
    %3652 = vmatpush.msra.mxu0 %v239
    %3653 = vmatpush.msra.mxu0 %v237
    %3654 = vmatpush.msra.mxu0 %v235
    %3655 = vmatpush.msra.mxu0 %v233
    %3656 = vmatpush.msra.mxu0 %v231
    %3657 = vmatmul.f32.gmra.mxu0 %v3105
    %v3658 = vpop.f32.mrf.mxu0
    %v3659 = vadd.f32 %v3639, %v3658
    %3660 = vdwg.mxu0
    %3661 = vmatpush.msra.mxu0 %v293
    %3662 = vmatpush.msra.mxu0 %v291
    %3663 = vmatpush.msra.mxu0 %v289
    %3664 = vmatpush.msra.mxu0 %v287
    %3665 = vmatpush.msra.mxu0 %v285
    %3666 = vmatpush.msra.mxu0 %v283
    %3667 = vmatpush.msra.mxu0 %v281
    %3668 = vmatpush.msra.mxu0 %v279
    %3669 = vmatpush.msra.mxu0 %v277
    %3670 = vmatpush.msra.mxu0 %v275
    %3671 = vmatpush.msra.mxu0 %v273
    %3672 = vmatpush.msra.mxu0 %v271
    %3673 = vmatpush.msra.mxu0 %v269
    %3674 = vmatpush.msra.mxu0 %v267
    %3675 = vmatpush.msra.mxu0 %v265
    %3676 = vmatpush.msra.mxu0 %v263
    %3677 = vmatmul.f32.gmra.mxu0 %v3106
    %v3678 = vpop.f32.mrf.mxu0
    %v3679 = vadd.f32 %v3659, %v3678
    %3680 = vdwg.mxu0
    %3681 = vmatpush.msra.mxu0 %v325
    %3682 = vmatpush.msra.mxu0 %v323
    %3683 = vmatpush.msra.mxu0 %v321
    %3684 = vmatpush.msra.mxu0 %v319
    %3685 = vmatpush.msra.mxu0 %v317
    %3686 = vmatpush.msra.mxu0 %v315
    %3687 = vmatpush.msra.mxu0 %v313
    %3688 = vmatpush.msra.mxu0 %v311
    %3689 = vmatpush.msra.mxu0 %v309
    %3690 = vmatpush.msra.mxu0 %v307
    %3691 = vmatpush.msra.mxu0 %v305
    %3692 = vmatpush.msra.mxu0 %v303
    %3693 = vmatpush.msra.mxu0 %v301
    %3694 = vmatpush.msra.mxu0 %v299
    %3695 = vmatpush.msra.mxu0 %v297
    %3696 = vmatpush.msra.mxu0 %v295
    %3697 = vmatmul.f32.gmra.mxu0 %v3109
    %v3698 = vpop.f32.mrf.mxu0
    %v3699 = vadd.f32 %v3679, %v3698
    %3700 = vdwg.mxu0
    %3701 = vmatpush.msra.mxu0 %v357
    %3702 = vmatpush.msra.mxu0 %v355
    %3703 = vmatpush.msra.mxu0 %v353
    %3704 = vmatpush.msra.mxu0 %v351
    %3705 = vmatpush.msra.mxu0 %v349
    %3706 = vmatpush.msra.mxu0 %v347
    %3707 = vmatpush.msra.mxu0 %v345
    %3708 = vmatpush.msra.mxu0 %v343
    %3709 = vmatpush.msra.mxu0 %v341
    %3710 = vmatpush.msra.mxu0 %v339
    %3711 = vmatpush.msra.mxu0 %v337
    %3712 = vmatpush.msra.mxu0 %v335
    %3713 = vmatpush.msra.mxu0 %v333
    %3714 = vmatpush.msra.mxu0 %v331
    %3715 = vmatpush.msra.mxu0 %v329
    %3716 = vmatpush.msra.mxu0 %v327
    %3717 = vmatmul.f32.gmra.mxu0 %v3110
    %v3718 = vpop.f32.mrf.mxu0
    %v3719 = vadd.f32 %v3699, %v3718
    %3720 = vdwg.mxu0
    %3721 = vmatpush.msra.mxu0 %v389
    %3722 = vmatpush.msra.mxu0 %v387
    %3723 = vmatpush.msra.mxu0 %v385
    %3724 = vmatpush.msra.mxu0 %v383
    %3725 = vmatpush.msra.mxu0 %v381
    %3726 = vmatpush.msra.mxu0 %v379
    %3727 = vmatpush.msra.mxu0 %v377
    %3728 = vmatpush.msra.mxu0 %v375
    %3729 = vmatpush.msra.mxu0 %v373
    %3730 = vmatpush.msra.mxu0 %v371
    %3731 = vmatpush.msra.mxu0 %v369
    %3732 = vmatpush.msra.mxu0 %v367
    %3733 = vmatpush.msra.mxu0 %v365
    %3734 = vmatpush.msra.mxu0 %v363
    %3735 = vmatpush.msra.mxu0 %v361
    %3736 = vmatpush.msra.mxu0 %v359
    %3737 = vmatmul.f32.gmra.mxu0 %v3111
    %v3738 = vpop.f32.mrf.mxu0
    %v3739 = vadd.f32 %v3719, %v3738
    %3740 = vdwg.mxu0
    %3741 = vmatpush.msra.mxu0 %v421
    %3742 = vmatpush.msra.mxu0 %v419
    %3743 = vmatpush.msra.mxu0 %v417
    %3744 = vmatpush.msra.mxu0 %v415
    %3745 = vmatpush.msra.mxu0 %v413
    %3746 = vmatpush.msra.mxu0 %v411
    %3747 = vmatpush.msra.mxu0 %v409
    %3748 = vmatpush.msra.mxu0 %v407
    %3749 = vmatpush.msra.mxu0 %v405
    %3750 = vmatpush.msra.mxu0 %v403
    %3751 = vmatpush.msra.mxu0 %v401
    %3752 = vmatpush.msra.mxu0 %v399
    %3753 = vmatpush.msra.mxu0 %v397
    %3754 = vmatpush.msra.mxu0 %v395
    %3755 = vmatpush.msra.mxu0 %v393
    %3756 = vmatpush.msra.mxu0 %v391
    %3757 = vmatmul.f32.gmra.mxu0 %v3112
    %v3758 = vpop.f32.mrf.mxu0
    %v3759 = vadd.f32 %v3739, %v3758
    %3760 = vdwg.mxu0
    %3761 = vmatpush.msra.mxu0 %v453
    %3762 = vmatpush.msra.mxu0 %v451
    %3763 = vmatpush.msra.mxu0 %v449
    %3764 = vmatpush.msra.mxu0 %v447
    %3765 = vmatpush.msra.mxu0 %v445
    %3766 = vmatpush.msra.mxu0 %v443
    %3767 = vmatpush.msra.mxu0 %v441
    %3768 = vmatpush.msra.mxu0 %v439
    %3769 = vmatpush.msra.mxu0 %v437
    %3770 = vmatpush.msra.mxu0 %v435
    %3771 = vmatpush.msra.mxu0 %v433
    %3772 = vmatpush.msra.mxu0 %v431
    %3773 = vmatpush.msra.mxu0 %v429
    %3774 = vmatpush.msra.mxu0 %v427
    %3775 = vmatpush.msra.mxu0 %v425
    %3776 = vmatpush.msra.mxu0 %v423
    %3777 = vmatmul.f32.gmra.mxu0 %v3113
    %v3778 = vpop.f32.mrf.mxu0
    %v3779 = vadd.f32 %v3759, %v3778
    %3780 = vdwg.mxu0
    %3781 = vmatpush.msra.mxu0 %v485
    %3782 = vmatpush.msra.mxu0 %v483
    %3783 = vmatpush.msra.mxu0 %v481
    %3784 = vmatpush.msra.mxu0 %v479
    %3785 = vmatpush.msra.mxu0 %v477
    %3786 = vmatpush.msra.mxu0 %v475
    %3787 = vmatpush.msra.mxu0 %v473
    %3788 = vmatpush.msra.mxu0 %v471
    %3789 = vmatpush.msra.mxu0 %v469
    %3790 = vmatpush.msra.mxu0 %v467
    %3791 = vmatpush.msra.mxu0 %v465
    %3792 = vmatpush.msra.mxu0 %v463
    %3793 = vmatpush.msra.mxu0 %v461
    %3794 = vmatpush.msra.mxu0 %v459
    %3795 = vmatpush.msra.mxu0 %v457
    %3796 = vmatpush.msra.mxu0 %v455
    %3797 = vmatmul.f32.gmra.mxu0 %v3114
    %v3798 = vpop.f32.mrf.mxu0
    %v3799 = vadd.f32 %v3779, %v3798
    %3800 = vdwg.mxu0
    %3801 = vmatpush.msra.mxu0 %v517
    %3802 = vmatpush.msra.mxu0 %v515
    %3803 = vmatpush.msra.mxu0 %v513
    %3804 = vmatpush.msra.mxu0 %v511
    %3805 = vmatpush.msra.mxu0 %v509
    %3806 = vmatpush.msra.mxu0 %v507
    %3807 = vmatpush.msra.mxu0 %v505
    %3808 = vmatpush.msra.mxu0 %v503
    %3809 = vmatpush.msra.mxu0 %v501
    %3810 = vmatpush.msra.mxu0 %v499
    %3811 = vmatpush.msra.mxu0 %v497
    %3812 = vmatpush.msra.mxu0 %v495
    %3813 = vmatpush.msra.mxu0 %v493
    %3814 = vmatpush.msra.mxu0 %v491
    %3815 = vmatpush.msra.mxu0 %v489
    %3816 = vmatpush.msra.mxu0 %v487
    %3817 = vmatmul.f32.gmra.mxu0 %v3115
    %v3818 = vpop.f32.mrf.mxu0
    %v3819 = vadd.f32 %v3799, %v3818
    %3820 = vdwg.mxu0
    %3821 = vmatpush.msra.mxu0 %v549
    %3822 = vmatpush.msra.mxu0 %v547
    %3823 = vmatpush.msra.mxu0 %v545
    %3824 = vmatpush.msra.mxu0 %v543
    %3825 = vmatpush.msra.mxu0 %v541
    %3826 = vmatpush.msra.mxu0 %v539
    %3827 = vmatpush.msra.mxu0 %v537
    %3828 = vmatpush.msra.mxu0 %v535
    %3829 = vmatpush.msra.mxu0 %v533
    %3830 = vmatpush.msra.mxu0 %v531
    %3831 = vmatpush.msra.mxu0 %v529
    %3832 = vmatpush.msra.mxu0 %v527
    %3833 = vmatpush.msra.mxu0 %v525
    %3834 = vmatpush.msra.mxu0 %v523
    %3835 = vmatpush.msra.mxu0 %v521
    %3836 = vmatpush.msra.mxu0 %v519
    %3837 = vmatmul.f32.gmra.mxu0 %v3116
    %v3838 = vpop.f32.mrf.mxu0
    %v3839 = vadd.f32 %v3819, %v3838
    %3840 = vdwg.mxu0
    %3841 = vmatpush.msra.mxu0 %v581
    %3842 = vmatpush.msra.mxu0 %v579
    %3843 = vmatpush.msra.mxu0 %v577
    %3844 = vmatpush.msra.mxu0 %v575
    %3845 = vmatpush.msra.mxu0 %v573
    %3846 = vmatpush.msra.mxu0 %v571
    %3847 = vmatpush.msra.mxu0 %v569
    %3848 = vmatpush.msra.mxu0 %v567
    %3849 = vmatpush.msra.mxu0 %v565
    %3850 = vmatpush.msra.mxu0 %v563
    %3851 = vmatpush.msra.mxu0 %v561
    %3852 = vmatpush.msra.mxu0 %v559
    %3853 = vmatpush.msra.mxu0 %v557
    %3854 = vmatpush.msra.mxu0 %v555
    %3855 = vmatpush.msra.mxu0 %v553
    %3856 = vmatpush.msra.mxu0 %v551
    %3857 = vmatmul.f32.gmra.mxu0 %v3118
    %v3858 = vpop.f32.mrf.mxu0
    %v3859 = vadd.f32 %v3839, %v3858
    %3860 = vdwg.mxu0
    %3861 = vmatpush.msra.mxu0 %v613
    %3862 = vmatpush.msra.mxu0 %v611
    %3863 = vmatpush.msra.mxu0 %v609
    %3864 = vmatpush.msra.mxu0 %v607
    %3865 = vmatpush.msra.mxu0 %v605
    %3866 = vmatpush.msra.mxu0 %v603
    %3867 = vmatpush.msra.mxu0 %v601
    %3868 = vmatpush.msra.mxu0 %v599
    %3869 = vmatpush.msra.mxu0 %v597
    %3870 = vmatpush.msra.mxu0 %v595
    %3871 = vmatpush.msra.mxu0 %v593
    %3872 = vmatpush.msra.mxu0 %v591
    %3873 = vmatpush.msra.mxu0 %v589
    %3874 = vmatpush.msra.mxu0 %v587
    %3875 = vmatpush.msra.mxu0 %v585
    %3876 = vmatpush.msra.mxu0 %v583
    %3877 = vmatmul.f32.gmra.mxu0 %v3119
    %v3878 = vpop.f32.mrf.mxu0
    %v3879 = vadd.f32 %v3859, %v3878
    %3880 = vdwg.mxu0
    %3881 = vmatpush.msra.mxu0 0.0
    %3882 = vmatpush.msra.mxu0 0.0
    %3883 = vmatpush.msra.mxu0 0.0
    %3884 = vmatpush.msra.mxu0 0.0
    %3885 = vmatpush.msra.mxu0 %v637
    %3886 = vmatpush.msra.mxu0 %v635
    %3887 = vmatpush.msra.mxu0 %v633
    %3888 = vmatpush.msra.mxu0 %v631
    %3889 = vmatpush.msra.mxu0 %v629
    %3890 = vmatpush.msra.mxu0 %v627
    %3891 = vmatpush.msra.mxu0 %v625
    %3892 = vmatpush.msra.mxu0 %v623
    %3893 = vmatpush.msra.mxu0 %v621
    %3894 = vmatpush.msra.mxu0 %v619
    %3895 = vmatpush.msra.mxu0 %v617
    %3896 = vmatpush.msra.mxu0 %v615
    %3897 = vmatmul.f32.gmra.mxu0 %v3139
    %v3898 = vpop.f32.mrf.mxu0
    %v3899 = vadd.f32 %v3879, %v3898
    %3900 = vdwg.mxu0
    %v3901 = vmax.f32 %v3083, %v3519
    %v3902 = vmax.f32 %v3084, %v3899
    %v3903 = vld [vmem:[%s2] sm:$0x3]
    %v3905 = vperm.slane %v3903, 0
    %v3906 = vperm.slane %v3903, 1
    %v3909 = vadd.f32 %v3901, %v3905
    %v3910 = vadd.f32 %v3902, %v3906
    %v3911 = vmax.f32 %v3909, 0.0
    %v3912 = vmax.f32 %v3910, 0.0
    %v3913 = vld [vmem:[%s3] sm:$0xff]
    %v3914 = vld [vmem:[%s3 + $0x8] sm:$0xff]
    %v3915 = vld [vmem:[%s3 + $0x10] sm:$0xff]
    %v3916 = vld [vmem:[%s3 + $0x18] sm:$0xff]
    %v3917 = vld [vmem:[%s3 + $0x20] sm:$0xff]
    %v3918 = vld [vmem:[%s3 + $0x28] sm:$0xff]
    %v3919 = vld [vmem:[%s3 + $0x30] sm:$0xff]
    %v3920 = vld [vmem:[%s3 + $0x38] sm:$0xff]
    %v3921 = vld [vmem:[%s3 + $0x40] sm:$0xff]
    %v3922 = vld [vmem:[%s3 + $0x48] sm:$0xff]
    %v3923 = vld [vmem:[%s3 + $0x50] sm:$0xff]
    %v3924 = vld [vmem:[%s3 + $0x58] sm:$0xff]
    %v3925 = vld [vmem:[%s3 + $0x60] sm:$0xff]
    %v3926 = vld [vmem:[%s3 + $0x68] sm:$0xff]
    %v3927 = vld [vmem:[%s3 + $0x70] sm:$0xff]
    %v3928 = vld [vmem:[%s3 + $0x78] sm:$0xff]
    %v3929 = vld [vmem:[%s3 + $0x80] sm:$0xff]
    %v3930 = vld [vmem:[%s3 + $0x88] sm:$0xff]
    %v3931 = vld [vmem:[%s3 + $0x90] sm:$0xff]
    %v3932 = vld [vmem:[%s3 + $0x98] sm:$0xff]
    %v3933 = vld [vmem:[%s3 + $0xa0] sm:$0xff]
    %v3934 = vld [vmem:[%s3 + $0xa8] sm:$0xff]
    %v3935 = vld [vmem:[%s3 + $0xb0] sm:$0xff]
    %v3936 = vld [vmem:[%s3 + $0xb8] sm:$0xff]
    %v3937 = vld [vmem:[%s3 + $0xc0] sm:$0xff]
    %v3938 = vld [vmem:[%s3 + $0xc8] sm:$0xff]
    %v3939 = vld [vmem:[%s3 + $0xd0] sm:$0xff]
    %v3940 = vld [vmem:[%s3 + $0xd8] sm:$0xff]
    %v3941 = vld [vmem:[%s3 + $0xe0] sm:$0xff]
    %v3942 = vld [vmem:[%s3 + $0xe8] sm:$0xff]
    %v3943 = vld [vmem:[%s3 + $0xf0] sm:$0xff]
    %v3944 = vld [vmem:[%s3 + $0xf8] sm:$0xff]
    %v3945 = vld [vmem:[%s4] sm:$0x1]
    %v3947 = vperm.slane %v3945, 0
    %3949 = vmatpush.msra.mxu0 %v3928
    %3950 = vmatpush.msra.mxu0 %v3927
    %3951 = vmatpush.msra.mxu0 %v3926
    %3952 = vmatpush.msra.mxu0 %v3925
    %3953 = vmatpush.msra.mxu0 %v3924
    %3954 = vmatpush.msra.mxu0 %v3923
    %3955 = vmatpush.msra.mxu0 %v3922
    %3956 = vmatpush.msra.mxu0 %v3921
    %3957 = vmatpush.msra.mxu0 %v3920
    %3958 = vmatpush.msra.mxu0 %v3919
    %3959 = vmatpush.msra.mxu0 %v3918
    %3960 = vmatpush.msra.mxu0 %v3917
    %3961 = vmatpush.msra.mxu0 %v3916
    %3962 = vmatpush.msra.mxu0 %v3915
    %3963 = vmatpush.msra.mxu0 %v3914
    %3964 = vmatpush.msra.mxu0 %v3913
    %3965 = vmatmul.f32.gmra.mxu0 %v3911
    %v3966 = vpop.f32.mrf.mxu0
    %v3967 = vadd.f32 %v3947, %v3966
    %3968 = vdwg.mxu0
    %3969 = vmatpush.msra.mxu0 %v3944
    %3970 = vmatpush.msra.mxu0 %v3943
    %3971 = vmatpush.msra.mxu0 %v3942
    %3972 = vmatpush.msra.mxu0 %v3941
    %3973 = vmatpush.msra.mxu0 %v3940
    %3974 = vmatpush.msra.mxu0 %v3939
    %3975 = vmatpush.msra.mxu0 %v3938
    %3976 = vmatpush.msra.mxu0 %v3937
    %3977 = vmatpush.msra.mxu0 %v3936
    %3978 = vmatpush.msra.mxu0 %v3935
    %3979 = vmatpush.msra.mxu0 %v3934
    %3980 = vmatpush.msra.mxu0 %v3933
    %3981 = vmatpush.msra.mxu0 %v3932
    %3982 = vmatpush.msra.mxu0 %v3931
    %3983 = vmatpush.msra.mxu0 %v3930
    %3984 = vmatpush.msra.mxu0 %v3929
    %3985 = vmatmul.f32.gmra.mxu0 %v3912
    %v3986 = vpop.f32.mrf.mxu0
    %v3987 = vadd.f32 %v3967, %v3986
    %3988 = vdwg.mxu0
    %v3989 = vld [vmem:[%s5] sm:$0xff]
    %v3990 = vld [vmem:[%s5 + $0x8] sm:$0xff]
    %v3991 = vld [vmem:[%s5 + $0x10] sm:$0xff]
    %v3992 = vld [vmem:[%s5 + $0x18] sm:$0xff]
    %v3993 = vld [vmem:[%s5 + $0x20] sm:$0xff]
    %v3994 = vld [vmem:[%s5 + $0x28] sm:$0xff]
    %v3995 = vld [vmem:[%s5 + $0x30] sm:$0xff]
    %v3996 = vld [vmem:[%s5 + $0x38] sm:$0xff]
    %v3997 = vld [vmem:[%s5 + $0x40] sm:$0xff]
    %v3998 = vld [vmem:[%s5 + $0x48] sm:$0xff]
    %v3999 = vld [vmem:[%s5 + $0x50] sm:$0xff]
    %v4000 = vld [vmem:[%s5 + $0x58] sm:$0xff]
    %v4001 = vld [vmem:[%s5 + $0x60] sm:$0xff]
    %v4002 = vld [vmem:[%s5 + $0x68] sm:$0xff]
    %v4003 = vld [vmem:[%s5 + $0x70] sm:$0xff]
    %v4004 = vld [vmem:[%s6] sm:$0x1]
    %v4006 = vperm.slane %v4004, 0
    %vm4008 = vcmask 982016
    %v4010 = vsel %vm4008, %v3987, 0
    %4012 = vmatpush.msra.mxu0 0.0
    %4013 = vmatpush.msra.mxu0 %v4003
    %4014 = vmatpush.msra.mxu0 %v4002
    %4015 = vmatpush.msra.mxu0 %v4001
    %4016 = vmatpush.msra.mxu0 %v4000
    %4017 = vmatpush.msra.mxu0 %v3999
    %4018 = vmatpush.msra.mxu0 %v3998
    %4019 = vmatpush.msra.mxu0 %v3997
    %4020 = vmatpush.msra.mxu0 %v3996
    %4021 = vmatpush.msra.mxu0 %v3995
    %4022 = vmatpush.msra.mxu0 %v3994
    %4023 = vmatpush.msra.mxu0 %v3993
    %4024 = vmatpush.msra.mxu0 %v3992
    %4025 = vmatpush.msra.mxu0 %v3991
    %4026 = vmatpush.msra.mxu0 %v3990
    %4027 = vmatpush.msra.mxu0 %v3989
    %4028 = vmatmul.f32.gmra.mxu0 %v4010
    %v4029 = vpop.f32.mrf.mxu0
    %v4030 = vadd.f32 %v4006, %v4029
    %4031 = vdwg.mxu0
    %v4032 = vld [vmem:[%s7] sm:$0xff]
    %v4033 = vld [vmem:[%s7 + $0x8] sm:$0xff]
    %v4034 = vld [vmem:[%s7 + $0x10] sm:$0xff]
    %v4035 = vld [vmem:[%s7 + $0x18] sm:$0xff]
    %v4036 = vld [vmem:[%s7 + $0x20] sm:$0xff]
    %v4037 = vld [vmem:[%s7 + $0x28] sm:$0xff]
    %v4038 = vld [vmem:[%s7 + $0x30] sm:$0xff]
    %v4039 = vld [vmem:[%s7 + $0x38] sm:$0xff]
    %v4040 = vld [vmem:[%s7 + $0x40] sm:$0xff]
    %v4041 = vld [vmem:[%s7 + $0x48] sm:$0xff]
    %v4042 = vld [vmem:[%s7 + $0x50] sm:$0xf]
    %v4043 = vld [vmem:[%s8] sm:$0x1]
    %v4045 = vperm.slane %v4043, 0
    %vm4047 = vcmask 687104
    %v4049 = vsel %vm4047, %v4030, 0
    %vm4051 = vcmask 1043456
    %v4053 = vsel %vm4051, %v4042, 0
    %4055 = vmatpush.msra.mxu0 0.0
    %4056 = vmatpush.msra.mxu0 0.0
    %4057 = vmatpush.msra.mxu0 0.0
    %4058 = vmatpush.msra.mxu0 0.0
    %4059 = vmatpush.msra.mxu0 0.0
    %4060 = vmatpush.msra.mxu0 %v4053
    %4061 = vmatpush.msra.mxu0 %v4041
    %4062 = vmatpush.msra.mxu0 %v4040
    %4063 = vmatpush.msra.mxu0 %v4039
    %4064 = vmatpush.msra.mxu0 %v4038
    %4065 = vmatpush.msra.mxu0 %v4037
    %4066 = vmatpush.msra.mxu0 %v4036
    %4067 = vmatpush.msra.mxu0 %v4035
    %4068 = vmatpush.msra.mxu0 %v4034
    %4069 = vmatpush.msra.mxu0 %v4033
    %4070 = vmatpush.msra.mxu0 %v4032
    %4071 = vmatmul.f32.gmra.mxu0 %v4049
    %v4072 = vpop.f32.mrf.mxu0
    %v4073 = vadd.f32 %v4045, %v4072
    %4074 = vdwg.mxu0
    %vm4075 = vcmask 74752
    %4076 = vst.msk [vmem:[#allocation2] sm:$0x3] %vm4075, %v4073
    // Predicated region
    $region38: #{_lambda_.3} parent=1 // pred_check
      _
    $region39: #{_lambda_.3} parent=1 // pred_check_branch
      %4078 = sbr.rel (0) target = $region41
    $region40: #{_lambda_.3} parent=1 // pred_region
      %4080 = vsyncadd [#allocation3], 0
      %s4082 = sshll.u32 [#allocation2], 4
      %s4083 = int_to_ptr.vmem [resolvable:$true] %s4082
      %s4084 = sshll.u32 %s9, 4
      %s4085 = int_to_ptr.hbm [resolvable:$true] %s4084
      %4087 = dma.vmem_to_hbm [thread:$0]  %s4083, 32, %s4085, [#allocation3]
    $region41: #{_lambda_.3} parent=1 // pred_fallthru
      _
    // Predicated region
    $region42: #{_lambda_.3} parent=1 // pred_check
      _
    $region43: #{_lambda_.3} parent=1 // pred_check_branch
      %4089 = sbr.rel (0) target = $region45
    $region44: #{_lambda_.3} parent=1 // pred_region
      %4091 = dma.done [#allocation3], 32
    $region45: #{_lambda_.3} parent=1 // pred_fallthru
      _
    %4092 = vsyncpa [#allocation3], 1

</llo_original>
